<compile_context>
chip_gen: v5e
topology: v5e:2x2
jax: 0.10.0
libtpu: 0.0.40
codegen_flags: <defaults>
</compile_context>

<pallas_src>
import functools

import jax
import jax.numpy as jnp
from jax.experimental import pallas as pl
from jax.experimental.pallas import tpu as pltpu

BN_EPS = 1e-5
KH, STRIDE, PAD = 6, 3, 1          # both conv layers: kernel (6,1), stride (3,1), pad (1,0)
C_MID, C_OUT = 64, 128             # layer-1 / layer-2 output channels


# ---------------- fused Pallas kernel ----------------

def _make_fused_kernel(n_batch, width, h1, h2):
    """conv1+BN+ReLU -> conv2+BN+ReLU -> flatten -> FC, all in one kernel body."""
    B = width * n_batch                        # rows per height-group (w, n inner order)
    G = -(-(h1 + 2 * PAD) // STRIDE)           # number of stride-3 height groups (padded)
    phase = G * B                              # rows per phase block (r fixed)
    m1 = 3 * phase                             # conv1 matmul rows (incl. pad / unused rows)
    n_valid1 = n_batch * h1 * width            # real conv1 positions -> BN1 count
    slab = h2 * B                              # rows of one conv2 im2col slab
    pos = h2 * width                           # spatial positions per sample after layer 2
    assert G >= h2 + 1

    def kernel(xcol_ref, w1_ref, g1_ref, b1_ref, w2_ref, g2_ref, b2_ref,
               wfc_ref, bfc_ref, flat_ref, out_ref, a1_ref, a2_ref):
        f32 = jnp.float32

        # ---- layer 1: conv1 (matmul, bias folded away by BN) + BN batch stats + ReLU ----
        y1 = jnp.dot(xcol_ref[...], w1_ref[...], preferred_element_type=f32)   # (m1, C_MID)
        # pad / unused im2col rows are all-zero (and bias-free) -> they contribute exactly 0
        # to the sums, so these are the per-channel stats over the n_valid1 real rows.
        inv1 = 1.0 / n_valid1
        mean1 = jnp.sum(y1, axis=0, keepdims=True) * inv1
        var1 = jnp.sum(y1 * y1, axis=0, keepdims=True) * inv1 - mean1 * mean1
        scale1 = g1_ref[...] * jax.lax.rsqrt(var1 + BN_EPS)
        shift1 = b1_ref[...] - mean1 * scale1
        a1 = jnp.maximum(y1 * scale1 + shift1, 0.0)                            # (m1, C_MID)
        # conv2's bottom zero-padding row is (r=0, g=0) == rows [0, B): force it to zero.
        # (the other pad / unused rows are never read by any slab below.)
        rows = jax.lax.broadcasted_iota(jnp.int32, (m1, 1), 0)
        a1_ref[...] = a1 * (rows >= B).astype(f32)                             # VMEM-resident act1

        # ---- layer 2: conv2 = 6 accumulated matmuls over contiguous phase slabs ----
        y2 = None
        for k in range(KH):
            q, r = k // STRIDE, k % STRIDE
            start = r * phase + q * B
            term = jnp.dot(a1_ref[start:start + slab, :],
                           w2_ref[k * C_MID:(k + 1) * C_MID, :],
                           preferred_element_type=f32)                         # (slab, C_OUT)
            y2 = term if y2 is None else y2 + term
        inv2 = 1.0 / slab
        mean2 = jnp.sum(y2, axis=0, keepdims=True) * inv2
        var2 = jnp.sum(y2 * y2, axis=0, keepdims=True) * inv2 - mean2 * mean2
        scale2 = g2_ref[...] * jax.lax.rsqrt(var2 + BN_EPS)
        shift2 = b2_ref[...] - mean2 * scale2
        a2_ref[...] = jnp.maximum(y2 * scale2 + shift2, 0.0)                   # rows = (h2, w, n)

        # ---- flatten (channels-last, batch on rows, lane-dense) + fused FC ----
        flat = jnp.concatenate(
            [a2_ref[j * n_batch:(j + 1) * n_batch, :] for j in range(pos)], axis=1)  # (N, pos*C_OUT)
        flat_ref[...] = flat
        out_ref[...] = jnp.dot(flat, wfc_ref[...], preferred_element_type=f32) + bfc_ref[...]

    scratch = [pltpu.VMEM((m1, C_MID), jnp.float32),
               pltpu.VMEM((slab, C_OUT), jnp.float32)]
    return kernel, scratch


# ---------------- plain-JAX glue ----------------

def _conv1_im2col_phase_major(x, groups, k_pad):
    """(N, C, H, W) -> (3*G*W*N, k_pad) conv1 im2col, rows ordered (r, g, w, n) with
    h_pad = 3*g + r the conv2-padded height index (pad / unused rows are zero)."""
    n, c, h, w = x.shape
    h1 = (h + 2 * PAD - KH) // STRIDE + 1
    xp = jnp.pad(x, ((0, 0), (0, 0), (PAD, PAD), (0, 0)))
    idx = jnp.arange(h1)[:, None] * STRIDE + jnp.arange(KH)[None, :]           # (H1, KH)
    patches = xp[:, :, idx, :]                                                 # (N, C, H1, KH, W)
    cols = jnp.transpose(patches, (2, 4, 0, 1, 3)).reshape(h1, w, n, c * KH)   # (H1, W, N, C*KH)
    cols = jnp.pad(cols, ((0, 0), (0, 0), (0, 0), (0, k_pad - c * KH)))        # pad K 6 -> 8
    full = jnp.pad(cols, ((PAD, 3 * groups - h1 - PAD), (0, 0), (0, 0), (0, 0)))  # (3G, W, N, Kp)
    full = jnp.transpose(full.reshape(groups, 3, w, n, k_pad), (1, 0, 2, 3, 4))   # (r, g, w, n, Kp)
    return full.reshape(3 * groups * w * n, k_pad)


def _forward(x, kp, num_classes):
    n, c_in, h, w = x.shape
    h1 = (h + 2 * PAD - KH) // STRIDE + 1
    h2 = (h1 + 2 * PAD - KH) // STRIDE + 1
    groups = -(-(h1 + 2 * PAD) // STRIDE)
    k1p = -(-(c_in * KH) // 8) * 8
    pos = h2 * w
    ppad = kp["bfc"].shape[1]
    assert pos * C_OUT == kp["wfc"].shape[0], "fc in_features mismatch with input shape"

    xcol = _conv1_im2col_phase_major(x, groups, k1p)
    kernel, scratch = _make_fused_kernel(n, w, h1, h2)

    flat_k, out_pad = pl.pallas_call(
        kernel,
        out_shape=(jax.ShapeDtypeStruct((n, pos * C_OUT), jnp.float32),
                   jax.ShapeDtypeStruct((n, ppad), jnp.float32)),
        in_specs=[pl.BlockSpec(memory_space=pltpu.MemorySpace.VMEM) for _ in range(9)],
        out_specs=(pl.BlockSpec(memory_space=pltpu.MemorySpace.VMEM),
                   pl.BlockSpec(memory_space=pltpu.MemorySpace.VMEM)),
        scratch_shapes=scratch,
    )(xcol, kp["w1"], kp["g1"], kp["b1"], kp["w2"], kp["g2"], kp["b2"],
      kp["wfc"], kp["bfc"])

    # kernel flat order is channels-last (h2, w, c); PyTorch's x.view(N, -1) is NCHW.
    flat = jnp.transpose(flat_k.reshape(n, pos, C_OUT), (0, 2, 1)).reshape(n, C_OUT * pos)
    return flat, out_pad[:, :num_classes]


def make_forward(num_classes):
    return jax.jit(functools.partial(_forward, num_classes=num_classes))


# ---------------- parameters ----------------

def init_params(key, input_channel, num_classes):
    """PyTorch-layout parameters of CNN_reduce_layers."""
    ks = jax.random.split(key, 10)
    p = {}
    p["conv1_w"] = 0.10 * jax.random.normal(ks[0], (C_MID, input_channel, KH, 1), jnp.float32)
    p["conv1_b"] = 0.05 * jax.random.normal(ks[1], (C_MID,), jnp.float32)
    p["bn1_gamma"] = 1.0 + 0.1 * jax.random.normal(ks[2], (C_MID,), jnp.float32)
    p["bn1_beta"] = 0.1 * jax.random.normal(ks[3], (C_MID,), jnp.float32)
    p["conv2_w"] = 0.05 * jax.random.normal(ks[4], (C_OUT, C_MID, KH, 1), jnp.float32)
    p["conv2_b"] = 0.05 * jax.random.normal(ks[5], (C_OUT,), jnp.float32)
    p["bn2_gamma"] = 1.0 + 0.1 * jax.random.normal(ks[6], (C_OUT,), jnp.float32)
    p["bn2_beta"] = 0.1 * jax.random.normal(ks[7], (C_OUT,), jnp.float32)
    p["fc_w"] = 0.02 * jax.random.normal(ks[8], (num_classes, 4608), jnp.float32)
    p["fc_b"] = 0.02 * jax.random.normal(ks[9], (num_classes,), jnp.float32)
    return p


def pack_params(p):
    """One-time preprocessing into the layouts the fused kernel consumes (hoisted out of
    the per-call path).  conv biases are intentionally dropped: a per-channel bias before
    training-mode BatchNorm cancels exactly in (y - mean)."""
    c_in = p["conv1_w"].shape[1]
    k1 = c_in * KH
    k1p = -(-k1 // 8) * 8
    w1 = jnp.transpose(p["conv1_w"][:, :, :, 0], (1, 2, 0)).reshape(k1, C_MID)     # rows (c, kh)
    w1 = jnp.pad(w1, ((0, k1p - k1), (0, 0)))
    w2 = jnp.transpose(p["conv2_w"][:, :, :, 0], (2, 1, 0)).reshape(KH * C_MID, C_OUT)  # rows (kh, c)
    num_classes, fc_in = p["fc_w"].shape
    pos = fc_in // C_OUT
    ppad = max(128, -(-num_classes // 128) * 128)
    wfc = jnp.transpose(p["fc_w"].reshape(num_classes, C_OUT, pos), (2, 1, 0))     # (pos, c, p)
    wfc = jnp.pad(wfc.reshape(pos * C_OUT, num_classes), ((0, 0), (0, ppad - num_classes)))
    bfc = jnp.pad(p["fc_b"], (0, ppad - num_classes)).reshape(1, ppad)
    return {
        "w1": w1,
        "g1": p["bn1_gamma"].reshape(1, C_MID), "b1": p["bn1_beta"].reshape(1, C_MID),
        "w2": w2,
        "g2": p["bn2_gamma"].reshape(1, C_OUT), "b2": p["bn2_beta"].reshape(1, C_OUT),
        "wfc": wfc, "bfc": bfc,
    }


# ---------------- plain-XLA reference (for a loose sanity check) ----------------

def _reference_forward(x, p):
    def layer(x, w, b, gamma, beta):
        y = jax.lax.conv_general_dilated(
            x, w, window_strides=(STRIDE, 1), padding=((PAD, PAD), (0, 0)),
            dimension_numbers=("NCHW", "OIHW", "NCHW"))
        y = y + b.reshape(1, -1, 1, 1)
        mean = jnp.mean(y, axis=(0, 2, 3), keepdims=True)
        var = jnp.mean(jnp.square(y - mean), axis=(0, 2, 3), keepdims=True)
        yhat = (y - mean) * jax.lax.rsqrt(var + BN_EPS)
        return jnp.maximum(yhat * gamma.reshape(1, -1, 1, 1) + beta.reshape(1, -1, 1, 1), 0.0)

    a = layer(x, p["conv1_w"], p["conv1_b"], p["bn1_gamma"], p["bn1_beta"])
    a = layer(a, p["conv2_w"], p["conv2_b"], p["bn2_gamma"], p["bn2_beta"])
    flat = a.reshape(a.shape[0], -1)
    return flat, flat @ p["fc_w"].T + p["fc_b"]


if __name__ == "__main__":
    # WISDM-like input: batch=2, 1 channel, 115 time steps, 3 accelerometer axes.
    # 115 -> conv1 H=38 -> conv2 H=12; 128*12*3 = 4608 = nn.Linear in_features.
    batch, in_ch, height, width, num_classes = 2, 1, 115, 3, 6
    key = jax.random.PRNGKey(0)
    k_x, k_p = jax.random.split(key)
    x = jax.random.normal(k_x, (batch, in_ch, height, width), jnp.float32)
    params = init_params(k_p, in_ch, num_classes)
    kparams = pack_params(params)

    forward = make_forward(num_classes)
    flat, out = forward(x, kparams)
    jax.block_until_ready((flat, out))

    assert flat.shape == (batch, 4608) and out.shape == (batch, num_classes)
    # loose tolerance: both paths are fp32 but may use different MXU matmul precision defaults
    flat_ref, out_ref = _reference_forward(x, params)
    assert jnp.allclose(flat, flat_ref, rtol=1e-1, atol=1e-1), "flat mismatch vs reference"
    assert jnp.allclose(out, out_ref, rtol=1e-1, atol=1e-1), "fc output mismatch vs reference"
    print("KERNEL_OK")
</pallas_src>

<mosaic_0001>
module attributes {stable_mosaic.version = 11 : i64} {
  func.func @kernel(%arg0: memref<252x8xf32, #tpu.memory_space<vmem>>, %arg1: memref<8x64xf32, #tpu.memory_space<vmem>>, %arg2: memref<1x64xf32, #tpu.memory_space<vmem>>, %arg3: memref<1x64xf32, #tpu.memory_space<vmem>>, %arg4: memref<384x128xf32, #tpu.memory_space<vmem>>, %arg5: memref<1x128xf32, #tpu.memory_space<vmem>>, %arg6: memref<1x128xf32, #tpu.memory_space<vmem>>, %arg7: memref<4608x128xf32, #tpu.memory_space<vmem>>, %arg8: memref<1x128xf32, #tpu.memory_space<vmem>>, %arg9: memref<2x4608xf32, #tpu.memory_space<vmem>>, %arg10: memref<2x128xf32, #tpu.memory_space<vmem>>, %arg11: memref<252x64xf32, #tpu.memory_space<vmem>>, %arg12: memref<72x128xf32, #tpu.memory_space<vmem>>) attributes {dimension_semantics = [], scalar_prefetch = 0 : i64, scratch_operands = 2 : i64, tpu.core_type = #tpu.core_type<tc>} {
    %c0 = arith.constant 0 : index
    %c0_0 = arith.constant 0 : index
    %0 = vector.load %arg0[%c0, %c0_0] : memref<252x8xf32, #tpu.memory_space<vmem>>, vector<252x8xf32>
    %c0_1 = arith.constant 0 : index
    %c0_2 = arith.constant 0 : index
    %1 = vector.load %arg1[%c0_1, %c0_2] : memref<8x64xf32, #tpu.memory_space<vmem>>, vector<8x64xf32>
    %cst = arith.constant dense<0.000000e+00> : vector<252x64xf32>
    %2 = tpu.matmul %0, %1, %cst {dimension_numbers = #tpu.dot_dimension_numbers<[1], [0], [0], [1], [0, 0, 1, 1], [], []>} : vector<252x8xf32>, vector<8x64xf32>, vector<252x64xf32> -> vector<252x64xf32>
    %cst_3 = arith.constant dense<0.000000e+00> : vector<64xf32>
    %3 = vector.multi_reduction <add>, %2, %cst_3 [0] : vector<252x64xf32> to vector<64xf32>
    %4 = vector.shape_cast %3 : vector<64xf32> to vector<1x64xf32>
    %cst_4 = arith.constant 0.00438596494 : f32
    %5 = vector.broadcast %cst_4 : f32 to vector<1x64xf32>
    %6 = arith.mulf %4, %5 : vector<1x64xf32>
    %7 = arith.mulf %2, %2 : vector<252x64xf32>
    %cst_5 = arith.constant dense<0.000000e+00> : vector<64xf32>
    %8 = vector.multi_reduction <add>, %7, %cst_5 [0] : vector<252x64xf32> to vector<64xf32>
    %9 = vector.shape_cast %8 : vector<64xf32> to vector<1x64xf32>
    %cst_6 = arith.constant 0.00438596494 : f32
    %10 = vector.broadcast %cst_6 : f32 to vector<1x64xf32>
    %11 = arith.mulf %9, %10 : vector<1x64xf32>
    %12 = arith.mulf %6, %6 : vector<1x64xf32>
    %13 = arith.subf %11, %12 : vector<1x64xf32>
    %c0_7 = arith.constant 0 : index
    %c0_8 = arith.constant 0 : index
    %14 = vector.load %arg2[%c0_7, %c0_8] : memref<1x64xf32, #tpu.memory_space<vmem>>, vector<1x64xf32>
    %cst_9 = arith.constant 9.99999974E-6 : f32
    %15 = vector.broadcast %cst_9 : f32 to vector<1x64xf32>
    %16 = arith.addf %13, %15 : vector<1x64xf32>
    %17 = math.rsqrt %16 : vector<1x64xf32>
    %18 = arith.mulf %14, %17 : vector<1x64xf32>
    %c0_10 = arith.constant 0 : index
    %c0_11 = arith.constant 0 : index
    %19 = vector.load %arg3[%c0_10, %c0_11] : memref<1x64xf32, #tpu.memory_space<vmem>>, vector<1x64xf32>
    %20 = arith.mulf %6, %18 : vector<1x64xf32>
    %21 = arith.subf %19, %20 : vector<1x64xf32>
    %22 = vector.broadcast %18 : vector<1x64xf32> to vector<252x64xf32>
    %23 = arith.mulf %2, %22 : vector<252x64xf32>
    %24 = vector.broadcast %21 : vector<1x64xf32> to vector<252x64xf32>
    %25 = arith.addf %23, %24 : vector<252x64xf32>
    %cst_12 = arith.constant 0.000000e+00 : f32
    %26 = vector.broadcast %cst_12 : f32 to vector<252x64xf32>
    %27 = arith.maximumf %25, %26 : vector<252x64xf32>
    %28 = tpu.iota {dimensions = array<i32: 0>} : vector<252x1xi32>
    %c6_i32 = arith.constant 6 : i32
    %29 = vector.broadcast %c6_i32 : i32 to vector<252x1xi32>
    %30 = arith.cmpi sge, %28, %29 : vector<252x1xi32>
    %31 = arith.extui %30 : vector<252x1xi1> to vector<252x1xi32>
    %32 = arith.sitofp %31 : vector<252x1xi32> to vector<252x1xf32>
    %33 = vector.broadcast %32 : vector<252x1xf32> to vector<252x64xf32>
    %34 = arith.mulf %27, %33 : vector<252x64xf32>
    %c0_13 = arith.constant 0 : index
    %c0_14 = arith.constant 0 : index
    %35 = vector.load %arg11[%c0_13, %c0_14] : memref<252x64xf32, #tpu.memory_space<vmem>>, vector<252x64xf32>
    tpu.vector_store %arg11[%c0_13, %c0_14], %34 {strides = array<i32>} : memref<252x64xf32, #tpu.memory_space<vmem>>, vector<252x64xf32>,
    %c0_15 = arith.constant 0 : index
    %c0_16 = arith.constant 0 : index
    %36 = vector.load %arg11[%c0_15, %c0_16] : memref<252x64xf32, #tpu.memory_space<vmem>>, vector<72x64xf32>
    %c0_17 = arith.constant 0 : index
    %c0_18 = arith.constant 0 : index
    %37 = vector.load %arg4[%c0_17, %c0_18] : memref<384x128xf32, #tpu.memory_space<vmem>>, vector<64x128xf32>
    %cst_19 = arith.constant dense<0.000000e+00> : vector<72x128xf32>
    %38 = tpu.matmul %36, %37, %cst_19 {dimension_numbers = #tpu.dot_dimension_numbers<[1], [0], [0], [1], [0, 0, 1, 1], [], []>} : vector<72x64xf32>, vector<64x128xf32>, vector<72x128xf32> -> vector<72x128xf32>
    %c84 = arith.constant 84 : index
    %c0_20 = arith.constant 0 : index
    %39 = vector.load %arg11[%c84, %c0_20] : memref<252x64xf32, #tpu.memory_space<vmem>>, vector<72x64xf32>
    %c64 = arith.constant 64 : index
    %c0_21 = arith.constant 0 : index
    %40 = vector.load %arg4[%c64, %c0_21] : memref<384x128xf32, #tpu.memory_space<vmem>>, vector<64x128xf32>
    %cst_22 = arith.constant dense<0.000000e+00> : vector<72x128xf32>
    %41 = tpu.matmul %39, %40, %cst_22 {dimension_numbers = #tpu.dot_dimension_numbers<[1], [0], [0], [1], [0, 0, 1, 1], [], []>} : vector<72x64xf32>, vector<64x128xf32>, vector<72x128xf32> -> vector<72x128xf32>
    %42 = arith.addf %38, %41 : vector<72x128xf32>
    %c168 = arith.constant 168 : index
    %c0_23 = arith.constant 0 : index
    %43 = vector.load %arg11[%c168, %c0_23] : memref<252x64xf32, #tpu.memory_space<vmem>>, vector<72x64xf32>
    %c128 = arith.constant 128 : index
    %c0_24 = arith.constant 0 : index
    %44 = vector.load %arg4[%c128, %c0_24] : memref<384x128xf32, #tpu.memory_space<vmem>>, vector<64x128xf32>
    %cst_25 = arith.constant dense<0.000000e+00> : vector<72x128xf32>
    %45 = tpu.matmul %43, %44, %cst_25 {dimension_numbers = #tpu.dot_dimension_numbers<[1], [0], [0], [1], [0, 0, 1, 1], [], []>} : vector<72x64xf32>, vector<64x128xf32>, vector<72x128xf32> -> vector<72x128xf32>
    %46 = arith.addf %42, %45 : vector<72x128xf32>
    %c6 = arith.constant 6 : index
    %c0_26 = arith.constant 0 : index
    %47 = vector.load %arg11[%c6, %c0_26] : memref<252x64xf32, #tpu.memory_space<vmem>>, vector<72x64xf32>
    %c192 = arith.constant 192 : index
    %c0_27 = arith.constant 0 : index
    %48 = vector.load %arg4[%c192, %c0_27] : memref<384x128xf32, #tpu.memory_space<vmem>>, vector<64x128xf32>
    %cst_28 = arith.constant dense<0.000000e+00> : vector<72x128xf32>
    %49 = tpu.matmul %47, %48, %cst_28 {dimension_numbers = #tpu.dot_dimension_numbers<[1], [0], [0], [1], [0, 0, 1, 1], [], []>} : vector<72x64xf32>, vector<64x128xf32>, vector<72x128xf32> -> vector<72x128xf32>
    %50 = arith.addf %46, %49 : vector<72x128xf32>
    %c90 = arith.constant 90 : index
    %c0_29 = arith.constant 0 : index
    %51 = vector.load %arg11[%c90, %c0_29] : memref<252x64xf32, #tpu.memory_space<vmem>>, vector<72x64xf32>
    %c256 = arith.constant 256 : index
    %c0_30 = arith.constant 0 : index
    %52 = vector.load %arg4[%c256, %c0_30] : memref<384x128xf32, #tpu.memory_space<vmem>>, vector<64x128xf32>
    %cst_31 = arith.constant dense<0.000000e+00> : vector<72x128xf32>
    %53 = tpu.matmul %51, %52, %cst_31 {dimension_numbers = #tpu.dot_dimension_numbers<[1], [0], [0], [1], [0, 0, 1, 1], [], []>} : vector<72x64xf32>, vector<64x128xf32>, vector<72x128xf32> -> vector<72x128xf32>
    %54 = arith.addf %50, %53 : vector<72x128xf32>
    %c174 = arith.constant 174 : index
    %c0_32 = arith.constant 0 : index
    %55 = vector.load %arg11[%c174, %c0_32] : memref<252x64xf32, #tpu.memory_space<vmem>>, vector<72x64xf32>
    %c320 = arith.constant 320 : index
    %c0_33 = arith.constant 0 : index
    %56 = vector.load %arg4[%c320, %c0_33] : memref<384x128xf32, #tpu.memory_space<vmem>>, vector<64x128xf32>
    %cst_34 = arith.constant dense<0.000000e+00> : vector<72x128xf32>
    %57 = tpu.matmul %55, %56, %cst_34 {dimension_numbers = #tpu.dot_dimension_numbers<[1], [0], [0], [1], [0, 0, 1, 1], [], []>} : vector<72x64xf32>, vector<64x128xf32>, vector<72x128xf32> -> vector<72x128xf32>
    %58 = arith.addf %54, %57 : vector<72x128xf32>
    %cst_35 = arith.constant dense<0.000000e+00> : vector<128xf32>
    %59 = vector.multi_reduction <add>, %58, %cst_35 [0] : vector<72x128xf32> to vector<128xf32>
    %60 = vector.shape_cast %59 : vector<128xf32> to vector<1x128xf32>
    %cst_36 = arith.constant 0.013888889 : f32
    %61 = vector.broadcast %cst_36 : f32 to vector<1x128xf32>
    %62 = arith.mulf %60, %61 : vector<1x128xf32>
    %63 = arith.mulf %58, %58 : vector<72x128xf32>
    %cst_37 = arith.constant dense<0.000000e+00> : vector<128xf32>
    %64 = vector.multi_reduction <add>, %63, %cst_37 [0] : vector<72x128xf32> to vector<128xf32>
    %65 = vector.shape_cast %64 : vector<128xf32> to vector<1x128xf32>
    %cst_38 = arith.constant 0.013888889 : f32
    %66 = vector.broadcast %cst_38 : f32 to vector<1x128xf32>
    %67 = arith.mulf %65, %66 : vector<1x128xf32>
    %68 = arith.mulf %62, %62 : vector<1x128xf32>
    %69 = arith.subf %67, %68 : vector<1x128xf32>
    %c0_39 = arith.constant 0 : index
    %c0_40 = arith.constant 0 : index
    %70 = vector.load %arg5[%c0_39, %c0_40] : memref<1x128xf32, #tpu.memory_space<vmem>>, vector<1x128xf32>
    %cst_41 = arith.constant 9.99999974E-6 : f32
    %71 = vector.broadcast %cst_41 : f32 to vector<1x128xf32>
    %72 = arith.addf %69, %71 : vector<1x128xf32>
    %73 = math.rsqrt %72 : vector<1x128xf32>
    %74 = arith.mulf %70, %73 : vector<1x128xf32>
    %c0_42 = arith.constant 0 : index
    %c0_43 = arith.constant 0 : index
    %75 = vector.load %arg6[%c0_42, %c0_43] : memref<1x128xf32, #tpu.memory_space<vmem>>, vector<1x128xf32>
    %76 = arith.mulf %62, %74 : vector<1x128xf32>
    %77 = arith.subf %75, %76 : vector<1x128xf32>
    %78 = vector.broadcast %74 : vector<1x128xf32> to vector<72x128xf32>
    %79 = arith.mulf %58, %78 : vector<72x128xf32>
    %80 = vector.broadcast %77 : vector<1x128xf32> to vector<72x128xf32>
    %81 = arith.addf %79, %80 : vector<72x128xf32>
    %cst_44 = arith.constant 0.000000e+00 : f32
    %82 = vector.broadcast %cst_44 : f32 to vector<72x128xf32>
    %83 = arith.maximumf %81, %82 : vector<72x128xf32>
    %c0_45 = arith.constant 0 : index
    %c0_46 = arith.constant 0 : index
    %84 = vector.load %arg12[%c0_45, %c0_46] : memref<72x128xf32, #tpu.memory_space<vmem>>, vector<72x128xf32>
    tpu.vector_store %arg12[%c0_45, %c0_46], %83 {strides = array<i32>} : memref<72x128xf32, #tpu.memory_space<vmem>>, vector<72x128xf32>,
    %c0_47 = arith.constant 0 : index
    %c0_48 = arith.constant 0 : index
    %85 = vector.load %arg12[%c0_47, %c0_48] : memref<72x128xf32, #tpu.memory_space<vmem>>, vector<2x128xf32>
    %c2 = arith.constant 2 : index
    %c0_49 = arith.constant 0 : index
    %86 = vector.load %arg12[%c2, %c0_49] : memref<72x128xf32, #tpu.memory_space<vmem>>, vector<2x128xf32>
    %c4 = arith.constant 4 : index
    %c0_50 = arith.constant 0 : index
    %87 = vector.load %arg12[%c4, %c0_50] : memref<72x128xf32, #tpu.memory_space<vmem>>, vector<2x128xf32>
    %c6_51 = arith.constant 6 : index
    %c0_52 = arith.constant 0 : index
    %88 = vector.load %arg12[%c6_51, %c0_52] : memref<72x128xf32, #tpu.memory_space<vmem>>, vector<2x128xf32>
    %c8 = arith.constant 8 : index
    %c0_53 = arith.constant 0 : index
    %89 = vector.load %arg12[%c8, %c0_53] : memref<72x128xf32, #tpu.memory_space<vmem>>, vector<2x128xf32>
    %c10 = arith.constant 10 : index
    %c0_54 = arith.constant 0 : index
    %90 = vector.load %arg12[%c10, %c0_54] : memref<72x128xf32, #tpu.memory_space<vmem>>, vector<2x128xf32>
    %c12 = arith.constant 12 : index
    %c0_55 = arith.constant 0 : index
    %91 = vector.load %arg12[%c12, %c0_55] : memref<72x128xf32, #tpu.memory_space<vmem>>, vector<2x128xf32>
    %c14 = arith.constant 14 : index
    %c0_56 = arith.constant 0 : index
    %92 = vector.load %arg12[%c14, %c0_56] : memref<72x128xf32, #tpu.memory_space<vmem>>, vector<2x128xf32>
    %c16 = arith.constant 16 : index
    %c0_57 = arith.constant 0 : index
    %93 = vector.load %arg12[%c16, %c0_57] : memref<72x128xf32, #tpu.memory_space<vmem>>, vector<2x128xf32>
    %c18 = arith.constant 18 : index
    %c0_58 = arith.constant 0 : index
    %94 = vector.load %arg12[%c18, %c0_58] : memref<72x128xf32, #tpu.memory_space<vmem>>, vector<2x128xf32>
    %c20 = arith.constant 20 : index
    %c0_59 = arith.constant 0 : index
    %95 = vector.load %arg12[%c20, %c0_59] : memref<72x128xf32, #tpu.memory_space<vmem>>, vector<2x128xf32>
    %c22 = arith.constant 22 : index
    %c0_60 = arith.constant 0 : index
    %96 = vector.load %arg12[%c22, %c0_60] : memref<72x128xf32, #tpu.memory_space<vmem>>, vector<2x128xf32>
    %c24 = arith.constant 24 : index
    %c0_61 = arith.constant 0 : index
    %97 = vector.load %arg12[%c24, %c0_61] : memref<72x128xf32, #tpu.memory_space<vmem>>, vector<2x128xf32>
    %c26 = arith.constant 26 : index
    %c0_62 = arith.constant 0 : index
    %98 = vector.load %arg12[%c26, %c0_62] : memref<72x128xf32, #tpu.memory_space<vmem>>, vector<2x128xf32>
    %c28 = arith.constant 28 : index
    %c0_63 = arith.constant 0 : index
    %99 = vector.load %arg12[%c28, %c0_63] : memref<72x128xf32, #tpu.memory_space<vmem>>, vector<2x128xf32>
    %c30 = arith.constant 30 : index
    %c0_64 = arith.constant 0 : index
    %100 = vector.load %arg12[%c30, %c0_64] : memref<72x128xf32, #tpu.memory_space<vmem>>, vector<2x128xf32>
    %c32 = arith.constant 32 : index
    %c0_65 = arith.constant 0 : index
    %101 = vector.load %arg12[%c32, %c0_65] : memref<72x128xf32, #tpu.memory_space<vmem>>, vector<2x128xf32>
    %c34 = arith.constant 34 : index
    %c0_66 = arith.constant 0 : index
    %102 = vector.load %arg12[%c34, %c0_66] : memref<72x128xf32, #tpu.memory_space<vmem>>, vector<2x128xf32>
    %c36 = arith.constant 36 : index
    %c0_67 = arith.constant 0 : index
    %103 = vector.load %arg12[%c36, %c0_67] : memref<72x128xf32, #tpu.memory_space<vmem>>, vector<2x128xf32>
    %c38 = arith.constant 38 : index
    %c0_68 = arith.constant 0 : index
    %104 = vector.load %arg12[%c38, %c0_68] : memref<72x128xf32, #tpu.memory_space<vmem>>, vector<2x128xf32>
    %c40 = arith.constant 40 : index
    %c0_69 = arith.constant 0 : index
    %105 = vector.load %arg12[%c40, %c0_69] : memref<72x128xf32, #tpu.memory_space<vmem>>, vector<2x128xf32>
    %c42 = arith.constant 42 : index
    %c0_70 = arith.constant 0 : index
    %106 = vector.load %arg12[%c42, %c0_70] : memref<72x128xf32, #tpu.memory_space<vmem>>, vector<2x128xf32>
    %c44 = arith.constant 44 : index
    %c0_71 = arith.constant 0 : index
    %107 = vector.load %arg12[%c44, %c0_71] : memref<72x128xf32, #tpu.memory_space<vmem>>, vector<2x128xf32>
    %c46 = arith.constant 46 : index
    %c0_72 = arith.constant 0 : index
    %108 = vector.load %arg12[%c46, %c0_72] : memref<72x128xf32, #tpu.memory_space<vmem>>, vector<2x128xf32>
    %c48 = arith.constant 48 : index
    %c0_73 = arith.constant 0 : index
    %109 = vector.load %arg12[%c48, %c0_73] : memref<72x128xf32, #tpu.memory_space<vmem>>, vector<2x128xf32>
    %c50 = arith.constant 50 : index
    %c0_74 = arith.constant 0 : index
    %110 = vector.load %arg12[%c50, %c0_74] : memref<72x128xf32, #tpu.memory_space<vmem>>, vector<2x128xf32>
    %c52 = arith.constant 52 : index
    %c0_75 = arith.constant 0 : index
    %111 = vector.load %arg12[%c52, %c0_75] : memref<72x128xf32, #tpu.memory_space<vmem>>, vector<2x128xf32>
    %c54 = arith.constant 54 : index
    %c0_76 = arith.constant 0 : index
    %112 = vector.load %arg12[%c54, %c0_76] : memref<72x128xf32, #tpu.memory_space<vmem>>, vector<2x128xf32>
    %c56 = arith.constant 56 : index
    %c0_77 = arith.constant 0 : index
    %113 = vector.load %arg12[%c56, %c0_77] : memref<72x128xf32, #tpu.memory_space<vmem>>, vector<2x128xf32>
    %c58 = arith.constant 58 : index
    %c0_78 = arith.constant 0 : index
    %114 = vector.load %arg12[%c58, %c0_78] : memref<72x128xf32, #tpu.memory_space<vmem>>, vector<2x128xf32>
    %c60 = arith.constant 60 : index
    %c0_79 = arith.constant 0 : index
    %115 = vector.load %arg12[%c60, %c0_79] : memref<72x128xf32, #tpu.memory_space<vmem>>, vector<2x128xf32>
    %c62 = arith.constant 62 : index
    %c0_80 = arith.constant 0 : index
    %116 = vector.load %arg12[%c62, %c0_80] : memref<72x128xf32, #tpu.memory_space<vmem>>, vector<2x128xf32>
    %c64_81 = arith.constant 64 : index
    %c0_82 = arith.constant 0 : index
    %117 = vector.load %arg12[%c64_81, %c0_82] : memref<72x128xf32, #tpu.memory_space<vmem>>, vector<2x128xf32>
    %c66 = arith.constant 66 : index
    %c0_83 = arith.constant 0 : index
    %118 = vector.load %arg12[%c66, %c0_83] : memref<72x128xf32, #tpu.memory_space<vmem>>, vector<2x128xf32>
    %c68 = arith.constant 68 : index
    %c0_84 = arith.constant 0 : index
    %119 = vector.load %arg12[%c68, %c0_84] : memref<72x128xf32, #tpu.memory_space<vmem>>, vector<2x128xf32>
    %c70 = arith.constant 70 : index
    %c0_85 = arith.constant 0 : index
    %120 = vector.load %arg12[%c70, %c0_85] : memref<72x128xf32, #tpu.memory_space<vmem>>, vector<2x128xf32>
    %121 = tpu.concatenate %85, %86, %87, %88, %89, %90, %91, %92, %93, %94, %95, %96, %97, %98, %99, %100 in 1 : vector<2x128xf32>, vector<2x128xf32>, vector<2x128xf32>, vector<2x128xf32>, vector<2x128xf32>, vector<2x128xf32>, vector<2x128xf32>, vector<2x128xf32>, vector<2x128xf32>, vector<2x128xf32>, vector<2x128xf32>, vector<2x128xf32>, vector<2x128xf32>, vector<2x128xf32>, vector<2x128xf32>, vector<2x128xf32> -> vector<2x2048xf32>
    %122 = tpu.concatenate %101, %102, %103, %104, %105, %106, %107, %108, %109, %110, %111, %112, %113, %114, %115, %116 in 1 : vector<2x128xf32>, vector<2x128xf32>, vector<2x128xf32>, vector<2x128xf32>, vector<2x128xf32>, vector<2x128xf32>, vector<2x128xf32>, vector<2x128xf32>, vector<2x128xf32>, vector<2x128xf32>, vector<2x128xf32>, vector<2x128xf32>, vector<2x128xf32>, vector<2x128xf32>, vector<2x128xf32>, vector<2x128xf32> -> vector<2x2048xf32>
    %123 = tpu.concatenate %117, %118, %119, %120 in 1 : vector<2x128xf32>, vector<2x128xf32>, vector<2x128xf32>, vector<2x128xf32> -> vector<2x512xf32>
    %124 = tpu.concatenate %121, %122, %123 in 1 : vector<2x2048xf32>, vector<2x2048xf32>, vector<2x512xf32> -> vector<2x4608xf32>
    %c0_86 = arith.constant 0 : index
    %c0_87 = arith.constant 0 : index
    %125 = vector.load %arg9[%c0_86, %c0_87] : memref<2x4608xf32, #tpu.memory_space<vmem>>, vector<2x4608xf32>
    tpu.vector_store %arg9[%c0_86, %c0_87], %124 {strides = array<i32>} : memref<2x4608xf32, #tpu.memory_space<vmem>>, vector<2x4608xf32>,
    %c0_88 = arith.constant 0 : index
    %c0_89 = arith.constant 0 : index
    %126 = vector.load %arg7[%c0_88, %c0_89] : memref<4608x128xf32, #tpu.memory_space<vmem>>, vector<4608x128xf32>
    %cst_90 = arith.constant dense<0.000000e+00> : vector<2x128xf32>
    %127 = tpu.matmul %124, %126, %cst_90 {dimension_numbers = #tpu.dot_dimension_numbers<[1], [0], [0], [1], [0, 0, 1, 1], [], []>} : vector<2x4608xf32>, vector<4608x128xf32>, vector<2x128xf32> -> vector<2x128xf32>
    %c0_91 = arith.constant 0 : index
    %c0_92 = arith.constant 0 : index
    %128 = vector.load %arg8[%c0_91, %c0_92] : memref<1x128xf32, #tpu.memory_space<vmem>>, vector<1x128xf32>
    %129 = vector.broadcast %128 : vector<1x128xf32> to vector<2x128xf32>
    %130 = arith.addf %127, %129 : vector<2x128xf32>
    %c0_93 = arith.constant 0 : index
    %c0_94 = arith.constant 0 : index
    %131 = vector.load %arg10[%c0_93, %c0_94] : memref<2x128xf32, #tpu.memory_space<vmem>>, vector<2x128xf32>
    tpu.vector_store %arg10[%c0_93, %c0_94], %130 {strides = array<i32>} : memref<2x128xf32, #tpu.memory_space<vmem>>, vector<2x128xf32>,
    return
  }
}

</mosaic_0001>

<llo_original>
// kernel: _forward.1
$region0: #{_forward.1}
  #allocation0 [shape = 'u32[]', space=smem, size = 0x4, offset = 0x4, fixed_abs, tag = 'smem constant byte address 0x4 - core index']
  #allocation1 [shape = 'u32[72,128]{1,0:T(1,128)}', space=vmem, size = 0x9000, scoped, tag = 'internal scratch']
  #allocation2 [shape = 'f32[252,64]{1,0:T(8,128)}', space=vmem, size = 0x20000, scoped, tag = 'scratch operand']
  #allocation3 [shape = 'f32[72,128]{1,0:T(8,128)}', space=vmem, size = 0x9000, scoped, tag = 'scratch operand']
  %s0 = inlined_call_operand.vmem [shape: f32[252,8], index: 0, kind: input, shape index: {}]
  %s1 = inlined_call_operand.vmem [shape: f32[8,64], index: 1, kind: input, shape index: {}]
  %s2 = inlined_call_operand.vmem [shape: f32[1,64], index: 2, kind: input, shape index: {}]
  %s3 = inlined_call_operand.vmem [shape: f32[1,64], index: 3, kind: input, shape index: {}]
  %s4 = inlined_call_operand.hbm [shape: f32[384,128], index: 4, kind: input, shape index: {}]
  %s5 = inlined_call_operand.vmem [shape: f32[1,128], index: 5, kind: input, shape index: {}]
  %s6 = inlined_call_operand.vmem [shape: f32[1,128], index: 6, kind: input, shape index: {}]
  %s7 = inlined_call_operand.vmem [shape: f32[4608,128], index: 7, kind: input, shape index: {}]
  %s8 = inlined_call_operand.vmem [shape: f32[1,128], index: 8, kind: input, shape index: {}]
  %s9 = inlined_call_operand.vmem [shape: f32[2,4608], index: 9, kind: output, shape index: {0}]
  %s10 = inlined_call_operand.hbm [shape: f32[2,128], index: 10, kind: output, shape index: {1}]
  %11 = xla_tuple %s9, %s10
  %s12 = sld [smem:[#allocation0]]
  $region58: #{_forward.1} parent=0
    _
  %s14 = ssub.s32 1, %s12
  %s15 = scalar_select 0, %s14, %s12
  $region1: #{_forward.1} parent=0
    #allocation4 [shape = 'u8[196608]{0}', space=vmem, size = 0x30000, scoped, tag = 'input window, operand 4, single buffered']
    #allocation5 [shape = 's32[1]{0}', space=sflag, size = 0x4, scoped, tag = 'scoped memory for _forward.1']
    #allocation6 [shape = 's32[1]{0}', space=sflag, size = 0x4, scoped, tag = 'scoped memory for _forward.1']
    #allocation7 [shape = 'u8[1024]{0}', space=vmem, size = 0x400, scoped, tag = 'output window, operand 1, single buffered']
    %16 = vsyncpa [#allocation5], 0
    %17 = vsyncpa [#allocation6], 0
    // Predicated region
    $region2: #{_forward.1} parent=1 // pred_check
      _
    $region3: #{_forward.1} parent=1 // pred_check_branch
      %19 = sbr.rel (0) target = $region5
    $region4: #{_forward.1} parent=1 // pred_region
      _
    $region5: #{_forward.1} parent=1 // pred_fallthru
      _
    // Predicated region
    $region6: #{_forward.1} parent=1 // pred_check
      _
    $region7: #{_forward.1} parent=1 // pred_check_branch
      %21 = sbr.rel (0) target = $region9
    $region8: #{_forward.1} parent=1 // pred_region
      _
    $region9: #{_forward.1} parent=1 // pred_fallthru
      _
    // Predicated region
    $region10: #{_forward.1} parent=1 // pred_check
      _
    $region11: #{_forward.1} parent=1 // pred_check_branch
      %23 = sbr.rel (0) target = $region13
    $region12: #{_forward.1} parent=1 // pred_region
      _
    $region13: #{_forward.1} parent=1 // pred_fallthru
      _
    // Predicated region
    $region14: #{_forward.1} parent=1 // pred_check
      _
    $region15: #{_forward.1} parent=1 // pred_check_branch
      %25 = sbr.rel (0) target = $region17
    $region16: #{_forward.1} parent=1 // pred_region
      _
    $region17: #{_forward.1} parent=1 // pred_fallthru
      _
    // Predicated region
    $region18: #{_forward.1} parent=1 // pred_check
      _
    $region19: #{_forward.1} parent=1 // pred_check_branch
      %27 = sbr.rel (0) target = $region21
    $region20: #{_forward.1} parent=1 // pred_region
      %29 = vsyncadd [#allocation5], 0
      %s30 = sshll.u32 %s4, 4
      %s31 = int_to_ptr.hbm [resolvable:$true] %s30
      %s32 = sshll.u32 [#allocation4], 4
      %s33 = int_to_ptr.vmem [resolvable:$true] %s32
      %38 = dma.hbm_to_vmem [thread:$0]  %s31, 6144, %s33, [#allocation5], 128, 128, 8
    $region21: #{_forward.1} parent=1 // pred_fallthru
      _
    // Predicated region
    $region22: #{_forward.1} parent=1 // pred_check
      _
    $region23: #{_forward.1} parent=1 // pred_check_branch
      %40 = sbr.rel (0) target = $region25
    $region24: #{_forward.1} parent=1 // pred_region
      _
    $region25: #{_forward.1} parent=1 // pred_fallthru
      _
    // Predicated region
    $region26: #{_forward.1} parent=1 // pred_check
      _
    $region27: #{_forward.1} parent=1 // pred_check_branch
      %42 = sbr.rel (0) target = $region29
    $region28: #{_forward.1} parent=1 // pred_region
      _
    $region29: #{_forward.1} parent=1 // pred_fallthru
      _
    // Predicated region
    $region30: #{_forward.1} parent=1 // pred_check
      _
    $region31: #{_forward.1} parent=1 // pred_check_branch
      %44 = sbr.rel (0) target = $region33
    $region32: #{_forward.1} parent=1 // pred_region
      _
    $region33: #{_forward.1} parent=1 // pred_fallthru
      _
    // Predicated region
    $region34: #{_forward.1} parent=1 // pred_check
      _
    $region35: #{_forward.1} parent=1 // pred_check_branch
      %46 = sbr.rel (0) target = $region37
    $region36: #{_forward.1} parent=1 // pred_region
      _
    $region37: #{_forward.1} parent=1 // pred_fallthru
      _
    // Predicated region
    $region38: #{_forward.1} parent=1 // pred_check
      _
    $region39: #{_forward.1} parent=1 // pred_check_branch
      %48 = sbr.rel (0) target = $region41
    $region40: #{_forward.1} parent=1 // pred_region
      %50 = dma.done [#allocation5], 6144
    $region41: #{_forward.1} parent=1 // pred_fallthru
      _
    %v51 = vld [vmem:[%s0] sm:$0xff]
    %v52 = vld [vmem:[%s0 + $0x8] sm:$0xff]
    %v53 = vld [vmem:[%s0 + $0x10] sm:$0xff]
    %v54 = vld [vmem:[%s0 + $0x18] sm:$0xff]
    %v55 = vld [vmem:[%s0 + $0x20] sm:$0xff]
    %v56 = vld [vmem:[%s0 + $0x28] sm:$0xff]
    %v57 = vld [vmem:[%s0 + $0x30] sm:$0xff]
    %v58 = vld [vmem:[%s0 + $0x38] sm:$0xff]
    %v59 = vld [vmem:[%s0 + $0x40] sm:$0xff]
    %v60 = vld [vmem:[%s0 + $0x48] sm:$0xff]
    %v61 = vld [vmem:[%s0 + $0x50] sm:$0xff]
    %v62 = vld [vmem:[%s0 + $0x58] sm:$0xff]
    %v63 = vld [vmem:[%s0 + $0x60] sm:$0xff]
    %v64 = vld [vmem:[%s0 + $0x68] sm:$0xff]
    %v65 = vld [vmem:[%s0 + $0x70] sm:$0xff]
    %v66 = vld [vmem:[%s0 + $0x78] sm:$0xff]
    %v67 = vld [vmem:[%s0 + $0x80] sm:$0xff]
    %v68 = vld [vmem:[%s0 + $0x88] sm:$0xff]
    %v69 = vld [vmem:[%s0 + $0x90] sm:$0xff]
    %v70 = vld [vmem:[%s0 + $0x98] sm:$0xff]
    %v71 = vld [vmem:[%s0 + $0xa0] sm:$0xff]
    %v72 = vld [vmem:[%s0 + $0xa8] sm:$0xff]
    %v73 = vld [vmem:[%s0 + $0xb0] sm:$0xff]
    %v74 = vld [vmem:[%s0 + $0xb8] sm:$0xff]
    %v75 = vld [vmem:[%s0 + $0xc0] sm:$0xff]
    %v76 = vld [vmem:[%s0 + $0xc8] sm:$0xff]
    %v77 = vld [vmem:[%s0 + $0xd0] sm:$0xff]
    %v78 = vld [vmem:[%s0 + $0xd8] sm:$0xff]
    %v79 = vld [vmem:[%s0 + $0xe0] sm:$0xff]
    %v80 = vld [vmem:[%s0 + $0xe8] sm:$0xff]
    %v81 = vld [vmem:[%s0 + $0xf0] sm:$0xff]
    %v82 = vld [vmem:[%s0 + $0xf8] sm:$0xf]
    %v83 = vld [vmem:[%s1] sm:$0xff]
    %vm84 = vcmask 64512
    %v86 = vsel %vm84, %v51, 0
    %v89 = vsel %vm84, %v52, 0
    %v92 = vsel %vm84, %v53, 0
    %v95 = vsel %vm84, %v54, 0
    %v98 = vsel %vm84, %v55, 0
    %v101 = vsel %vm84, %v56, 0
    %v104 = vsel %vm84, %v57, 0
    %v107 = vsel %vm84, %v58, 0
    %v110 = vsel %vm84, %v59, 0
    %v113 = vsel %vm84, %v60, 0
    %v116 = vsel %vm84, %v61, 0
    %v119 = vsel %vm84, %v62, 0
    %v122 = vsel %vm84, %v63, 0
    %v125 = vsel %vm84, %v64, 0
    %v128 = vsel %vm84, %v65, 0
    %v131 = vsel %vm84, %v66, 0
    %v134 = vsel %vm84, %v67, 0
    %v137 = vsel %vm84, %v68, 0
    %v140 = vsel %vm84, %v69, 0
    %v143 = vsel %vm84, %v70, 0
    %v146 = vsel %vm84, %v71, 0
    %v149 = vsel %vm84, %v72, 0
    %v152 = vsel %vm84, %v73, 0
    %v155 = vsel %vm84, %v74, 0
    %v158 = vsel %vm84, %v75, 0
    %v161 = vsel %vm84, %v76, 0
    %v164 = vsel %vm84, %v77, 0
    %v167 = vsel %vm84, %v78, 0
    %v170 = vsel %vm84, %v79, 0
    %v173 = vsel %vm84, %v80, 0
    %v176 = vsel %vm84, %v81, 0
    %v179 = vsel %vm84, %v82, 0
    %181 = vmatpush.msra.mxu0 0.0
    %182 = vmatpush.msra.mxu0 0.0
    %183 = vmatpush.msra.mxu0 0.0
    %184 = vmatpush.msra.mxu0 0.0
    %185 = vmatpush.msra.mxu0 0.0
    %186 = vmatpush.msra.mxu0 0.0
    %187 = vmatpush.msra.mxu0 0.0
    %188 = vmatpush.msra.mxu0 0.0
    %189 = vmatpush.msra.mxu0 0.0
    %190 = vmatpush.msra.mxu0 0.0
    %191 = vmatpush.msra.mxu0 0.0
    %192 = vmatpush.msra.mxu0 0.0
    %193 = vmatpush.msra.mxu0 0.0
    %194 = vmatpush.msra.mxu0 0.0
    %195 = vmatpush.msra.mxu0 0.0
    %196 = vmatpush.msra.mxu0 %v83
    %197 = vmatmul.f32.gmra.mxu0 %v86
    %v198 = vpop.f32.mrf.mxu0
    %v199 = vadd.f32 0.0, %v198
    %200 = vmatmul.f32.gmra.mxu0 %v89
    %v201 = vpop.f32.mrf.mxu0
    %v202 = vadd.f32 0.0, %v201
    %203 = vmatmul.f32.gmra.mxu0 %v92
    %v204 = vpop.f32.mrf.mxu0
    %v205 = vadd.f32 0.0, %v204
    %206 = vmatmul.f32.gmra.mxu0 %v95
    %v207 = vpop.f32.mrf.mxu0
    %v208 = vadd.f32 0.0, %v207
    %209 = vmatmul.f32.gmra.mxu0 %v98
    %v210 = vpop.f32.mrf.mxu0
    %v211 = vadd.f32 0.0, %v210
    %212 = vmatmul.f32.gmra.mxu0 %v101
    %v213 = vpop.f32.mrf.mxu0
    %v214 = vadd.f32 0.0, %v213
    %215 = vmatmul.f32.gmra.mxu0 %v104
    %v216 = vpop.f32.mrf.mxu0
    %v217 = vadd.f32 0.0, %v216
    %218 = vmatmul.f32.gmra.mxu0 %v107
    %v219 = vpop.f32.mrf.mxu0
    %v220 = vadd.f32 0.0, %v219
    %221 = vmatmul.f32.gmra.mxu0 %v110
    %v222 = vpop.f32.mrf.mxu0
    %v223 = vadd.f32 0.0, %v222
    %224 = vmatmul.f32.gmra.mxu0 %v113
    %v225 = vpop.f32.mrf.mxu0
    %v226 = vadd.f32 0.0, %v225
    %227 = vmatmul.f32.gmra.mxu0 %v116
    %v228 = vpop.f32.mrf.mxu0
    %v229 = vadd.f32 0.0, %v228
    %230 = vmatmul.f32.gmra.mxu0 %v119
    %v231 = vpop.f32.mrf.mxu0
    %v232 = vadd.f32 0.0, %v231
    %233 = vmatmul.f32.gmra.mxu0 %v122
    %v234 = vpop.f32.mrf.mxu0
    %v235 = vadd.f32 0.0, %v234
    %236 = vmatmul.f32.gmra.mxu0 %v125
    %v237 = vpop.f32.mrf.mxu0
    %v238 = vadd.f32 0.0, %v237
    %239 = vmatmul.f32.gmra.mxu0 %v128
    %v240 = vpop.f32.mrf.mxu0
    %v241 = vadd.f32 0.0, %v240
    %242 = vmatmul.f32.gmra.mxu0 %v131
    %v243 = vpop.f32.mrf.mxu0
    %v244 = vadd.f32 0.0, %v243
    %245 = vmatmul.f32.gmra.mxu0 %v134
    %v246 = vpop.f32.mrf.mxu0
    %v247 = vadd.f32 0.0, %v246
    %248 = vmatmul.f32.gmra.mxu0 %v137
    %v249 = vpop.f32.mrf.mxu0
    %v250 = vadd.f32 0.0, %v249
    %251 = vmatmul.f32.gmra.mxu0 %v140
    %v252 = vpop.f32.mrf.mxu0
    %v253 = vadd.f32 0.0, %v252
    %254 = vmatmul.f32.gmra.mxu0 %v143
    %v255 = vpop.f32.mrf.mxu0
    %v256 = vadd.f32 0.0, %v255
    %257 = vmatmul.f32.gmra.mxu0 %v146
    %v258 = vpop.f32.mrf.mxu0
    %v259 = vadd.f32 0.0, %v258
    %260 = vmatmul.f32.gmra.mxu0 %v149
    %v261 = vpop.f32.mrf.mxu0
    %v262 = vadd.f32 0.0, %v261
    %263 = vmatmul.f32.gmra.mxu0 %v152
    %v264 = vpop.f32.mrf.mxu0
    %v265 = vadd.f32 0.0, %v264
    %266 = vmatmul.f32.gmra.mxu0 %v155
    %v267 = vpop.f32.mrf.mxu0
    %v268 = vadd.f32 0.0, %v267
    %269 = vmatmul.f32.gmra.mxu0 %v158
    %v270 = vpop.f32.mrf.mxu0
    %v271 = vadd.f32 0.0, %v270
    %272 = vmatmul.f32.gmra.mxu0 %v161
    %v273 = vpop.f32.mrf.mxu0
    %v274 = vadd.f32 0.0, %v273
    %275 = vmatmul.f32.gmra.mxu0 %v164
    %v276 = vpop.f32.mrf.mxu0
    %v277 = vadd.f32 0.0, %v276
    %278 = vmatmul.f32.gmra.mxu0 %v167
    %v279 = vpop.f32.mrf.mxu0
    %v280 = vadd.f32 0.0, %v279
    %281 = vmatmul.f32.gmra.mxu0 %v170
    %v282 = vpop.f32.mrf.mxu0
    %v283 = vadd.f32 0.0, %v282
    %284 = vmatmul.f32.gmra.mxu0 %v173
    %v285 = vpop.f32.mrf.mxu0
    %v286 = vadd.f32 0.0, %v285
    %287 = vmatmul.f32.gmra.mxu0 %v176
    %v288 = vpop.f32.mrf.mxu0
    %v289 = vadd.f32 0.0, %v288
    %290 = vmatmul.f32.gmra.mxu0 %v179
    %v291 = vpop.f32.mrf.mxu0
    %v292 = vadd.f32 0.0, %v291
    %293 = vdwg.mxu0
    %vm294 = vcmask 523264
    %v295 = vsel %vm294, %v199, 0.0
    %v296 = vsel %vm294, %v202, 0.0
    %v297 = vadd.f32 %v295, %v296
    %v298 = vsel %vm294, %v205, 0.0
    %v299 = vadd.f32 %v297, %v298
    %v300 = vsel %vm294, %v208, 0.0
    %v301 = vadd.f32 %v299, %v300
    %v302 = vsel %vm294, %v211, 0.0
    %v303 = vadd.f32 %v301, %v302
    %v304 = vsel %vm294, %v214, 0.0
    %v305 = vadd.f32 %v303, %v304
    %v306 = vsel %vm294, %v217, 0.0
    %v307 = vadd.f32 %v305, %v306
    %v308 = vsel %vm294, %v220, 0.0
    %v309 = vadd.f32 %v307, %v308
    %v310 = vsel %vm294, %v223, 0.0
    %v311 = vadd.f32 %v309, %v310
    %v312 = vsel %vm294, %v226, 0.0
    %v313 = vadd.f32 %v311, %v312
    %v314 = vsel %vm294, %v229, 0.0
    %v315 = vadd.f32 %v313, %v314
    %v316 = vsel %vm294, %v232, 0.0
    %v317 = vadd.f32 %v315, %v316
    %v318 = vsel %vm294, %v235, 0.0
    %v319 = vadd.f32 %v317, %v318
    %v320 = vsel %vm294, %v238, 0.0
    %v321 = vadd.f32 %v319, %v320
    %v322 = vsel %vm294, %v241, 0.0
    %v323 = vadd.f32 %v321, %v322
    %v324 = vsel %vm294, %v244, 0.0
    %v325 = vadd.f32 %v323, %v324
    %v326 = vsel %vm294, %v247, 0.0
    %v327 = vadd.f32 %v325, %v326
    %v328 = vsel %vm294, %v250, 0.0
    %v329 = vadd.f32 %v327, %v328
    %v330 = vsel %vm294, %v253, 0.0
    %v331 = vadd.f32 %v329, %v330
    %v332 = vsel %vm294, %v256, 0.0
    %v333 = vadd.f32 %v331, %v332
    %v334 = vsel %vm294, %v259, 0.0
    %v335 = vadd.f32 %v333, %v334
    %v336 = vsel %vm294, %v262, 0.0
    %v337 = vadd.f32 %v335, %v336
    %v338 = vsel %vm294, %v265, 0.0
    %v339 = vadd.f32 %v337, %v338
    %v340 = vsel %vm294, %v268, 0.0
    %v341 = vadd.f32 %v339, %v340
    %v342 = vsel %vm294, %v271, 0.0
    %v343 = vadd.f32 %v341, %v342
    %v344 = vsel %vm294, %v274, 0.0
    %v345 = vadd.f32 %v343, %v344
    %v346 = vsel %vm294, %v277, 0.0
    %v347 = vadd.f32 %v345, %v346
    %v348 = vsel %vm294, %v280, 0.0
    %v349 = vadd.f32 %v347, %v348
    %v350 = vsel %vm294, %v283, 0.0
    %v351 = vadd.f32 %v349, %v350
    %v352 = vsel %vm294, %v286, 0.0
    %v353 = vadd.f32 %v351, %v352
    %v354 = vsel %vm294, %v289, 0.0
    %v355 = vadd.f32 %v353, %v354
    %vm356 = vcmask 519168
    %v357 = vsel %vm356, %v292, 0.0
    %v358 = vadd.f32 %v355, %v357
    %v359 = vrot.slane %v358, 4
    %v360 = vadd.f32 %v358, %v359
    %v361 = vrot.slane %v360, 2
    %v362 = vadd.f32 %v360, %v361
    %v363 = vrot.slane %v362, 1
    %v364 = vadd.f32 %v362, %v363
    %v365 = vmul.f32 %v364, 0.004385965
    %v366 = vmul.f32 %v199, %v199
    %v367 = vmul.f32 %v202, %v202
    %v368 = vmul.f32 %v205, %v205
    %v369 = vmul.f32 %v208, %v208
    %v370 = vmul.f32 %v211, %v211
    %v371 = vmul.f32 %v214, %v214
    %v372 = vmul.f32 %v217, %v217
    %v373 = vmul.f32 %v220, %v220
    %v374 = vmul.f32 %v223, %v223
    %v375 = vmul.f32 %v226, %v226
    %v376 = vmul.f32 %v229, %v229
    %v377 = vmul.f32 %v232, %v232
    %v378 = vmul.f32 %v235, %v235
    %v379 = vmul.f32 %v238, %v238
    %v380 = vmul.f32 %v241, %v241
    %v381 = vmul.f32 %v244, %v244
    %v382 = vmul.f32 %v247, %v247
    %v383 = vmul.f32 %v250, %v250
    %v384 = vmul.f32 %v253, %v253
    %v385 = vmul.f32 %v256, %v256
    %v386 = vmul.f32 %v259, %v259
    %v387 = vmul.f32 %v262, %v262
    %v388 = vmul.f32 %v265, %v265
    %v389 = vmul.f32 %v268, %v268
    %v390 = vmul.f32 %v271, %v271
    %v391 = vmul.f32 %v274, %v274
    %v392 = vmul.f32 %v277, %v277
    %v393 = vmul.f32 %v280, %v280
    %v394 = vmul.f32 %v283, %v283
    %v395 = vmul.f32 %v286, %v286
    %v396 = vmul.f32 %v289, %v289
    %v397 = vmul.f32 %v292, %v292
    %v398 = vsel %vm294, %v366, 0.0
    %v399 = vsel %vm294, %v367, 0.0
    %v400 = vadd.f32 %v398, %v399
    %v401 = vsel %vm294, %v368, 0.0
    %v402 = vadd.f32 %v400, %v401
    %v403 = vsel %vm294, %v369, 0.0
    %v404 = vadd.f32 %v402, %v403
    %v405 = vsel %vm294, %v370, 0.0
    %v406 = vadd.f32 %v404, %v405
    %v407 = vsel %vm294, %v371, 0.0
    %v408 = vadd.f32 %v406, %v407
    %v409 = vsel %vm294, %v372, 0.0
    %v410 = vadd.f32 %v408, %v409
    %v411 = vsel %vm294, %v373, 0.0
    %v412 = vadd.f32 %v410, %v411
    %v413 = vsel %vm294, %v374, 0.0
    %v414 = vadd.f32 %v412, %v413
    %v415 = vsel %vm294, %v375, 0.0
    %v416 = vadd.f32 %v414, %v415
    %v417 = vsel %vm294, %v376, 0.0
    %v418 = vadd.f32 %v416, %v417
    %v419 = vsel %vm294, %v377, 0.0
    %v420 = vadd.f32 %v418, %v419
    %v421 = vsel %vm294, %v378, 0.0
    %v422 = vadd.f32 %v420, %v421
    %v423 = vsel %vm294, %v379, 0.0
    %v424 = vadd.f32 %v422, %v423
    %v425 = vsel %vm294, %v380, 0.0
    %v426 = vadd.f32 %v424, %v425
    %v427 = vsel %vm294, %v381, 0.0
    %v428 = vadd.f32 %v426, %v427
    %v429 = vsel %vm294, %v382, 0.0
    %v430 = vadd.f32 %v428, %v429
    %v431 = vsel %vm294, %v383, 0.0
    %v432 = vadd.f32 %v430, %v431
    %v433 = vsel %vm294, %v384, 0.0
    %v434 = vadd.f32 %v432, %v433
    %v435 = vsel %vm294, %v385, 0.0
    %v436 = vadd.f32 %v434, %v435
    %v437 = vsel %vm294, %v386, 0.0
    %v438 = vadd.f32 %v436, %v437
    %v439 = vsel %vm294, %v387, 0.0
    %v440 = vadd.f32 %v438, %v439
    %v441 = vsel %vm294, %v388, 0.0
    %v442 = vadd.f32 %v440, %v441
    %v443 = vsel %vm294, %v389, 0.0
    %v444 = vadd.f32 %v442, %v443
    %v445 = vsel %vm294, %v390, 0.0
    %v446 = vadd.f32 %v444, %v445
    %v447 = vsel %vm294, %v391, 0.0
    %v448 = vadd.f32 %v446, %v447
    %v449 = vsel %vm294, %v392, 0.0
    %v450 = vadd.f32 %v448, %v449
    %v451 = vsel %vm294, %v393, 0.0
    %v452 = vadd.f32 %v450, %v451
    %v453 = vsel %vm294, %v394, 0.0
    %v454 = vadd.f32 %v452, %v453
    %v455 = vsel %vm294, %v395, 0.0
    %v456 = vadd.f32 %v454, %v455
    %v457 = vsel %vm294, %v396, 0.0
    %v458 = vadd.f32 %v456, %v457
    %v459 = vsel %vm356, %v397, 0.0
    %v460 = vadd.f32 %v458, %v459
    %v461 = vrot.slane %v460, 4
    %v462 = vadd.f32 %v460, %v461
    %v463 = vrot.slane %v462, 2
    %v464 = vadd.f32 %v462, %v463
    %v465 = vrot.slane %v464, 1
    %v466 = vadd.f32 %v464, %v465
    %v467 = vmul.f32 %v466, 0.004385965
    %v468 = vmul.f32 %v365, %v365
    %v469 = vsub.f32 %v467, %v468
    %v470 = vld [vmem:[%s2] sm:$0x1]
    %v471 = vadd.f32 %v469, 1e-05
    %v472 = vrsqrt.pop %v471
    %v473 = vmul.f32 %v472, %v471
    %v474 = vmul.f32 %v473, %v472
    %v475 = vmul.f32 0.5, %v474
    %v476 = vsub.f32 1.5, %v475
    %v477 = vmul.f32 %v472, %v476
    %vm478 = vweird.f32 %v471
    %vm479 = vweird.f32 %v472
    %vm480 = vmor %vm478, %vm479
    %v481 = vsel %vm480, %v472, %v477
    %v482 = vmul.f32 %v470, %v481
    %v483 = vld [vmem:[%s3] sm:$0x1]
    %v484 = vmul.f32 %v365, %v482
    %v485 = vsub.f32 %v483, %v484
    %v487 = vperm.slane %v482, 0
    %v489 = vmul.f32 %v199, %v487
    %v490 = vmul.f32 %v202, %v487
    %v491 = vmul.f32 %v205, %v487
    %v492 = vmul.f32 %v208, %v487
    %v493 = vmul.f32 %v211, %v487
    %v494 = vmul.f32 %v214, %v487
    %v495 = vmul.f32 %v217, %v487
    %v496 = vmul.f32 %v220, %v487
    %v497 = vmul.f32 %v223, %v487
    %v498 = vmul.f32 %v226, %v487
    %v499 = vmul.f32 %v229, %v487
    %v500 = vmul.f32 %v232, %v487
    %v501 = vmul.f32 %v235, %v487
    %v502 = vmul.f32 %v238, %v487
    %v503 = vmul.f32 %v241, %v487
    %v504 = vmul.f32 %v244, %v487
    %v505 = vmul.f32 %v247, %v487
    %v506 = vmul.f32 %v250, %v487
    %v507 = vmul.f32 %v253, %v487
    %v508 = vmul.f32 %v256, %v487
    %v509 = vmul.f32 %v259, %v487
    %v510 = vmul.f32 %v262, %v487
    %v511 = vmul.f32 %v265, %v487
    %v512 = vmul.f32 %v268, %v487
    %v513 = vmul.f32 %v271, %v487
    %v514 = vmul.f32 %v274, %v487
    %v515 = vmul.f32 %v277, %v487
    %v516 = vmul.f32 %v280, %v487
    %v517 = vmul.f32 %v283, %v487
    %v518 = vmul.f32 %v286, %v487
    %v519 = vmul.f32 %v289, %v487
    %v520 = vmul.f32 %v292, %v487
    %v522 = vperm.slane %v485, 0
    %v524 = vadd.f32 %v489, %v522
    %v525 = vadd.f32 %v490, %v522
    %v526 = vadd.f32 %v491, %v522
    %v527 = vadd.f32 %v492, %v522
    %v528 = vadd.f32 %v493, %v522
    %v529 = vadd.f32 %v494, %v522
    %v530 = vadd.f32 %v495, %v522
    %v531 = vadd.f32 %v496, %v522
    %v532 = vadd.f32 %v497, %v522
    %v533 = vadd.f32 %v498, %v522
    %v534 = vadd.f32 %v499, %v522
    %v535 = vadd.f32 %v500, %v522
    %v536 = vadd.f32 %v501, %v522
    %v537 = vadd.f32 %v502, %v522
    %v538 = vadd.f32 %v503, %v522
    %v539 = vadd.f32 %v504, %v522
    %v540 = vadd.f32 %v505, %v522
    %v541 = vadd.f32 %v506, %v522
    %v542 = vadd.f32 %v507, %v522
    %v543 = vadd.f32 %v508, %v522
    %v544 = vadd.f32 %v509, %v522
    %v545 = vadd.f32 %v510, %v522
    %v546 = vadd.f32 %v511, %v522
    %v547 = vadd.f32 %v512, %v522
    %v548 = vadd.f32 %v513, %v522
    %v549 = vadd.f32 %v514, %v522
    %v550 = vadd.f32 %v515, %v522
    %v551 = vadd.f32 %v516, %v522
    %v552 = vadd.f32 %v517, %v522
    %v553 = vadd.f32 %v518, %v522
    %v554 = vadd.f32 %v519, %v522
    %v555 = vadd.f32 %v520, %v522
    %v556 = vmax.f32 %v524, 0.0
    %v557 = vmax.f32 %v525, 0.0
    %v558 = vmax.f32 %v526, 0.0
    %v559 = vmax.f32 %v527, 0.0
    %v560 = vmax.f32 %v528, 0.0
    %v561 = vmax.f32 %v529, 0.0
    %v562 = vmax.f32 %v530, 0.0
    %v563 = vmax.f32 %v531, 0.0
    %v564 = vmax.f32 %v532, 0.0
    %v565 = vmax.f32 %v533, 0.0
    %v566 = vmax.f32 %v534, 0.0
    %v567 = vmax.f32 %v535, 0.0
    %v568 = vmax.f32 %v536, 0.0
    %v569 = vmax.f32 %v537, 0.0
    %v570 = vmax.f32 %v538, 0.0
    %v571 = vmax.f32 %v539, 0.0
    %v572 = vmax.f32 %v540, 0.0
    %v573 = vmax.f32 %v541, 0.0
    %v574 = vmax.f32 %v542, 0.0
    %v575 = vmax.f32 %v543, 0.0
    %v576 = vmax.f32 %v544, 0.0
    %v577 = vmax.f32 %v545, 0.0
    %v578 = vmax.f32 %v546, 0.0
    %v579 = vmax.f32 %v547, 0.0
    %v580 = vmax.f32 %v548, 0.0
    %v581 = vmax.f32 %v549, 0.0
    %v582 = vmax.f32 %v550, 0.0
    %v583 = vmax.f32 %v551, 0.0
    %v584 = vmax.f32 %v552, 0.0
    %v585 = vmax.f32 %v553, 0.0
    %v586 = vmax.f32 %v554, 0.0
    %v587 = vmax.f32 %v555, 0.0
    %v588 = vlaneseq
    %v589 = vshrl.u32 %v588, 7
    %v590 = vadd.s32 %v589, 8
    %v591 = vadd.s32 %v589, 16
    %v592 = vadd.s32 %v589, 24
    %v593 = vadd.s32 %v589, 32
    %v594 = vadd.s32 %v589, 40
    %v595 = vadd.s32 %v589, 48
    %v596 = vadd.s32 %v589, 56
    %v597 = vadd.s32 %v589, 64
    %v598 = vadd.s32 %v589, 72
    %v599 = vadd.s32 %v589, 80
    %v600 = vadd.s32 %v589, 88
    %v601 = vadd.s32 %v589, 96
    %v602 = vadd.s32 %v589, 104
    %v603 = vadd.s32 %v589, 112
    %v604 = vadd.s32 %v589, 120
    %v605 = vadd.s32 %v589, 128
    %v606 = vadd.s32 %v589, 136
    %v607 = vadd.s32 %v589, 144
    %v608 = vadd.s32 %v589, 152
    %v609 = vadd.s32 %v589, 160
    %v610 = vadd.s32 %v589, 168
    %v611 = vadd.s32 %v589, 176
    %v612 = vadd.s32 %v589, 184
    %v613 = vadd.s32 %v589, 192
    %v614 = vadd.s32 %v589, 200
    %v615 = vadd.s32 %v589, 208
    %v616 = vadd.s32 %v589, 216
    %v617 = vadd.s32 %v589, 224
    %v618 = vadd.s32 %v589, 232
    %v619 = vadd.s32 %v589, 240
    %v620 = vadd.s32 %v589, 248
    %vm621 = vcmp.ge.s32.totalorder %v589, 6
    %vm622 = vcmp.ge.s32.totalorder %v590, 6
    %vm623 = vcmp.ge.s32.totalorder %v591, 6
    %vm624 = vcmp.ge.s32.totalorder %v592, 6
    %vm625 = vcmp.ge.s32.totalorder %v593, 6
    %vm626 = vcmp.ge.s32.totalorder %v594, 6
    %vm627 = vcmp.ge.s32.totalorder %v595, 6
    %vm628 = vcmp.ge.s32.totalorder %v596, 6
    %vm629 = vcmp.ge.s32.totalorder %v597, 6
    %vm630 = vcmp.ge.s32.totalorder %v598, 6
    %vm631 = vcmp.ge.s32.totalorder %v599, 6
    %vm632 = vcmp.ge.s32.totalorder %v600, 6
    %vm633 = vcmp.ge.s32.totalorder %v601, 6
    %vm634 = vcmp.ge.s32.totalorder %v602, 6
    %vm635 = vcmp.ge.s32.totalorder %v603, 6
    %vm636 = vcmp.ge.s32.totalorder %v604, 6
    %vm637 = vcmp.ge.s32.totalorder %v605, 6
    %vm638 = vcmp.ge.s32.totalorder %v606, 6
    %vm639 = vcmp.ge.s32.totalorder %v607, 6
    %vm640 = vcmp.ge.s32.totalorder %v608, 6
    %vm641 = vcmp.ge.s32.totalorder %v609, 6
    %vm642 = vcmp.ge.s32.totalorder %v610, 6
    %vm643 = vcmp.ge.s32.totalorder %v611, 6
    %vm644 = vcmp.ge.s32.totalorder %v612, 6
    %vm645 = vcmp.ge.s32.totalorder %v613, 6
    %vm646 = vcmp.ge.s32.totalorder %v614, 6
    %vm647 = vcmp.ge.s32.totalorder %v615, 6
    %vm648 = vcmp.ge.s32.totalorder %v616, 6
    %vm649 = vcmp.ge.s32.totalorder %v617, 6
    %vm650 = vcmp.ge.s32.totalorder %v618, 6
    %vm651 = vcmp.ge.s32.totalorder %v619, 6
    %vm652 = vcmp.ge.s32.totalorder %v620, 6
    %v653 = vsel %vm621, 1, 0
    %v654 = vsel %vm622, 1, 0
    %v655 = vsel %vm623, 1, 0
    %v656 = vsel %vm624, 1, 0
    %v657 = vsel %vm625, 1, 0
    %v658 = vsel %vm626, 1, 0
    %v659 = vsel %vm627, 1, 0
    %v660 = vsel %vm628, 1, 0
    %v661 = vsel %vm629, 1, 0
    %v662 = vsel %vm630, 1, 0
    %v663 = vsel %vm631, 1, 0
    %v664 = vsel %vm632, 1, 0
    %v665 = vsel %vm633, 1, 0
    %v666 = vsel %vm634, 1, 0
    %v667 = vsel %vm635, 1, 0
    %v668 = vsel %vm636, 1, 0
    %v669 = vsel %vm637, 1, 0
    %v670 = vsel %vm638, 1, 0
    %v671 = vsel %vm639, 1, 0
    %v672 = vsel %vm640, 1, 0
    %v673 = vsel %vm641, 1, 0
    %v674 = vsel %vm642, 1, 0
    %v675 = vsel %vm643, 1, 0
    %v676 = vsel %vm644, 1, 0
    %v677 = vsel %vm645, 1, 0
    %v678 = vsel %vm646, 1, 0
    %v679 = vsel %vm647, 1, 0
    %v680 = vsel %vm648, 1, 0
    %v681 = vsel %vm649, 1, 0
    %v682 = vsel %vm650, 1, 0
    %v683 = vsel %vm651, 1, 0
    %v684 = vsel %vm652, 1, 0
    %v685 = vcvt.s32.f32 %v653
    %v686 = vcvt.s32.f32 %v654
    %v687 = vcvt.s32.f32 %v655
    %v688 = vcvt.s32.f32 %v656
    %v689 = vcvt.s32.f32 %v657
    %v690 = vcvt.s32.f32 %v658
    %v691 = vcvt.s32.f32 %v659
    %v692 = vcvt.s32.f32 %v660
    %v693 = vcvt.s32.f32 %v661
    %v694 = vcvt.s32.f32 %v662
    %v695 = vcvt.s32.f32 %v663
    %v696 = vcvt.s32.f32 %v664
    %v697 = vcvt.s32.f32 %v665
    %v698 = vcvt.s32.f32 %v666
    %v699 = vcvt.s32.f32 %v667
    %v700 = vcvt.s32.f32 %v668
    %v701 = vcvt.s32.f32 %v669
    %v702 = vcvt.s32.f32 %v670
    %v703 = vcvt.s32.f32 %v671
    %v704 = vcvt.s32.f32 %v672
    %v705 = vcvt.s32.f32 %v673
    %v706 = vcvt.s32.f32 %v674
    %v707 = vcvt.s32.f32 %v675
    %v708 = vcvt.s32.f32 %v676
    %v709 = vcvt.s32.f32 %v677
    %v710 = vcvt.s32.f32 %v678
    %v711 = vcvt.s32.f32 %v679
    %v712 = vcvt.s32.f32 %v680
    %v713 = vcvt.s32.f32 %v681
    %v714 = vcvt.s32.f32 %v682
    %v715 = vcvt.s32.f32 %v683
    %v716 = vcvt.s32.f32 %v684
    %v717 = vmul.f32 %v556, %v685
    %v718 = vmul.f32 %v557, %v686
    %v719 = vmul.f32 %v558, %v687
    %v720 = vmul.f32 %v559, %v688
    %v721 = vmul.f32 %v560, %v689
    %v722 = vmul.f32 %v561, %v690
    %v723 = vmul.f32 %v562, %v691
    %v724 = vmul.f32 %v563, %v692
    %v725 = vmul.f32 %v564, %v693
    %v726 = vmul.f32 %v565, %v694
    %v727 = vmul.f32 %v566, %v695
    %v728 = vmul.f32 %v567, %v696
    %v729 = vmul.f32 %v568, %v697
    %v730 = vmul.f32 %v569, %v698
    %v731 = vmul.f32 %v570, %v699
    %v732 = vmul.f32 %v571, %v700
    %v733 = vmul.f32 %v572, %v701
    %v734 = vmul.f32 %v573, %v702
    %v735 = vmul.f32 %v574, %v703
    %v736 = vmul.f32 %v575, %v704
    %v737 = vmul.f32 %v576, %v705
    %v738 = vmul.f32 %v577, %v706
    %v739 = vmul.f32 %v578, %v707
    %v740 = vmul.f32 %v579, %v708
    %v741 = vmul.f32 %v580, %v709
    %v742 = vmul.f32 %v581, %v710
    %v743 = vmul.f32 %v582, %v711
    %v744 = vmul.f32 %v583, %v712
    %v745 = vmul.f32 %v584, %v713
    %v746 = vmul.f32 %v585, %v714
    %v747 = vmul.f32 %v586, %v715
    %v748 = vmul.f32 %v587, %v716
    %749 = vst.msk [vmem:[#allocation2] sm:$0xff] %vm294, %v717
    %750 = vst.msk [vmem:[#allocation2 + $0x8] sm:$0xff] %vm294, %v718
    %751 = vst.msk [vmem:[#allocation2 + $0x10] sm:$0xff] %vm294, %v719
    %752 = vst.msk [vmem:[#allocation2 + $0x18] sm:$0xff] %vm294, %v720
    %753 = vst.msk [vmem:[#allocation2 + $0x20] sm:$0xff] %vm294, %v721
    %754 = vst.msk [vmem:[#allocation2 + $0x28] sm:$0xff] %vm294, %v722
    %755 = vst.msk [vmem:[#allocation2 + $0x30] sm:$0xff] %vm294, %v723
    %756 = vst.msk [vmem:[#allocation2 + $0x38] sm:$0xff] %vm294, %v724
    %757 = vst.msk [vmem:[#allocation2 + $0x40] sm:$0xff] %vm294, %v725
    %758 = vst.msk [vmem:[#allocation2 + $0x48] sm:$0xff] %vm294, %v726
    %759 = vst.msk [vmem:[#allocation2 + $0x50] sm:$0xff] %vm294, %v727
    %760 = vst.msk [vmem:[#allocation2 + $0x58] sm:$0xff] %vm294, %v728
    %761 = vst.msk [vmem:[#allocation2 + $0x60] sm:$0xff] %vm294, %v729
    %762 = vst.msk [vmem:[#allocation2 + $0x68] sm:$0xff] %vm294, %v730
    %763 = vst.msk [vmem:[#allocation2 + $0x70] sm:$0xff] %vm294, %v731
    %764 = vst.msk [vmem:[#allocation2 + $0x78] sm:$0xff] %vm294, %v732
    %765 = vst.msk [vmem:[#allocation2 + $0x80] sm:$0xff] %vm294, %v733
    %766 = vst.msk [vmem:[#allocation2 + $0x88] sm:$0xff] %vm294, %v734
    %767 = vst.msk [vmem:[#allocation2 + $0x90] sm:$0xff] %vm294, %v735
    %768 = vst.msk [vmem:[#allocation2 + $0x98] sm:$0xff] %vm294, %v736
    %769 = vst.msk [vmem:[#allocation2 + $0xa0] sm:$0xff] %vm294, %v737
    %770 = vst.msk [vmem:[#allocation2 + $0xa8] sm:$0xff] %vm294, %v738
    %771 = vst.msk [vmem:[#allocation2 + $0xb0] sm:$0xff] %vm294, %v739
    %772 = vst.msk [vmem:[#allocation2 + $0xb8] sm:$0xff] %vm294, %v740
    %773 = vst.msk [vmem:[#allocation2 + $0xc0] sm:$0xff] %vm294, %v741
    %774 = vst.msk [vmem:[#allocation2 + $0xc8] sm:$0xff] %vm294, %v742
    %775 = vst.msk [vmem:[#allocation2 + $0xd0] sm:$0xff] %vm294, %v743
    %776 = vst.msk [vmem:[#allocation2 + $0xd8] sm:$0xff] %vm294, %v744
    %777 = vst.msk [vmem:[#allocation2 + $0xe0] sm:$0xff] %vm294, %v745
    %778 = vst.msk [vmem:[#allocation2 + $0xe8] sm:$0xff] %vm294, %v746
    %779 = vst.msk [vmem:[#allocation2 + $0xf0] sm:$0xff] %vm294, %v747
    %780 = vst.msk [vmem:[#allocation2 + $0xf8] sm:$0xf] %vm356, %v748
    %v781 = vld [vmem:[#allocation2] sm:$0xff]
    %v782 = vld [vmem:[#allocation2 + $0x8] sm:$0xff]
    %v783 = vld [vmem:[#allocation2 + $0x10] sm:$0xff]
    %v784 = vld [vmem:[#allocation2 + $0x18] sm:$0xff]
    %v785 = vld [vmem:[#allocation2 + $0x20] sm:$0xff]
    %v786 = vld [vmem:[#allocation2 + $0x28] sm:$0xff]
    %v787 = vld [vmem:[#allocation2 + $0x30] sm:$0xff]
    %v788 = vld [vmem:[#allocation2 + $0x38] sm:$0xff]
    %v789 = vld [vmem:[#allocation2 + $0x40] sm:$0xff]
    %v790 = vld [vmem:[#allocation4] sm:$0xff]
    %v791 = vld [vmem:[#allocation4 + $0x8] sm:$0xff]
    %v792 = vld [vmem:[#allocation4 + $0x10] sm:$0xff]
    %v793 = vld [vmem:[#allocation4 + $0x18] sm:$0xff]
    %v794 = vld [vmem:[#allocation4 + $0x20] sm:$0xff]
    %v795 = vld [vmem:[#allocation4 + $0x28] sm:$0xff]
    %v796 = vld [vmem:[#allocation4 + $0x30] sm:$0xff]
    %v797 = vld [vmem:[#allocation4 + $0x38] sm:$0xff]
    %v798 = vld [vmem:[#allocation2 + $0x54] sm:$0xff]
    %v799 = vld [vmem:[#allocation2 + $0x5c] sm:$0xff]
    %v800 = vld [vmem:[#allocation2 + $0x64] sm:$0xff]
    %v801 = vld [vmem:[#allocation2 + $0x6c] sm:$0xff]
    %v802 = vld [vmem:[#allocation2 + $0x74] sm:$0xff]
    %v803 = vld [vmem:[#allocation2 + $0x7c] sm:$0xff]
    %v804 = vld [vmem:[#allocation2 + $0x84] sm:$0xff]
    %v805 = vld [vmem:[#allocation2 + $0x8c] sm:$0xff]
    %v806 = vld [vmem:[#allocation2 + $0x94] sm:$0xff]
    %v807 = vld [vmem:[#allocation4 + $0x40] sm:$0xff]
    %v808 = vld [vmem:[#allocation4 + $0x48] sm:$0xff]
    %v809 = vld [vmem:[#allocation4 + $0x50] sm:$0xff]
    %v810 = vld [vmem:[#allocation4 + $0x58] sm:$0xff]
    %v811 = vld [vmem:[#allocation4 + $0x60] sm:$0xff]
    %v812 = vld [vmem:[#allocation4 + $0x68] sm:$0xff]
    %v813 = vld [vmem:[#allocation4 + $0x70] sm:$0xff]
    %v814 = vld [vmem:[#allocation4 + $0x78] sm:$0xff]
    %v816 = vsel %vm294, %v798, 0
    %v819 = vsel %vm294, %v799, 0
    %v822 = vsel %vm294, %v800, 0
    %v825 = vsel %vm294, %v801, 0
    %v828 = vsel %vm294, %v802, 0
    %v831 = vsel %vm294, %v803, 0
    %v834 = vsel %vm294, %v804, 0
    %v837 = vsel %vm294, %v805, 0
    %v840 = vsel %vm294, %v806, 0
    %842 = vmatpush.msra.mxu0 0.0
    %843 = vmatpush.msra.mxu0 0.0
    %844 = vmatpush.msra.mxu0 0.0
    %845 = vmatpush.msra.mxu0 0.0
    %846 = vmatpush.msra.mxu0 0.0
    %847 = vmatpush.msra.mxu0 0.0
    %848 = vmatpush.msra.mxu0 0.0
    %849 = vmatpush.msra.mxu0 0.0
    %850 = vmatpush.msra.mxu0 %v814
    %851 = vmatpush.msra.mxu0 %v813
    %852 = vmatpush.msra.mxu0 %v812
    %853 = vmatpush.msra.mxu0 %v811
    %854 = vmatpush.msra.mxu0 %v810
    %855 = vmatpush.msra.mxu0 %v809
    %856 = vmatpush.msra.mxu0 %v808
    %857 = vmatpush.msra.mxu0 %v807
    %858 = vmatmul.f32.gmra.mxu0 %v816
    %v859 = vpop.f32.mrf.mxu0
    %v860 = vadd.f32 0.0, %v859
    %861 = vmatmul.f32.gmra.mxu0 %v819
    %v862 = vpop.f32.mrf.mxu0
    %v863 = vadd.f32 0.0, %v862
    %864 = vmatmul.f32.gmra.mxu0 %v822
    %v865 = vpop.f32.mrf.mxu0
    %v866 = vadd.f32 0.0, %v865
    %867 = vmatmul.f32.gmra.mxu0 %v825
    %v868 = vpop.f32.mrf.mxu0
    %v869 = vadd.f32 0.0, %v868
    %870 = vmatmul.f32.gmra.mxu0 %v828
    %v871 = vpop.f32.mrf.mxu0
    %v872 = vadd.f32 0.0, %v871
    %873 = vmatmul.f32.gmra.mxu0 %v831
    %v874 = vpop.f32.mrf.mxu0
    %v875 = vadd.f32 0.0, %v874
    %876 = vmatmul.f32.gmra.mxu0 %v834
    %v877 = vpop.f32.mrf.mxu0
    %v878 = vadd.f32 0.0, %v877
    %879 = vmatmul.f32.gmra.mxu0 %v837
    %v880 = vpop.f32.mrf.mxu0
    %v881 = vadd.f32 0.0, %v880
    %882 = vmatmul.f32.gmra.mxu0 %v840
    %v883 = vpop.f32.mrf.mxu0
    %v884 = vadd.f32 0.0, %v883
    %885 = vdwg.mxu0
    %v887 = vsel %vm294, %v781, 0
    %v890 = vsel %vm294, %v782, 0
    %v893 = vsel %vm294, %v783, 0
    %v896 = vsel %vm294, %v784, 0
    %v899 = vsel %vm294, %v785, 0
    %v902 = vsel %vm294, %v786, 0
    %v905 = vsel %vm294, %v787, 0
    %v908 = vsel %vm294, %v788, 0
    %v911 = vsel %vm294, %v789, 0
    %913 = vmatpush.msra.mxu0 0.0
    %914 = vmatpush.msra.mxu0 0.0
    %915 = vmatpush.msra.mxu0 0.0
    %916 = vmatpush.msra.mxu0 0.0
    %917 = vmatpush.msra.mxu0 0.0
    %918 = vmatpush.msra.mxu0 0.0
    %919 = vmatpush.msra.mxu0 0.0
    %920 = vmatpush.msra.mxu0 0.0
    %921 = vmatpush.msra.mxu0 %v797
    %922 = vmatpush.msra.mxu0 %v796
    %923 = vmatpush.msra.mxu0 %v795
    %924 = vmatpush.msra.mxu0 %v794
    %925 = vmatpush.msra.mxu0 %v793
    %926 = vmatpush.msra.mxu0 %v792
    %927 = vmatpush.msra.mxu0 %v791
    %928 = vmatpush.msra.mxu0 %v790
    %929 = vmatmul.f32.gmra.mxu0 %v887
    %v930 = vpop.f32.mrf.mxu0
    %v931 = vadd.f32 %v860, %v930
    %932 = vmatmul.f32.gmra.mxu0 %v890
    %v933 = vpop.f32.mrf.mxu0
    %v934 = vadd.f32 %v863, %v933
    %935 = vmatmul.f32.gmra.mxu0 %v893
    %v936 = vpop.f32.mrf.mxu0
    %v937 = vadd.f32 %v866, %v936
    %938 = vmatmul.f32.gmra.mxu0 %v896
    %v939 = vpop.f32.mrf.mxu0
    %v940 = vadd.f32 %v869, %v939
    %941 = vmatmul.f32.gmra.mxu0 %v899
    %v942 = vpop.f32.mrf.mxu0
    %v943 = vadd.f32 %v872, %v942
    %944 = vmatmul.f32.gmra.mxu0 %v902
    %v945 = vpop.f32.mrf.mxu0
    %v946 = vadd.f32 %v875, %v945
    %947 = vmatmul.f32.gmra.mxu0 %v905
    %v948 = vpop.f32.mrf.mxu0
    %v949 = vadd.f32 %v878, %v948
    %950 = vmatmul.f32.gmra.mxu0 %v908
    %v951 = vpop.f32.mrf.mxu0
    %v952 = vadd.f32 %v881, %v951
    %953 = vmatmul.f32.gmra.mxu0 %v911
    %v954 = vpop.f32.mrf.mxu0
    %v955 = vadd.f32 %v884, %v954
    %956 = vdwg.mxu0
    %v957 = vld [vmem:[#allocation2 + $0xa8] sm:$0xff]
    %v958 = vld [vmem:[#allocation2 + $0xb0] sm:$0xff]
    %v959 = vld [vmem:[#allocation2 + $0xb8] sm:$0xff]
    %v960 = vld [vmem:[#allocation2 + $0xc0] sm:$0xff]
    %v961 = vld [vmem:[#allocation2 + $0xc8] sm:$0xff]
    %v962 = vld [vmem:[#allocation2 + $0xd0] sm:$0xff]
    %v963 = vld [vmem:[#allocation2 + $0xd8] sm:$0xff]
    %v964 = vld [vmem:[#allocation2 + $0xe0] sm:$0xff]
    %v965 = vld [vmem:[#allocation2 + $0xe8] sm:$0xff]
    %v966 = vld [vmem:[#allocation4 + $0x80] sm:$0xff]
    %v967 = vld [vmem:[#allocation4 + $0x88] sm:$0xff]
    %v968 = vld [vmem:[#allocation4 + $0x90] sm:$0xff]
    %v969 = vld [vmem:[#allocation4 + $0x98] sm:$0xff]
    %v970 = vld [vmem:[#allocation4 + $0xa0] sm:$0xff]
    %v971 = vld [vmem:[#allocation4 + $0xa8] sm:$0xff]
    %v972 = vld [vmem:[#allocation4 + $0xb0] sm:$0xff]
    %v973 = vld [vmem:[#allocation4 + $0xb8] sm:$0xff]
    %v975 = vsel %vm294, %v957, 0
    %v978 = vsel %vm294, %v958, 0
    %v981 = vsel %vm294, %v959, 0
    %v984 = vsel %vm294, %v960, 0
    %v987 = vsel %vm294, %v961, 0
    %v990 = vsel %vm294, %v962, 0
    %v993 = vsel %vm294, %v963, 0
    %v996 = vsel %vm294, %v964, 0
    %v999 = vsel %vm294, %v965, 0
    %1001 = vmatpush.msra.mxu0 0.0
    %1002 = vmatpush.msra.mxu0 0.0
    %1003 = vmatpush.msra.mxu0 0.0
    %1004 = vmatpush.msra.mxu0 0.0
    %1005 = vmatpush.msra.mxu0 0.0
    %1006 = vmatpush.msra.mxu0 0.0
    %1007 = vmatpush.msra.mxu0 0.0
    %1008 = vmatpush.msra.mxu0 0.0
    %1009 = vmatpush.msra.mxu0 %v973
    %1010 = vmatpush.msra.mxu0 %v972
    %1011 = vmatpush.msra.mxu0 %v971
    %1012 = vmatpush.msra.mxu0 %v970
    %1013 = vmatpush.msra.mxu0 %v969
    %1014 = vmatpush.msra.mxu0 %v968
    %1015 = vmatpush.msra.mxu0 %v967
    %1016 = vmatpush.msra.mxu0 %v966
    %1017 = vmatmul.f32.gmra.mxu0 %v975
    %v1018 = vpop.f32.mrf.mxu0
    %v1019 = vadd.f32 0.0, %v1018
    %1020 = vmatmul.f32.gmra.mxu0 %v978
    %v1021 = vpop.f32.mrf.mxu0
    %v1022 = vadd.f32 0.0, %v1021
    %1023 = vmatmul.f32.gmra.mxu0 %v981
    %v1024 = vpop.f32.mrf.mxu0
    %v1025 = vadd.f32 0.0, %v1024
    %1026 = vmatmul.f32.gmra.mxu0 %v984
    %v1027 = vpop.f32.mrf.mxu0
    %v1028 = vadd.f32 0.0, %v1027
    %1029 = vmatmul.f32.gmra.mxu0 %v987
    %v1030 = vpop.f32.mrf.mxu0
    %v1031 = vadd.f32 0.0, %v1030
    %1032 = vmatmul.f32.gmra.mxu0 %v990
    %v1033 = vpop.f32.mrf.mxu0
    %v1034 = vadd.f32 0.0, %v1033
    %1035 = vmatmul.f32.gmra.mxu0 %v993
    %v1036 = vpop.f32.mrf.mxu0
    %v1037 = vadd.f32 0.0, %v1036
    %1038 = vmatmul.f32.gmra.mxu0 %v996
    %v1039 = vpop.f32.mrf.mxu0
    %v1040 = vadd.f32 0.0, %v1039
    %1041 = vmatmul.f32.gmra.mxu0 %v999
    %v1042 = vpop.f32.mrf.mxu0
    %v1043 = vadd.f32 0.0, %v1042
    %1044 = vdwg.mxu0
    %v1045 = vadd.f32 %v931, %v1019
    %v1046 = vadd.f32 %v934, %v1022
    %v1047 = vadd.f32 %v937, %v1025
    %v1048 = vadd.f32 %v940, %v1028
    %v1049 = vadd.f32 %v943, %v1031
    %v1050 = vadd.f32 %v946, %v1034
    %v1051 = vadd.f32 %v949, %v1037
    %v1052 = vadd.f32 %v952, %v1040
    %v1053 = vadd.f32 %v955, %v1043
    %v1054 = vld [vmem:[#allocation2 + $0x6] sm:$0xff]
    %v1055 = vld [vmem:[#allocation2 + $0xe] sm:$0xff]
    %v1056 = vld [vmem:[#allocation2 + $0x16] sm:$0xff]
    %v1057 = vld [vmem:[#allocation2 + $0x1e] sm:$0xff]
    %v1058 = vld [vmem:[#allocation2 + $0x26] sm:$0xff]
    %v1059 = vld [vmem:[#allocation2 + $0x2e] sm:$0xff]
    %v1060 = vld [vmem:[#allocation2 + $0x36] sm:$0xff]
    %v1061 = vld [vmem:[#allocation2 + $0x3e] sm:$0xff]
    %v1062 = vld [vmem:[#allocation2 + $0x46] sm:$0xff]
    %v1063 = vld [vmem:[#allocation4 + $0xc0] sm:$0xff]
    %v1064 = vld [vmem:[#allocation4 + $0xc8] sm:$0xff]
    %v1065 = vld [vmem:[#allocation4 + $0xd0] sm:$0xff]
    %v1066 = vld [vmem:[#allocation4 + $0xd8] sm:$0xff]
    %v1067 = vld [vmem:[#allocation4 + $0xe0] sm:$0xff]
    %v1068 = vld [vmem:[#allocation4 + $0xe8] sm:$0xff]
    %v1069 = vld [vmem:[#allocation4 + $0xf0] sm:$0xff]
    %v1070 = vld [vmem:[#allocation4 + $0xf8] sm:$0xff]
    %v1072 = vsel %vm294, %v1054, 0
    %v1075 = vsel %vm294, %v1055, 0
    %v1078 = vsel %vm294, %v1056, 0
    %v1081 = vsel %vm294, %v1057, 0
    %v1084 = vsel %vm294, %v1058, 0
    %v1087 = vsel %vm294, %v1059, 0
    %v1090 = vsel %vm294, %v1060, 0
    %v1093 = vsel %vm294, %v1061, 0
    %v1096 = vsel %vm294, %v1062, 0
    %1098 = vmatpush.msra.mxu0 0.0
    %1099 = vmatpush.msra.mxu0 0.0
    %1100 = vmatpush.msra.mxu0 0.0
    %1101 = vmatpush.msra.mxu0 0.0
    %1102 = vmatpush.msra.mxu0 0.0
    %1103 = vmatpush.msra.mxu0 0.0
    %1104 = vmatpush.msra.mxu0 0.0
    %1105 = vmatpush.msra.mxu0 0.0
    %1106 = vmatpush.msra.mxu0 %v1070
    %1107 = vmatpush.msra.mxu0 %v1069
    %1108 = vmatpush.msra.mxu0 %v1068
    %1109 = vmatpush.msra.mxu0 %v1067
    %1110 = vmatpush.msra.mxu0 %v1066
    %1111 = vmatpush.msra.mxu0 %v1065
    %1112 = vmatpush.msra.mxu0 %v1064
    %1113 = vmatpush.msra.mxu0 %v1063
    %1114 = vmatmul.f32.gmra.mxu0 %v1072
    %v1115 = vpop.f32.mrf.mxu0
    %v1116 = vadd.f32 0.0, %v1115
    %1117 = vmatmul.f32.gmra.mxu0 %v1075
    %v1118 = vpop.f32.mrf.mxu0
    %v1119 = vadd.f32 0.0, %v1118
    %1120 = vmatmul.f32.gmra.mxu0 %v1078
    %v1121 = vpop.f32.mrf.mxu0
    %v1122 = vadd.f32 0.0, %v1121
    %1123 = vmatmul.f32.gmra.mxu0 %v1081
    %v1124 = vpop.f32.mrf.mxu0
    %v1125 = vadd.f32 0.0, %v1124
    %1126 = vmatmul.f32.gmra.mxu0 %v1084
    %v1127 = vpop.f32.mrf.mxu0
    %v1128 = vadd.f32 0.0, %v1127
    %1129 = vmatmul.f32.gmra.mxu0 %v1087
    %v1130 = vpop.f32.mrf.mxu0
    %v1131 = vadd.f32 0.0, %v1130
    %1132 = vmatmul.f32.gmra.mxu0 %v1090
    %v1133 = vpop.f32.mrf.mxu0
    %v1134 = vadd.f32 0.0, %v1133
    %1135 = vmatmul.f32.gmra.mxu0 %v1093
    %v1136 = vpop.f32.mrf.mxu0
    %v1137 = vadd.f32 0.0, %v1136
    %1138 = vmatmul.f32.gmra.mxu0 %v1096
    %v1139 = vpop.f32.mrf.mxu0
    %v1140 = vadd.f32 0.0, %v1139
    %1141 = vdwg.mxu0
    %v1142 = vadd.f32 %v1045, %v1116
    %v1143 = vadd.f32 %v1046, %v1119
    %v1144 = vadd.f32 %v1047, %v1122
    %v1145 = vadd.f32 %v1048, %v1125
    %v1146 = vadd.f32 %v1049, %v1128
    %v1147 = vadd.f32 %v1050, %v1131
    %v1148 = vadd.f32 %v1051, %v1134
    %v1149 = vadd.f32 %v1052, %v1137
    %v1150 = vadd.f32 %v1053, %v1140
    %v1151 = vld [vmem:[#allocation2 + $0x5a] sm:$0xff]
    %v1152 = vld [vmem:[#allocation2 + $0x62] sm:$0xff]
    %v1153 = vld [vmem:[#allocation2 + $0x6a] sm:$0xff]
    %v1154 = vld [vmem:[#allocation2 + $0x72] sm:$0xff]
    %v1155 = vld [vmem:[#allocation2 + $0x7a] sm:$0xff]
    %v1156 = vld [vmem:[#allocation2 + $0x82] sm:$0xff]
    %v1157 = vld [vmem:[#allocation2 + $0x8a] sm:$0xff]
    %v1158 = vld [vmem:[#allocation2 + $0x92] sm:$0xff]
    %v1159 = vld [vmem:[#allocation2 + $0x9a] sm:$0xff]
    %v1160 = vld [vmem:[#allocation4 + $0x100] sm:$0xff]
    %v1161 = vld [vmem:[#allocation4 + $0x108] sm:$0xff]
    %v1162 = vld [vmem:[#allocation4 + $0x110] sm:$0xff]
    %v1163 = vld [vmem:[#allocation4 + $0x118] sm:$0xff]
    %v1164 = vld [vmem:[#allocation4 + $0x120] sm:$0xff]
    %v1165 = vld [vmem:[#allocation4 + $0x128] sm:$0xff]
    %v1166 = vld [vmem:[#allocation4 + $0x130] sm:$0xff]
    %v1167 = vld [vmem:[#allocation4 + $0x138] sm:$0xff]
    %v1169 = vsel %vm294, %v1151, 0
    %v1172 = vsel %vm294, %v1152, 0
    %v1175 = vsel %vm294, %v1153, 0
    %v1178 = vsel %vm294, %v1154, 0
    %v1181 = vsel %vm294, %v1155, 0
    %v1184 = vsel %vm294, %v1156, 0
    %v1187 = vsel %vm294, %v1157, 0
    %v1190 = vsel %vm294, %v1158, 0
    %v1193 = vsel %vm294, %v1159, 0
    %1195 = vmatpush.msra.mxu0 0.0
    %1196 = vmatpush.msra.mxu0 0.0
    %1197 = vmatpush.msra.mxu0 0.0
    %1198 = vmatpush.msra.mxu0 0.0
    %1199 = vmatpush.msra.mxu0 0.0
    %1200 = vmatpush.msra.mxu0 0.0
    %1201 = vmatpush.msra.mxu0 0.0
    %1202 = vmatpush.msra.mxu0 0.0
    %1203 = vmatpush.msra.mxu0 %v1167
    %1204 = vmatpush.msra.mxu0 %v1166
    %1205 = vmatpush.msra.mxu0 %v1165
    %1206 = vmatpush.msra.mxu0 %v1164
    %1207 = vmatpush.msra.mxu0 %v1163
    %1208 = vmatpush.msra.mxu0 %v1162
    %1209 = vmatpush.msra.mxu0 %v1161
    %1210 = vmatpush.msra.mxu0 %v1160
    %1211 = vmatmul.f32.gmra.mxu0 %v1169
    %v1212 = vpop.f32.mrf.mxu0
    %v1213 = vadd.f32 0.0, %v1212
    %1214 = vmatmul.f32.gmra.mxu0 %v1172
    %v1215 = vpop.f32.mrf.mxu0
    %v1216 = vadd.f32 0.0, %v1215
    %1217 = vmatmul.f32.gmra.mxu0 %v1175
    %v1218 = vpop.f32.mrf.mxu0
    %v1219 = vadd.f32 0.0, %v1218
    %1220 = vmatmul.f32.gmra.mxu0 %v1178
    %v1221 = vpop.f32.mrf.mxu0
    %v1222 = vadd.f32 0.0, %v1221
    %1223 = vmatmul.f32.gmra.mxu0 %v1181
    %v1224 = vpop.f32.mrf.mxu0
    %v1225 = vadd.f32 0.0, %v1224
    %1226 = vmatmul.f32.gmra.mxu0 %v1184
    %v1227 = vpop.f32.mrf.mxu0
    %v1228 = vadd.f32 0.0, %v1227
    %1229 = vmatmul.f32.gmra.mxu0 %v1187
    %v1230 = vpop.f32.mrf.mxu0
    %v1231 = vadd.f32 0.0, %v1230
    %1232 = vmatmul.f32.gmra.mxu0 %v1190
    %v1233 = vpop.f32.mrf.mxu0
    %v1234 = vadd.f32 0.0, %v1233
    %1235 = vmatmul.f32.gmra.mxu0 %v1193
    %v1236 = vpop.f32.mrf.mxu0
    %v1237 = vadd.f32 0.0, %v1236
    %1238 = vdwg.mxu0
    %v1239 = vadd.f32 %v1142, %v1213
    %v1240 = vadd.f32 %v1143, %v1216
    %v1241 = vadd.f32 %v1144, %v1219
    %v1242 = vadd.f32 %v1145, %v1222
    %v1243 = vadd.f32 %v1146, %v1225
    %v1244 = vadd.f32 %v1147, %v1228
    %v1245 = vadd.f32 %v1148, %v1231
    %v1246 = vadd.f32 %v1149, %v1234
    %v1247 = vadd.f32 %v1150, %v1237
    %v1248 = vld [vmem:[#allocation2 + $0xae] sm:$0xff]
    %v1249 = vld [vmem:[#allocation2 + $0xb6] sm:$0xff]
    %v1250 = vld [vmem:[#allocation2 + $0xbe] sm:$0xff]
    %v1251 = vld [vmem:[#allocation2 + $0xc6] sm:$0xff]
    %v1252 = vld [vmem:[#allocation2 + $0xce] sm:$0xff]
    %v1253 = vld [vmem:[#allocation2 + $0xd6] sm:$0xff]
    %v1254 = vld [vmem:[#allocation2 + $0xde] sm:$0xff]
    %v1255 = vld [vmem:[#allocation2 + $0xe6] sm:$0xff]
    %v1256 = vld [vmem:[#allocation2 + $0xee] sm:$0xff]
    %v1257 = vld [vmem:[#allocation4 + $0x140] sm:$0xff]
    %v1258 = vld [vmem:[#allocation4 + $0x148] sm:$0xff]
    %v1259 = vld [vmem:[#allocation4 + $0x150] sm:$0xff]
    %v1260 = vld [vmem:[#allocation4 + $0x158] sm:$0xff]
    %v1261 = vld [vmem:[#allocation4 + $0x160] sm:$0xff]
    %v1262 = vld [vmem:[#allocation4 + $0x168] sm:$0xff]
    %v1263 = vld [vmem:[#allocation4 + $0x170] sm:$0xff]
    %v1264 = vld [vmem:[#allocation4 + $0x178] sm:$0xff]
    %v1266 = vsel %vm294, %v1248, 0
    %v1269 = vsel %vm294, %v1249, 0
    %v1272 = vsel %vm294, %v1250, 0
    %v1275 = vsel %vm294, %v1251, 0
    %v1278 = vsel %vm294, %v1252, 0
    %v1281 = vsel %vm294, %v1253, 0
    %v1284 = vsel %vm294, %v1254, 0
    %v1287 = vsel %vm294, %v1255, 0
    %v1290 = vsel %vm294, %v1256, 0
    %1292 = vmatpush.msra.mxu0 0.0
    %1293 = vmatpush.msra.mxu0 0.0
    %1294 = vmatpush.msra.mxu0 0.0
    %1295 = vmatpush.msra.mxu0 0.0
    %1296 = vmatpush.msra.mxu0 0.0
    %1297 = vmatpush.msra.mxu0 0.0
    %1298 = vmatpush.msra.mxu0 0.0
    %1299 = vmatpush.msra.mxu0 0.0
    %1300 = vmatpush.msra.mxu0 %v1264
    %1301 = vmatpush.msra.mxu0 %v1263
    %1302 = vmatpush.msra.mxu0 %v1262
    %1303 = vmatpush.msra.mxu0 %v1261
    %1304 = vmatpush.msra.mxu0 %v1260
    %1305 = vmatpush.msra.mxu0 %v1259
    %1306 = vmatpush.msra.mxu0 %v1258
    %1307 = vmatpush.msra.mxu0 %v1257
    %1308 = vmatmul.f32.gmra.mxu0 %v1266
    %v1309 = vpop.f32.mrf.mxu0
    %v1310 = vadd.f32 0.0, %v1309
    %1311 = vmatmul.f32.gmra.mxu0 %v1269
    %v1312 = vpop.f32.mrf.mxu0
    %v1313 = vadd.f32 0.0, %v1312
    %1314 = vmatmul.f32.gmra.mxu0 %v1272
    %v1315 = vpop.f32.mrf.mxu0
    %v1316 = vadd.f32 0.0, %v1315
    %1317 = vmatmul.f32.gmra.mxu0 %v1275
    %v1318 = vpop.f32.mrf.mxu0
    %v1319 = vadd.f32 0.0, %v1318
    %1320 = vmatmul.f32.gmra.mxu0 %v1278
    %v1321 = vpop.f32.mrf.mxu0
    %v1322 = vadd.f32 0.0, %v1321
    %1323 = vmatmul.f32.gmra.mxu0 %v1281
    %v1324 = vpop.f32.mrf.mxu0
    %v1325 = vadd.f32 0.0, %v1324
    %1326 = vmatmul.f32.gmra.mxu0 %v1284
    %v1327 = vpop.f32.mrf.mxu0
    %v1328 = vadd.f32 0.0, %v1327
    %1329 = vmatmul.f32.gmra.mxu0 %v1287
    %v1330 = vpop.f32.mrf.mxu0
    %v1331 = vadd.f32 0.0, %v1330
    %1332 = vmatmul.f32.gmra.mxu0 %v1290
    %v1333 = vpop.f32.mrf.mxu0
    %v1334 = vadd.f32 0.0, %v1333
    %1335 = vdwg.mxu0
    %v1336 = vadd.f32 %v1239, %v1310
    %v1337 = vadd.f32 %v1240, %v1313
    %v1338 = vadd.f32 %v1241, %v1316
    %v1339 = vadd.f32 %v1242, %v1319
    %v1340 = vadd.f32 %v1243, %v1322
    %v1341 = vadd.f32 %v1244, %v1325
    %v1342 = vadd.f32 %v1245, %v1328
    %v1343 = vadd.f32 %v1246, %v1331
    %v1344 = vadd.f32 %v1247, %v1334
    %v1345 = vadd.f32 %v1336, %v1337
    %v1346 = vadd.f32 %v1345, %v1338
    %v1347 = vadd.f32 %v1346, %v1339
    %v1348 = vadd.f32 %v1347, %v1340
    %v1349 = vadd.f32 %v1348, %v1341
    %v1350 = vadd.f32 %v1349, %v1342
    %v1351 = vadd.f32 %v1350, %v1343
    %v1352 = vadd.f32 %v1351, %v1344
    %v1353 = vrot.slane %v1352, 4
    %v1354 = vadd.f32 %v1352, %v1353
    %v1355 = vrot.slane %v1354, 2
    %v1356 = vadd.f32 %v1354, %v1355
    %v1357 = vrot.slane %v1356, 1
    %v1358 = vadd.f32 %v1356, %v1357
    %v1359 = vmul.f32 %v1358, 0.013888889
    %v1360 = vmul.f32 %v1336, %v1336
    %v1361 = vmul.f32 %v1337, %v1337
    %v1362 = vmul.f32 %v1338, %v1338
    %v1363 = vmul.f32 %v1339, %v1339
    %v1364 = vmul.f32 %v1340, %v1340
    %v1365 = vmul.f32 %v1341, %v1341
    %v1366 = vmul.f32 %v1342, %v1342
    %v1367 = vmul.f32 %v1343, %v1343
    %v1368 = vmul.f32 %v1344, %v1344
    %v1369 = vadd.f32 %v1360, %v1361
    %v1370 = vadd.f32 %v1369, %v1362
    %v1371 = vadd.f32 %v1370, %v1363
    %v1372 = vadd.f32 %v1371, %v1364
    %v1373 = vadd.f32 %v1372, %v1365
    %v1374 = vadd.f32 %v1373, %v1366
    %v1375 = vadd.f32 %v1374, %v1367
    %v1376 = vadd.f32 %v1375, %v1368
    %v1377 = vrot.slane %v1376, 4
    %v1378 = vadd.f32 %v1376, %v1377
    %v1379 = vrot.slane %v1378, 2
    %v1380 = vadd.f32 %v1378, %v1379
    %v1381 = vrot.slane %v1380, 1
    %v1382 = vadd.f32 %v1380, %v1381
    %v1383 = vmul.f32 %v1382, 0.013888889
    %v1384 = vmul.f32 %v1359, %v1359
    %v1385 = vsub.f32 %v1383, %v1384
    %v1386 = vld [vmem:[%s5] sm:$0x1]
    %v1387 = vadd.f32 %v1385, 1e-05
    %v1388 = vrsqrt.pop %v1387
    %v1389 = vmul.f32 %v1388, %v1387
    %v1390 = vmul.f32 %v1389, %v1388
    %v1391 = vmul.f32 0.5, %v1390
    %v1392 = vsub.f32 1.5, %v1391
    %v1393 = vmul.f32 %v1388, %v1392
    %vm1394 = vweird.f32 %v1387
    %vm1395 = vweird.f32 %v1388
    %vm1396 = vmor %vm1394, %vm1395
    %v1397 = vsel %vm1396, %v1388, %v1393
    %v1398 = vmul.f32 %v1386, %v1397
    %v1399 = vld [vmem:[%s6] sm:$0x1]
    %v1400 = vmul.f32 %v1359, %v1398
    %v1401 = vsub.f32 %v1399, %v1400
    %v1403 = vperm.slane %v1398, 0
    %v1405 = vmul.f32 %v1336, %v1403
    %v1406 = vmul.f32 %v1337, %v1403
    %v1407 = vmul.f32 %v1338, %v1403
    %v1408 = vmul.f32 %v1339, %v1403
    %v1409 = vmul.f32 %v1340, %v1403
    %v1410 = vmul.f32 %v1341, %v1403
    %v1411 = vmul.f32 %v1342, %v1403
    %v1412 = vmul.f32 %v1343, %v1403
    %v1413 = vmul.f32 %v1344, %v1403
    %v1415 = vperm.slane %v1401, 0
    %v1417 = vadd.f32 %v1405, %v1415
    %v1418 = vadd.f32 %v1406, %v1415
    %v1419 = vadd.f32 %v1407, %v1415
    %v1420 = vadd.f32 %v1408, %v1415
    %v1421 = vadd.f32 %v1409, %v1415
    %v1422 = vadd.f32 %v1410, %v1415
    %v1423 = vadd.f32 %v1411, %v1415
    %v1424 = vadd.f32 %v1412, %v1415
    %v1425 = vadd.f32 %v1413, %v1415
    %v1426 = vmax.f32 %v1417, 0.0
    %v1427 = vmax.f32 %v1418, 0.0
    %v1428 = vmax.f32 %v1419, 0.0
    %v1429 = vmax.f32 %v1420, 0.0
    %v1430 = vmax.f32 %v1421, 0.0
    %v1431 = vmax.f32 %v1422, 0.0
    %v1432 = vmax.f32 %v1423, 0.0
    %v1433 = vmax.f32 %v1424, 0.0
    %v1434 = vmax.f32 %v1425, 0.0
    %1435 = vst [vmem:[#allocation3] sm:$0xff] %v1426
    %1436 = vst [vmem:[#allocation3 + $0x8] sm:$0xff] %v1427
    %1437 = vst [vmem:[#allocation3 + $0x10] sm:$0xff] %v1428
    %1438 = vst [vmem:[#allocation3 + $0x18] sm:$0xff] %v1429
    %1439 = vst [vmem:[#allocation3 + $0x20] sm:$0xff] %v1430
    %1440 = vst [vmem:[#allocation3 + $0x28] sm:$0xff] %v1431
    %1441 = vst [vmem:[#allocation3 + $0x30] sm:$0xff] %v1432
    %1442 = vst [vmem:[#allocation3 + $0x38] sm:$0xff] %v1433
    %1443 = vst [vmem:[#allocation3 + $0x40] sm:$0xff] %v1434
    %v1444 = vld [vmem:[#allocation3] sm:$0x3]
    %v1445 = vld [vmem:[#allocation3 + $0x2] sm:$0x3]
    %v1446 = vld [vmem:[#allocation3 + $0x4] sm:$0x3]
    %v1447 = vld [vmem:[#allocation3 + $0x6] sm:$0x3]
    %v1448 = vld [vmem:[#allocation3 + $0x8] sm:$0x3]
    %v1449 = vld [vmem:[#allocation3 + $0xa] sm:$0x3]
    %v1450 = vld [vmem:[#allocation3 + $0xc] sm:$0x3]
    %v1451 = vld [vmem:[#allocation3 + $0xe] sm:$0x3]
    %v1452 = vld [vmem:[#allocation3 + $0x10] sm:$0x3]
    %v1453 = vld [vmem:[#allocation3 + $0x12] sm:$0x3]
    %v1454 = vld [vmem:[#allocation3 + $0x14] sm:$0x3]
    %v1455 = vld [vmem:[#allocation3 + $0x16] sm:$0x3]
    %v1456 = vld [vmem:[#allocation3 + $0x18] sm:$0x3]
    %v1457 = vld [vmem:[#allocation3 + $0x1a] sm:$0x3]
    %v1458 = vld [vmem:[#allocation3 + $0x1c] sm:$0x3]
    %v1459 = vld [vmem:[#allocation3 + $0x1e] sm:$0x3]
    %v1460 = vld [vmem:[#allocation3 + $0x20] sm:$0x3]
    %v1461 = vld [vmem:[#allocation3 + $0x22] sm:$0x3]
    %v1462 = vld [vmem:[#allocation3 + $0x24] sm:$0x3]
    %v1463 = vld [vmem:[#allocation3 + $0x26] sm:$0x3]
    %v1464 = vld [vmem:[#allocation3 + $0x28] sm:$0x3]
    %v1465 = vld [vmem:[#allocation3 + $0x2a] sm:$0x3]
    %v1466 = vld [vmem:[#allocation3 + $0x2c] sm:$0x3]
    %v1467 = vld [vmem:[#allocation3 + $0x2e] sm:$0x3]
    %v1468 = vld [vmem:[#allocation3 + $0x30] sm:$0x3]
    %v1469 = vld [vmem:[#allocation3 + $0x32] sm:$0x3]
    %v1470 = vld [vmem:[#allocation3 + $0x34] sm:$0x3]
    %v1471 = vld [vmem:[#allocation3 + $0x36] sm:$0x3]
    %v1472 = vld [vmem:[#allocation3 + $0x38] sm:$0x3]
    %v1473 = vld [vmem:[#allocation3 + $0x3a] sm:$0x3]
    %v1474 = vld [vmem:[#allocation3 + $0x3c] sm:$0x3]
    %v1475 = vld [vmem:[#allocation3 + $0x3e] sm:$0x3]
    %v1476 = vld [vmem:[#allocation3 + $0x40] sm:$0x3]
    %v1477 = vld [vmem:[#allocation3 + $0x42] sm:$0x3]
    %v1478 = vld [vmem:[#allocation3 + $0x44] sm:$0x3]
    %v1479 = vld [vmem:[#allocation3 + $0x46] sm:$0x3]
    %v1516 = vrot.slane %v1445, 6
    %v1517 = vrot.slane %v1446, 4
    %v1518 = vrot.slane %v1447, 2
    %v1519 = vrot.slane %v1449, 6
    %v1520 = vrot.slane %v1450, 4
    %v1521 = vrot.slane %v1451, 2
    %v1522 = vrot.slane %v1453, 6
    %v1523 = vrot.slane %v1454, 4
    %v1524 = vrot.slane %v1455, 2
    %v1525 = vrot.slane %v1457, 6
    %v1526 = vrot.slane %v1458, 4
    %v1527 = vrot.slane %v1459, 2
    %v1528 = vrot.slane %v1461, 6
    %v1529 = vrot.slane %v1462, 4
    %v1530 = vrot.slane %v1463, 2
    %v1531 = vrot.slane %v1465, 6
    %v1532 = vrot.slane %v1466, 4
    %v1533 = vrot.slane %v1467, 2
    %v1534 = vrot.slane %v1469, 6
    %v1535 = vrot.slane %v1470, 4
    %v1536 = vrot.slane %v1471, 2
    %v1537 = vrot.slane %v1473, 6
    %v1538 = vrot.slane %v1474, 4
    %v1539 = vrot.slane %v1475, 2
    %v1540 = vrot.slane %v1477, 6
    %v1541 = vrot.slane %v1478, 4
    %v1542 = vrot.slane %v1479, 2
    %vm1543 = vcmask 1041408
    %v1544 = vsel %vm1543, %v1444, %v1516
    %vm1545 = vcmask 1045508
    %v1546 = vsel %vm1545, %v1517, %v1518
    %vm1547 = vcmask 1043456
    %v1548 = vsel %vm1547, %v1544, %v1546
    %v1549 = vsel %vm1543, %v1448, %v1519
    %v1550 = vsel %vm1545, %v1520, %v1521
    %v1551 = vsel %vm1547, %v1549, %v1550
    %v1552 = vsel %vm1543, %v1452, %v1522
    %v1553 = vsel %vm1545, %v1523, %v1524
    %v1554 = vsel %vm1547, %v1552, %v1553
    %v1555 = vsel %vm1543, %v1456, %v1525
    %v1556 = vsel %vm1545, %v1526, %v1527
    %v1557 = vsel %vm1547, %v1555, %v1556
    %v1558 = vsel %vm1543, %v1460, %v1528
    %v1559 = vsel %vm1545, %v1529, %v1530
    %v1560 = vsel %vm1547, %v1558, %v1559
    %v1561 = vsel %vm1543, %v1464, %v1531
    %v1562 = vsel %vm1545, %v1532, %v1533
    %v1563 = vsel %vm1547, %v1561, %v1562
    %v1564 = vsel %vm1543, %v1468, %v1534
    %v1565 = vsel %vm1545, %v1535, %v1536
    %v1566 = vsel %vm1547, %v1564, %v1565
    %v1567 = vsel %vm1543, %v1472, %v1537
    %v1568 = vsel %vm1545, %v1538, %v1539
    %v1569 = vsel %vm1547, %v1567, %v1568
    %v1570 = vsel %vm1543, %v1476, %v1540
    %v1571 = vsel %vm1545, %v1541, %v1542
    %v1572 = vsel %vm1547, %v1570, %v1571
    %1582 = vst [vmem:[%s9] sm:$0xff] %v1548
    %1583 = vst [vmem:[%s9 + $0x8] sm:$0xff] %v1551
    %1584 = vst [vmem:[%s9 + $0x10] sm:$0xff] %v1554
    %1585 = vst [vmem:[%s9 + $0x18] sm:$0xff] %v1557
    %1586 = vst [vmem:[%s9 + $0x20] sm:$0xff] %v1560
    %1587 = vst [vmem:[%s9 + $0x28] sm:$0xff] %v1563
    %1588 = vst [vmem:[%s9 + $0x30] sm:$0xff] %v1566
    %1589 = vst [vmem:[%s9 + $0x38] sm:$0xff] %v1569
    %1590 = vst [vmem:[%s9 + $0x40] sm:$0xff] %v1572
    %v1591 = vld [vmem:[%s7] sm:$0xff]
    %v1592 = vld [vmem:[%s7 + $0x8] sm:$0xff]
    %v1593 = vld [vmem:[%s7 + $0x10] sm:$0xff]
    %v1594 = vld [vmem:[%s7 + $0x18] sm:$0xff]
    %v1595 = vld [vmem:[%s7 + $0x20] sm:$0xff]
    %v1596 = vld [vmem:[%s7 + $0x28] sm:$0xff]
    %v1597 = vld [vmem:[%s7 + $0x30] sm:$0xff]
    %v1598 = vld [vmem:[%s7 + $0x38] sm:$0xff]
    %v1599 = vld [vmem:[%s7 + $0x40] sm:$0xff]
    %v1600 = vld [vmem:[%s7 + $0x48] sm:$0xff]
    %v1601 = vld [vmem:[%s7 + $0x50] sm:$0xff]
    %v1602 = vld [vmem:[%s7 + $0x58] sm:$0xff]
    %v1603 = vld [vmem:[%s7 + $0x60] sm:$0xff]
    %v1604 = vld [vmem:[%s7 + $0x68] sm:$0xff]
    %v1605 = vld [vmem:[%s7 + $0x70] sm:$0xff]
    %v1606 = vld [vmem:[%s7 + $0x78] sm:$0xff]
    %v1607 = vld [vmem:[%s7 + $0x80] sm:$0xff]
    %v1608 = vld [vmem:[%s7 + $0x88] sm:$0xff]
    %v1609 = vld [vmem:[%s7 + $0x90] sm:$0xff]
    %v1610 = vld [vmem:[%s7 + $0x98] sm:$0xff]
    %v1611 = vld [vmem:[%s7 + $0xa0] sm:$0xff]
    %v1612 = vld [vmem:[%s7 + $0xa8] sm:$0xff]
    %v1613 = vld [vmem:[%s7 + $0xb0] sm:$0xff]
    %v1614 = vld [vmem:[%s7 + $0xb8] sm:$0xff]
    %v1615 = vld [vmem:[%s7 + $0xc0] sm:$0xff]
    %v1616 = vld [vmem:[%s7 + $0xc8] sm:$0xff]
    %v1617 = vld [vmem:[%s7 + $0xd0] sm:$0xff]
    %v1618 = vld [vmem:[%s7 + $0xd8] sm:$0xff]
    %v1619 = vld [vmem:[%s7 + $0xe0] sm:$0xff]
    %v1620 = vld [vmem:[%s7 + $0xe8] sm:$0xff]
    %v1621 = vld [vmem:[%s7 + $0xf0] sm:$0xff]
    %v1622 = vld [vmem:[%s7 + $0xf8] sm:$0xff]
    %v1623 = vld [vmem:[%s7 + $0x100] sm:$0xff]
    %v1624 = vld [vmem:[%s7 + $0x108] sm:$0xff]
    %v1625 = vld [vmem:[%s7 + $0x110] sm:$0xff]
    %v1626 = vld [vmem:[%s7 + $0x118] sm:$0xff]
    %v1627 = vld [vmem:[%s7 + $0x120] sm:$0xff]
    %v1628 = vld [vmem:[%s7 + $0x128] sm:$0xff]
    %v1629 = vld [vmem:[%s7 + $0x130] sm:$0xff]
    %v1630 = vld [vmem:[%s7 + $0x138] sm:$0xff]
    %v1631 = vld [vmem:[%s7 + $0x140] sm:$0xff]
    %v1632 = vld [vmem:[%s7 + $0x148] sm:$0xff]
    %v1633 = vld [vmem:[%s7 + $0x150] sm:$0xff]
    %v1634 = vld [vmem:[%s7 + $0x158] sm:$0xff]
    %v1635 = vld [vmem:[%s7 + $0x160] sm:$0xff]
    %v1636 = vld [vmem:[%s7 + $0x168] sm:$0xff]
    %v1637 = vld [vmem:[%s7 + $0x170] sm:$0xff]
    %v1638 = vld [vmem:[%s7 + $0x178] sm:$0xff]
    %v1639 = vld [vmem:[%s7 + $0x180] sm:$0xff]
    %v1640 = vld [vmem:[%s7 + $0x188] sm:$0xff]
    %v1641 = vld [vmem:[%s7 + $0x190] sm:$0xff]
    %v1642 = vld [vmem:[%s7 + $0x198] sm:$0xff]
    %v1643 = vld [vmem:[%s7 + $0x1a0] sm:$0xff]
    %v1644 = vld [vmem:[%s7 + $0x1a8] sm:$0xff]
    %v1645 = vld [vmem:[%s7 + $0x1b0] sm:$0xff]
    %v1646 = vld [vmem:[%s7 + $0x1b8] sm:$0xff]
    %v1647 = vld [vmem:[%s7 + $0x1c0] sm:$0xff]
    %v1648 = vld [vmem:[%s7 + $0x1c8] sm:$0xff]
    %v1649 = vld [vmem:[%s7 + $0x1d0] sm:$0xff]
    %v1650 = vld [vmem:[%s7 + $0x1d8] sm:$0xff]
    %v1651 = vld [vmem:[%s7 + $0x1e0] sm:$0xff]
    %v1652 = vld [vmem:[%s7 + $0x1e8] sm:$0xff]
    %v1653 = vld [vmem:[%s7 + $0x1f0] sm:$0xff]
    %v1654 = vld [vmem:[%s7 + $0x1f8] sm:$0xff]
    %v1655 = vld [vmem:[%s7 + $0x200] sm:$0xff]
    %v1656 = vld [vmem:[%s7 + $0x208] sm:$0xff]
    %v1657 = vld [vmem:[%s7 + $0x210] sm:$0xff]
    %v1658 = vld [vmem:[%s7 + $0x218] sm:$0xff]
    %v1659 = vld [vmem:[%s7 + $0x220] sm:$0xff]
    %v1660 = vld [vmem:[%s7 + $0x228] sm:$0xff]
    %v1661 = vld [vmem:[%s7 + $0x230] sm:$0xff]
    %v1662 = vld [vmem:[%s7 + $0x238] sm:$0xff]
    %v1663 = vld [vmem:[%s7 + $0x240] sm:$0xff]
    %v1664 = vld [vmem:[%s7 + $0x248] sm:$0xff]
    %v1665 = vld [vmem:[%s7 + $0x250] sm:$0xff]
    %v1666 = vld [vmem:[%s7 + $0x258] sm:$0xff]
    %v1667 = vld [vmem:[%s7 + $0x260] sm:$0xff]
    %v1668 = vld [vmem:[%s7 + $0x268] sm:$0xff]
    %v1669 = vld [vmem:[%s7 + $0x270] sm:$0xff]
    %v1670 = vld [vmem:[%s7 + $0x278] sm:$0xff]
    %v1671 = vld [vmem:[%s7 + $0x280] sm:$0xff]
    %v1672 = vld [vmem:[%s7 + $0x288] sm:$0xff]
    %v1673 = vld [vmem:[%s7 + $0x290] sm:$0xff]
    %v1674 = vld [vmem:[%s7 + $0x298] sm:$0xff]
    %v1675 = vld [vmem:[%s7 + $0x2a0] sm:$0xff]
    %v1676 = vld [vmem:[%s7 + $0x2a8] sm:$0xff]
    %v1677 = vld [vmem:[%s7 + $0x2b0] sm:$0xff]
    %v1678 = vld [vmem:[%s7 + $0x2b8] sm:$0xff]
    %v1679 = vld [vmem:[%s7 + $0x2c0] sm:$0xff]
    %v1680 = vld [vmem:[%s7 + $0x2c8] sm:$0xff]
    %v1681 = vld [vmem:[%s7 + $0x2d0] sm:$0xff]
    %v1682 = vld [vmem:[%s7 + $0x2d8] sm:$0xff]
    %v1683 = vld [vmem:[%s7 + $0x2e0] sm:$0xff]
    %v1684 = vld [vmem:[%s7 + $0x2e8] sm:$0xff]
    %v1685 = vld [vmem:[%s7 + $0x2f0] sm:$0xff]
    %v1686 = vld [vmem:[%s7 + $0x2f8] sm:$0xff]
    %v1687 = vld [vmem:[%s7 + $0x300] sm:$0xff]
    %v1688 = vld [vmem:[%s7 + $0x308] sm:$0xff]
    %v1689 = vld [vmem:[%s7 + $0x310] sm:$0xff]
    %v1690 = vld [vmem:[%s7 + $0x318] sm:$0xff]
    %v1691 = vld [vmem:[%s7 + $0x320] sm:$0xff]
    %v1692 = vld [vmem:[%s7 + $0x328] sm:$0xff]
    %v1693 = vld [vmem:[%s7 + $0x330] sm:$0xff]
    %v1694 = vld [vmem:[%s7 + $0x338] sm:$0xff]
    %v1695 = vld [vmem:[%s7 + $0x340] sm:$0xff]
    %v1696 = vld [vmem:[%s7 + $0x348] sm:$0xff]
    %v1697 = vld [vmem:[%s7 + $0x350] sm:$0xff]
    %v1698 = vld [vmem:[%s7 + $0x358] sm:$0xff]
    %v1699 = vld [vmem:[%s7 + $0x360] sm:$0xff]
    %v1700 = vld [vmem:[%s7 + $0x368] sm:$0xff]
    %v1701 = vld [vmem:[%s7 + $0x370] sm:$0xff]
    %v1702 = vld [vmem:[%s7 + $0x378] sm:$0xff]
    %v1703 = vld [vmem:[%s7 + $0x380] sm:$0xff]
    %v1704 = vld [vmem:[%s7 + $0x388] sm:$0xff]
    %v1705 = vld [vmem:[%s7 + $0x390] sm:$0xff]
    %v1706 = vld [vmem:[%s7 + $0x398] sm:$0xff]
    %v1707 = vld [vmem:[%s7 + $0x3a0] sm:$0xff]
    %v1708 = vld [vmem:[%s7 + $0x3a8] sm:$0xff]
    %v1709 = vld [vmem:[%s7 + $0x3b0] sm:$0xff]
    %v1710 = vld [vmem:[%s7 + $0x3b8] sm:$0xff]
    %v1711 = vld [vmem:[%s7 + $0x3c0] sm:$0xff]
    %v1712 = vld [vmem:[%s7 + $0x3c8] sm:$0xff]
    %v1713 = vld [vmem:[%s7 + $0x3d0] sm:$0xff]
    %v1714 = vld [vmem:[%s7 + $0x3d8] sm:$0xff]
    %v1715 = vld [vmem:[%s7 + $0x3e0] sm:$0xff]
    %v1716 = vld [vmem:[%s7 + $0x3e8] sm:$0xff]
    %v1717 = vld [vmem:[%s7 + $0x3f0] sm:$0xff]
    %v1718 = vld [vmem:[%s7 + $0x3f8] sm:$0xff]
    %v1719 = vld [vmem:[%s7 + $0x400] sm:$0xff]
    %v1720 = vld [vmem:[%s7 + $0x408] sm:$0xff]
    %v1721 = vld [vmem:[%s7 + $0x410] sm:$0xff]
    %v1722 = vld [vmem:[%s7 + $0x418] sm:$0xff]
    %v1723 = vld [vmem:[%s7 + $0x420] sm:$0xff]
    %v1724 = vld [vmem:[%s7 + $0x428] sm:$0xff]
    %v1725 = vld [vmem:[%s7 + $0x430] sm:$0xff]
    %v1726 = vld [vmem:[%s7 + $0x438] sm:$0xff]
    %v1727 = vld [vmem:[%s7 + $0x440] sm:$0xff]
    %v1728 = vld [vmem:[%s7 + $0x448] sm:$0xff]
    %v1729 = vld [vmem:[%s7 + $0x450] sm:$0xff]
    %v1730 = vld [vmem:[%s7 + $0x458] sm:$0xff]
    %v1731 = vld [vmem:[%s7 + $0x460] sm:$0xff]
    %v1732 = vld [vmem:[%s7 + $0x468] sm:$0xff]
    %v1733 = vld [vmem:[%s7 + $0x470] sm:$0xff]
    %v1734 = vld [vmem:[%s7 + $0x478] sm:$0xff]
    %v1735 = vld [vmem:[%s7 + $0x480] sm:$0xff]
    %v1736 = vld [vmem:[%s7 + $0x488] sm:$0xff]
    %v1737 = vld [vmem:[%s7 + $0x490] sm:$0xff]
    %v1738 = vld [vmem:[%s7 + $0x498] sm:$0xff]
    %v1739 = vld [vmem:[%s7 + $0x4a0] sm:$0xff]
    %v1740 = vld [vmem:[%s7 + $0x4a8] sm:$0xff]
    %v1741 = vld [vmem:[%s7 + $0x4b0] sm:$0xff]
    %v1742 = vld [vmem:[%s7 + $0x4b8] sm:$0xff]
    %v1743 = vld [vmem:[%s7 + $0x4c0] sm:$0xff]
    %v1744 = vld [vmem:[%s7 + $0x4c8] sm:$0xff]
    %v1745 = vld [vmem:[%s7 + $0x4d0] sm:$0xff]
    %v1746 = vld [vmem:[%s7 + $0x4d8] sm:$0xff]
    %v1747 = vld [vmem:[%s7 + $0x4e0] sm:$0xff]
    %v1748 = vld [vmem:[%s7 + $0x4e8] sm:$0xff]
    %v1749 = vld [vmem:[%s7 + $0x4f0] sm:$0xff]
    %v1750 = vld [vmem:[%s7 + $0x4f8] sm:$0xff]
    %v1751 = vld [vmem:[%s7 + $0x500] sm:$0xff]
    %v1752 = vld [vmem:[%s7 + $0x508] sm:$0xff]
    %v1753 = vld [vmem:[%s7 + $0x510] sm:$0xff]
    %v1754 = vld [vmem:[%s7 + $0x518] sm:$0xff]
    %v1755 = vld [vmem:[%s7 + $0x520] sm:$0xff]
    %v1756 = vld [vmem:[%s7 + $0x528] sm:$0xff]
    %v1757 = vld [vmem:[%s7 + $0x530] sm:$0xff]
    %v1758 = vld [vmem:[%s7 + $0x538] sm:$0xff]
    %v1759 = vld [vmem:[%s7 + $0x540] sm:$0xff]
    %v1760 = vld [vmem:[%s7 + $0x548] sm:$0xff]
    %v1761 = vld [vmem:[%s7 + $0x550] sm:$0xff]
    %v1762 = vld [vmem:[%s7 + $0x558] sm:$0xff]
    %v1763 = vld [vmem:[%s7 + $0x560] sm:$0xff]
    %v1764 = vld [vmem:[%s7 + $0x568] sm:$0xff]
    %v1765 = vld [vmem:[%s7 + $0x570] sm:$0xff]
    %v1766 = vld [vmem:[%s7 + $0x578] sm:$0xff]
    %v1767 = vld [vmem:[%s7 + $0x580] sm:$0xff]
    %v1768 = vld [vmem:[%s7 + $0x588] sm:$0xff]
    %v1769 = vld [vmem:[%s7 + $0x590] sm:$0xff]
    %v1770 = vld [vmem:[%s7 + $0x598] sm:$0xff]
    %v1771 = vld [vmem:[%s7 + $0x5a0] sm:$0xff]
    %v1772 = vld [vmem:[%s7 + $0x5a8] sm:$0xff]
    %v1773 = vld [vmem:[%s7 + $0x5b0] sm:$0xff]
    %v1774 = vld [vmem:[%s7 + $0x5b8] sm:$0xff]
    %v1775 = vld [vmem:[%s7 + $0x5c0] sm:$0xff]
    %v1776 = vld [vmem:[%s7 + $0x5c8] sm:$0xff]
    %v1777 = vld [vmem:[%s7 + $0x5d0] sm:$0xff]
    %v1778 = vld [vmem:[%s7 + $0x5d8] sm:$0xff]
    %v1779 = vld [vmem:[%s7 + $0x5e0] sm:$0xff]
    %v1780 = vld [vmem:[%s7 + $0x5e8] sm:$0xff]
    %v1781 = vld [vmem:[%s7 + $0x5f0] sm:$0xff]
    %v1782 = vld [vmem:[%s7 + $0x5f8] sm:$0xff]
    %v1783 = vld [vmem:[%s7 + $0x600] sm:$0xff]
    %v1784 = vld [vmem:[%s7 + $0x608] sm:$0xff]
    %v1785 = vld [vmem:[%s7 + $0x610] sm:$0xff]
    %v1786 = vld [vmem:[%s7 + $0x618] sm:$0xff]
    %v1787 = vld [vmem:[%s7 + $0x620] sm:$0xff]
    %v1788 = vld [vmem:[%s7 + $0x628] sm:$0xff]
    %v1789 = vld [vmem:[%s7 + $0x630] sm:$0xff]
    %v1790 = vld [vmem:[%s7 + $0x638] sm:$0xff]
    %v1791 = vld [vmem:[%s7 + $0x640] sm:$0xff]
    %v1792 = vld [vmem:[%s7 + $0x648] sm:$0xff]
    %v1793 = vld [vmem:[%s7 + $0x650] sm:$0xff]
    %v1794 = vld [vmem:[%s7 + $0x658] sm:$0xff]
    %v1795 = vld [vmem:[%s7 + $0x660] sm:$0xff]
    %v1796 = vld [vmem:[%s7 + $0x668] sm:$0xff]
    %v1797 = vld [vmem:[%s7 + $0x670] sm:$0xff]
    %v1798 = vld [vmem:[%s7 + $0x678] sm:$0xff]
    %v1799 = vld [vmem:[%s7 + $0x680] sm:$0xff]
    %v1800 = vld [vmem:[%s7 + $0x688] sm:$0xff]
    %v1801 = vld [vmem:[%s7 + $0x690] sm:$0xff]
    %v1802 = vld [vmem:[%s7 + $0x698] sm:$0xff]
    %v1803 = vld [vmem:[%s7 + $0x6a0] sm:$0xff]
    %v1804 = vld [vmem:[%s7 + $0x6a8] sm:$0xff]
    %v1805 = vld [vmem:[%s7 + $0x6b0] sm:$0xff]
    %v1806 = vld [vmem:[%s7 + $0x6b8] sm:$0xff]
    %v1807 = vld [vmem:[%s7 + $0x6c0] sm:$0xff]
    %v1808 = vld [vmem:[%s7 + $0x6c8] sm:$0xff]
    %v1809 = vld [vmem:[%s7 + $0x6d0] sm:$0xff]
    %v1810 = vld [vmem:[%s7 + $0x6d8] sm:$0xff]
    %v1811 = vld [vmem:[%s7 + $0x6e0] sm:$0xff]
    %v1812 = vld [vmem:[%s7 + $0x6e8] sm:$0xff]
    %v1813 = vld [vmem:[%s7 + $0x6f0] sm:$0xff]
    %v1814 = vld [vmem:[%s7 + $0x6f8] sm:$0xff]
    %v1815 = vld [vmem:[%s7 + $0x700] sm:$0xff]
    %v1816 = vld [vmem:[%s7 + $0x708] sm:$0xff]
    %v1817 = vld [vmem:[%s7 + $0x710] sm:$0xff]
    %v1818 = vld [vmem:[%s7 + $0x718] sm:$0xff]
    %v1819 = vld [vmem:[%s7 + $0x720] sm:$0xff]
    %v1820 = vld [vmem:[%s7 + $0x728] sm:$0xff]
    %v1821 = vld [vmem:[%s7 + $0x730] sm:$0xff]
    %v1822 = vld [vmem:[%s7 + $0x738] sm:$0xff]
    %v1823 = vld [vmem:[%s7 + $0x740] sm:$0xff]
    %v1824 = vld [vmem:[%s7 + $0x748] sm:$0xff]
    %v1825 = vld [vmem:[%s7 + $0x750] sm:$0xff]
    %v1826 = vld [vmem:[%s7 + $0x758] sm:$0xff]
    %v1827 = vld [vmem:[%s7 + $0x760] sm:$0xff]
    %v1828 = vld [vmem:[%s7 + $0x768] sm:$0xff]
    %v1829 = vld [vmem:[%s7 + $0x770] sm:$0xff]
    %v1830 = vld [vmem:[%s7 + $0x778] sm:$0xff]
    %v1831 = vld [vmem:[%s7 + $0x780] sm:$0xff]
    %v1832 = vld [vmem:[%s7 + $0x788] sm:$0xff]
    %v1833 = vld [vmem:[%s7 + $0x790] sm:$0xff]
    %v1834 = vld [vmem:[%s7 + $0x798] sm:$0xff]
    %v1835 = vld [vmem:[%s7 + $0x7a0] sm:$0xff]
    %v1836 = vld [vmem:[%s7 + $0x7a8] sm:$0xff]
    %v1837 = vld [vmem:[%s7 + $0x7b0] sm:$0xff]
    %v1838 = vld [vmem:[%s7 + $0x7b8] sm:$0xff]
    %v1839 = vld [vmem:[%s7 + $0x7c0] sm:$0xff]
    %v1840 = vld [vmem:[%s7 + $0x7c8] sm:$0xff]
    %v1841 = vld [vmem:[%s7 + $0x7d0] sm:$0xff]
    %v1842 = vld [vmem:[%s7 + $0x7d8] sm:$0xff]
    %v1843 = vld [vmem:[%s7 + $0x7e0] sm:$0xff]
    %v1844 = vld [vmem:[%s7 + $0x7e8] sm:$0xff]
    %v1845 = vld [vmem:[%s7 + $0x7f0] sm:$0xff]
    %v1846 = vld [vmem:[%s7 + $0x7f8] sm:$0xff]
    %v1847 = vld [vmem:[%s7 + $0x800] sm:$0xff]
    %v1848 = vld [vmem:[%s7 + $0x808] sm:$0xff]
    %v1849 = vld [vmem:[%s7 + $0x810] sm:$0xff]
    %v1850 = vld [vmem:[%s7 + $0x818] sm:$0xff]
    %v1851 = vld [vmem:[%s7 + $0x820] sm:$0xff]
    %v1852 = vld [vmem:[%s7 + $0x828] sm:$0xff]
    %v1853 = vld [vmem:[%s7 + $0x830] sm:$0xff]
    %v1854 = vld [vmem:[%s7 + $0x838] sm:$0xff]
    %v1855 = vld [vmem:[%s7 + $0x840] sm:$0xff]
    %v1856 = vld [vmem:[%s7 + $0x848] sm:$0xff]
    %v1857 = vld [vmem:[%s7 + $0x850] sm:$0xff]
    %v1858 = vld [vmem:[%s7 + $0x858] sm:$0xff]
    %v1859 = vld [vmem:[%s7 + $0x860] sm:$0xff]
    %v1860 = vld [vmem:[%s7 + $0x868] sm:$0xff]
    %v1861 = vld [vmem:[%s7 + $0x870] sm:$0xff]
    %v1862 = vld [vmem:[%s7 + $0x878] sm:$0xff]
    %v1863 = vld [vmem:[%s7 + $0x880] sm:$0xff]
    %v1864 = vld [vmem:[%s7 + $0x888] sm:$0xff]
    %v1865 = vld [vmem:[%s7 + $0x890] sm:$0xff]
    %v1866 = vld [vmem:[%s7 + $0x898] sm:$0xff]
    %v1867 = vld [vmem:[%s7 + $0x8a0] sm:$0xff]
    %v1868 = vld [vmem:[%s7 + $0x8a8] sm:$0xff]
    %v1869 = vld [vmem:[%s7 + $0x8b0] sm:$0xff]
    %v1870 = vld [vmem:[%s7 + $0x8b8] sm:$0xff]
    %v1871 = vld [vmem:[%s7 + $0x8c0] sm:$0xff]
    %v1872 = vld [vmem:[%s7 + $0x8c8] sm:$0xff]
    %v1873 = vld [vmem:[%s7 + $0x8d0] sm:$0xff]
    %v1874 = vld [vmem:[%s7 + $0x8d8] sm:$0xff]
    %v1875 = vld [vmem:[%s7 + $0x8e0] sm:$0xff]
    %v1876 = vld [vmem:[%s7 + $0x8e8] sm:$0xff]
    %v1877 = vld [vmem:[%s7 + $0x8f0] sm:$0xff]
    %v1878 = vld [vmem:[%s7 + $0x8f8] sm:$0xff]
    %v1879 = vld [vmem:[%s7 + $0x900] sm:$0xff]
    %v1880 = vld [vmem:[%s7 + $0x908] sm:$0xff]
    %v1881 = vld [vmem:[%s7 + $0x910] sm:$0xff]
    %v1882 = vld [vmem:[%s7 + $0x918] sm:$0xff]
    %v1883 = vld [vmem:[%s7 + $0x920] sm:$0xff]
    %v1884 = vld [vmem:[%s7 + $0x928] sm:$0xff]
    %v1885 = vld [vmem:[%s7 + $0x930] sm:$0xff]
    %v1886 = vld [vmem:[%s7 + $0x938] sm:$0xff]
    %v1887 = vld [vmem:[%s7 + $0x940] sm:$0xff]
    %v1888 = vld [vmem:[%s7 + $0x948] sm:$0xff]
    %v1889 = vld [vmem:[%s7 + $0x950] sm:$0xff]
    %v1890 = vld [vmem:[%s7 + $0x958] sm:$0xff]
    %v1891 = vld [vmem:[%s7 + $0x960] sm:$0xff]
    %v1892 = vld [vmem:[%s7 + $0x968] sm:$0xff]
    %v1893 = vld [vmem:[%s7 + $0x970] sm:$0xff]
    %v1894 = vld [vmem:[%s7 + $0x978] sm:$0xff]
    %v1895 = vld [vmem:[%s7 + $0x980] sm:$0xff]
    %v1896 = vld [vmem:[%s7 + $0x988] sm:$0xff]
    %v1897 = vld [vmem:[%s7 + $0x990] sm:$0xff]
    %v1898 = vld [vmem:[%s7 + $0x998] sm:$0xff]
    %v1899 = vld [vmem:[%s7 + $0x9a0] sm:$0xff]
    %v1900 = vld [vmem:[%s7 + $0x9a8] sm:$0xff]
    %v1901 = vld [vmem:[%s7 + $0x9b0] sm:$0xff]
    %v1902 = vld [vmem:[%s7 + $0x9b8] sm:$0xff]
    %v1903 = vld [vmem:[%s7 + $0x9c0] sm:$0xff]
    %v1904 = vld [vmem:[%s7 + $0x9c8] sm:$0xff]
    %v1905 = vld [vmem:[%s7 + $0x9d0] sm:$0xff]
    %v1906 = vld [vmem:[%s7 + $0x9d8] sm:$0xff]
    %v1907 = vld [vmem:[%s7 + $0x9e0] sm:$0xff]
    %v1908 = vld [vmem:[%s7 + $0x9e8] sm:$0xff]
    %v1909 = vld [vmem:[%s7 + $0x9f0] sm:$0xff]
    %v1910 = vld [vmem:[%s7 + $0x9f8] sm:$0xff]
    %v1911 = vld [vmem:[%s7 + $0xa00] sm:$0xff]
    %v1912 = vld [vmem:[%s7 + $0xa08] sm:$0xff]
    %v1913 = vld [vmem:[%s7 + $0xa10] sm:$0xff]
    %v1914 = vld [vmem:[%s7 + $0xa18] sm:$0xff]
    %v1915 = vld [vmem:[%s7 + $0xa20] sm:$0xff]
    %v1916 = vld [vmem:[%s7 + $0xa28] sm:$0xff]
    %v1917 = vld [vmem:[%s7 + $0xa30] sm:$0xff]
    %v1918 = vld [vmem:[%s7 + $0xa38] sm:$0xff]
    %v1919 = vld [vmem:[%s7 + $0xa40] sm:$0xff]
    %v1920 = vld [vmem:[%s7 + $0xa48] sm:$0xff]
    %v1921 = vld [vmem:[%s7 + $0xa50] sm:$0xff]
    %v1922 = vld [vmem:[%s7 + $0xa58] sm:$0xff]
    %v1923 = vld [vmem:[%s7 + $0xa60] sm:$0xff]
    %v1924 = vld [vmem:[%s7 + $0xa68] sm:$0xff]
    %v1925 = vld [vmem:[%s7 + $0xa70] sm:$0xff]
    %v1926 = vld [vmem:[%s7 + $0xa78] sm:$0xff]
    %v1927 = vld [vmem:[%s7 + $0xa80] sm:$0xff]
    %v1928 = vld [vmem:[%s7 + $0xa88] sm:$0xff]
    %v1929 = vld [vmem:[%s7 + $0xa90] sm:$0xff]
    %v1930 = vld [vmem:[%s7 + $0xa98] sm:$0xff]
    %v1931 = vld [vmem:[%s7 + $0xaa0] sm:$0xff]
    %v1932 = vld [vmem:[%s7 + $0xaa8] sm:$0xff]
    %v1933 = vld [vmem:[%s7 + $0xab0] sm:$0xff]
    %v1934 = vld [vmem:[%s7 + $0xab8] sm:$0xff]
    %v1935 = vld [vmem:[%s7 + $0xac0] sm:$0xff]
    %v1936 = vld [vmem:[%s7 + $0xac8] sm:$0xff]
    %v1937 = vld [vmem:[%s7 + $0xad0] sm:$0xff]
    %v1938 = vld [vmem:[%s7 + $0xad8] sm:$0xff]
    %v1939 = vld [vmem:[%s7 + $0xae0] sm:$0xff]
    %v1940 = vld [vmem:[%s7 + $0xae8] sm:$0xff]
    %v1941 = vld [vmem:[%s7 + $0xaf0] sm:$0xff]
    %v1942 = vld [vmem:[%s7 + $0xaf8] sm:$0xff]
    %v1943 = vld [vmem:[%s7 + $0xb00] sm:$0xff]
    %v1944 = vld [vmem:[%s7 + $0xb08] sm:$0xff]
    %v1945 = vld [vmem:[%s7 + $0xb10] sm:$0xff]
    %v1946 = vld [vmem:[%s7 + $0xb18] sm:$0xff]
    %v1947 = vld [vmem:[%s7 + $0xb20] sm:$0xff]
    %v1948 = vld [vmem:[%s7 + $0xb28] sm:$0xff]
    %v1949 = vld [vmem:[%s7 + $0xb30] sm:$0xff]
    %v1950 = vld [vmem:[%s7 + $0xb38] sm:$0xff]
    %v1951 = vld [vmem:[%s7 + $0xb40] sm:$0xff]
    %v1952 = vld [vmem:[%s7 + $0xb48] sm:$0xff]
    %v1953 = vld [vmem:[%s7 + $0xb50] sm:$0xff]
    %v1954 = vld [vmem:[%s7 + $0xb58] sm:$0xff]
    %v1955 = vld [vmem:[%s7 + $0xb60] sm:$0xff]
    %v1956 = vld [vmem:[%s7 + $0xb68] sm:$0xff]
    %v1957 = vld [vmem:[%s7 + $0xb70] sm:$0xff]
    %v1958 = vld [vmem:[%s7 + $0xb78] sm:$0xff]
    %v1959 = vld [vmem:[%s7 + $0xb80] sm:$0xff]
    %v1960 = vld [vmem:[%s7 + $0xb88] sm:$0xff]
    %v1961 = vld [vmem:[%s7 + $0xb90] sm:$0xff]
    %v1962 = vld [vmem:[%s7 + $0xb98] sm:$0xff]
    %v1963 = vld [vmem:[%s7 + $0xba0] sm:$0xff]
    %v1964 = vld [vmem:[%s7 + $0xba8] sm:$0xff]
    %v1965 = vld [vmem:[%s7 + $0xbb0] sm:$0xff]
    %v1966 = vld [vmem:[%s7 + $0xbb8] sm:$0xff]
    %v1967 = vld [vmem:[%s7 + $0xbc0] sm:$0xff]
    %v1968 = vld [vmem:[%s7 + $0xbc8] sm:$0xff]
    %v1969 = vld [vmem:[%s7 + $0xbd0] sm:$0xff]
    %v1970 = vld [vmem:[%s7 + $0xbd8] sm:$0xff]
    %v1971 = vld [vmem:[%s7 + $0xbe0] sm:$0xff]
    %v1972 = vld [vmem:[%s7 + $0xbe8] sm:$0xff]
    %v1973 = vld [vmem:[%s7 + $0xbf0] sm:$0xff]
    %v1974 = vld [vmem:[%s7 + $0xbf8] sm:$0xff]
    %v1975 = vld [vmem:[%s7 + $0xc00] sm:$0xff]
    %v1976 = vld [vmem:[%s7 + $0xc08] sm:$0xff]
    %v1977 = vld [vmem:[%s7 + $0xc10] sm:$0xff]
    %v1978 = vld [vmem:[%s7 + $0xc18] sm:$0xff]
    %v1979 = vld [vmem:[%s7 + $0xc20] sm:$0xff]
    %v1980 = vld [vmem:[%s7 + $0xc28] sm:$0xff]
    %v1981 = vld [vmem:[%s7 + $0xc30] sm:$0xff]
    %v1982 = vld [vmem:[%s7 + $0xc38] sm:$0xff]
    %v1983 = vld [vmem:[%s7 + $0xc40] sm:$0xff]
    %v1984 = vld [vmem:[%s7 + $0xc48] sm:$0xff]
    %v1985 = vld [vmem:[%s7 + $0xc50] sm:$0xff]
    %v1986 = vld [vmem:[%s7 + $0xc58] sm:$0xff]
    %v1987 = vld [vmem:[%s7 + $0xc60] sm:$0xff]
    %v1988 = vld [vmem:[%s7 + $0xc68] sm:$0xff]
    %v1989 = vld [vmem:[%s7 + $0xc70] sm:$0xff]
    %v1990 = vld [vmem:[%s7 + $0xc78] sm:$0xff]
    %v1991 = vld [vmem:[%s7 + $0xc80] sm:$0xff]
    %v1992 = vld [vmem:[%s7 + $0xc88] sm:$0xff]
    %v1993 = vld [vmem:[%s7 + $0xc90] sm:$0xff]
    %v1994 = vld [vmem:[%s7 + $0xc98] sm:$0xff]
    %v1995 = vld [vmem:[%s7 + $0xca0] sm:$0xff]
    %v1996 = vld [vmem:[%s7 + $0xca8] sm:$0xff]
    %v1997 = vld [vmem:[%s7 + $0xcb0] sm:$0xff]
    %v1998 = vld [vmem:[%s7 + $0xcb8] sm:$0xff]
    %v1999 = vld [vmem:[%s7 + $0xcc0] sm:$0xff]
    %v2000 = vld [vmem:[%s7 + $0xcc8] sm:$0xff]
    %v2001 = vld [vmem:[%s7 + $0xcd0] sm:$0xff]
    %v2002 = vld [vmem:[%s7 + $0xcd8] sm:$0xff]
    %v2003 = vld [vmem:[%s7 + $0xce0] sm:$0xff]
    %v2004 = vld [vmem:[%s7 + $0xce8] sm:$0xff]
    %v2005 = vld [vmem:[%s7 + $0xcf0] sm:$0xff]
    %v2006 = vld [vmem:[%s7 + $0xcf8] sm:$0xff]
    %v2007 = vld [vmem:[%s7 + $0xd00] sm:$0xff]
    %v2008 = vld [vmem:[%s7 + $0xd08] sm:$0xff]
    %v2009 = vld [vmem:[%s7 + $0xd10] sm:$0xff]
    %v2010 = vld [vmem:[%s7 + $0xd18] sm:$0xff]
    %v2011 = vld [vmem:[%s7 + $0xd20] sm:$0xff]
    %v2012 = vld [vmem:[%s7 + $0xd28] sm:$0xff]
    %v2013 = vld [vmem:[%s7 + $0xd30] sm:$0xff]
    %v2014 = vld [vmem:[%s7 + $0xd38] sm:$0xff]
    %v2015 = vld [vmem:[%s7 + $0xd40] sm:$0xff]
    %v2016 = vld [vmem:[%s7 + $0xd48] sm:$0xff]
    %v2017 = vld [vmem:[%s7 + $0xd50] sm:$0xff]
    %v2018 = vld [vmem:[%s7 + $0xd58] sm:$0xff]
    %v2019 = vld [vmem:[%s7 + $0xd60] sm:$0xff]
    %v2020 = vld [vmem:[%s7 + $0xd68] sm:$0xff]
    %v2021 = vld [vmem:[%s7 + $0xd70] sm:$0xff]
    %v2022 = vld [vmem:[%s7 + $0xd78] sm:$0xff]
    %v2023 = vld [vmem:[%s7 + $0xd80] sm:$0xff]
    %v2024 = vld [vmem:[%s7 + $0xd88] sm:$0xff]
    %v2025 = vld [vmem:[%s7 + $0xd90] sm:$0xff]
    %v2026 = vld [vmem:[%s7 + $0xd98] sm:$0xff]
    %v2027 = vld [vmem:[%s7 + $0xda0] sm:$0xff]
    %v2028 = vld [vmem:[%s7 + $0xda8] sm:$0xff]
    %v2029 = vld [vmem:[%s7 + $0xdb0] sm:$0xff]
    %v2030 = vld [vmem:[%s7 + $0xdb8] sm:$0xff]
    %v2031 = vld [vmem:[%s7 + $0xdc0] sm:$0xff]
    %v2032 = vld [vmem:[%s7 + $0xdc8] sm:$0xff]
    %v2033 = vld [vmem:[%s7 + $0xdd0] sm:$0xff]
    %v2034 = vld [vmem:[%s7 + $0xdd8] sm:$0xff]
    %v2035 = vld [vmem:[%s7 + $0xde0] sm:$0xff]
    %v2036 = vld [vmem:[%s7 + $0xde8] sm:$0xff]
    %v2037 = vld [vmem:[%s7 + $0xdf0] sm:$0xff]
    %v2038 = vld [vmem:[%s7 + $0xdf8] sm:$0xff]
    %v2039 = vld [vmem:[%s7 + $0xe00] sm:$0xff]
    %v2040 = vld [vmem:[%s7 + $0xe08] sm:$0xff]
    %v2041 = vld [vmem:[%s7 + $0xe10] sm:$0xff]
    %v2042 = vld [vmem:[%s7 + $0xe18] sm:$0xff]
    %v2043 = vld [vmem:[%s7 + $0xe20] sm:$0xff]
    %v2044 = vld [vmem:[%s7 + $0xe28] sm:$0xff]
    %v2045 = vld [vmem:[%s7 + $0xe30] sm:$0xff]
    %v2046 = vld [vmem:[%s7 + $0xe38] sm:$0xff]
    %v2047 = vld [vmem:[%s7 + $0xe40] sm:$0xff]
    %v2048 = vld [vmem:[%s7 + $0xe48] sm:$0xff]
    %v2049 = vld [vmem:[%s7 + $0xe50] sm:$0xff]
    %v2050 = vld [vmem:[%s7 + $0xe58] sm:$0xff]
    %v2051 = vld [vmem:[%s7 + $0xe60] sm:$0xff]
    %v2052 = vld [vmem:[%s7 + $0xe68] sm:$0xff]
    %v2053 = vld [vmem:[%s7 + $0xe70] sm:$0xff]
    %v2054 = vld [vmem:[%s7 + $0xe78] sm:$0xff]
    %v2055 = vld [vmem:[%s7 + $0xe80] sm:$0xff]
    %v2056 = vld [vmem:[%s7 + $0xe88] sm:$0xff]
    %v2057 = vld [vmem:[%s7 + $0xe90] sm:$0xff]
    %v2058 = vld [vmem:[%s7 + $0xe98] sm:$0xff]
    %v2059 = vld [vmem:[%s7 + $0xea0] sm:$0xff]
    %v2060 = vld [vmem:[%s7 + $0xea8] sm:$0xff]
    %v2061 = vld [vmem:[%s7 + $0xeb0] sm:$0xff]
    %v2062 = vld [vmem:[%s7 + $0xeb8] sm:$0xff]
    %v2063 = vld [vmem:[%s7 + $0xec0] sm:$0xff]
    %v2064 = vld [vmem:[%s7 + $0xec8] sm:$0xff]
    %v2065 = vld [vmem:[%s7 + $0xed0] sm:$0xff]
    %v2066 = vld [vmem:[%s7 + $0xed8] sm:$0xff]
    %v2067 = vld [vmem:[%s7 + $0xee0] sm:$0xff]
    %v2068 = vld [vmem:[%s7 + $0xee8] sm:$0xff]
    %v2069 = vld [vmem:[%s7 + $0xef0] sm:$0xff]
    %v2070 = vld [vmem:[%s7 + $0xef8] sm:$0xff]
    %v2071 = vld [vmem:[%s7 + $0xf00] sm:$0xff]
    %v2072 = vld [vmem:[%s7 + $0xf08] sm:$0xff]
    %v2073 = vld [vmem:[%s7 + $0xf10] sm:$0xff]
    %v2074 = vld [vmem:[%s7 + $0xf18] sm:$0xff]
    %v2075 = vld [vmem:[%s7 + $0xf20] sm:$0xff]
    %v2076 = vld [vmem:[%s7 + $0xf28] sm:$0xff]
    %v2077 = vld [vmem:[%s7 + $0xf30] sm:$0xff]
    %v2078 = vld [vmem:[%s7 + $0xf38] sm:$0xff]
    %v2079 = vld [vmem:[%s7 + $0xf40] sm:$0xff]
    %v2080 = vld [vmem:[%s7 + $0xf48] sm:$0xff]
    %v2081 = vld [vmem:[%s7 + $0xf50] sm:$0xff]
    %v2082 = vld [vmem:[%s7 + $0xf58] sm:$0xff]
    %v2083 = vld [vmem:[%s7 + $0xf60] sm:$0xff]
    %v2084 = vld [vmem:[%s7 + $0xf68] sm:$0xff]
    %v2085 = vld [vmem:[%s7 + $0xf70] sm:$0xff]
    %v2086 = vld [vmem:[%s7 + $0xf78] sm:$0xff]
    %v2087 = vld [vmem:[%s7 + $0xf80] sm:$0xff]
    %v2088 = vld [vmem:[%s7 + $0xf88] sm:$0xff]
    %v2089 = vld [vmem:[%s7 + $0xf90] sm:$0xff]
    %v2090 = vld [vmem:[%s7 + $0xf98] sm:$0xff]
    %v2091 = vld [vmem:[%s7 + $0xfa0] sm:$0xff]
    %v2092 = vld [vmem:[%s7 + $0xfa8] sm:$0xff]
    %v2093 = vld [vmem:[%s7 + $0xfb0] sm:$0xff]
    %v2094 = vld [vmem:[%s7 + $0xfb8] sm:$0xff]
    %v2095 = vld [vmem:[%s7 + $0xfc0] sm:$0xff]
    %v2096 = vld [vmem:[%s7 + $0xfc8] sm:$0xff]
    %v2097 = vld [vmem:[%s7 + $0xfd0] sm:$0xff]
    %v2098 = vld [vmem:[%s7 + $0xfd8] sm:$0xff]
    %v2099 = vld [vmem:[%s7 + $0xfe0] sm:$0xff]
    %v2100 = vld [vmem:[%s7 + $0xfe8] sm:$0xff]
    %v2101 = vld [vmem:[%s7 + $0xff0] sm:$0xff]
    %v2102 = vld [vmem:[%s7 + $0xff8] sm:$0xff]
    %v2103 = vld [vmem:[%s7 + $0x1000] sm:$0xff]
    %v2104 = vld [vmem:[%s7 + $0x1008] sm:$0xff]
    %v2105 = vld [vmem:[%s7 + $0x1010] sm:$0xff]
    %v2106 = vld [vmem:[%s7 + $0x1018] sm:$0xff]
    %v2107 = vld [vmem:[%s7 + $0x1020] sm:$0xff]
    %v2108 = vld [vmem:[%s7 + $0x1028] sm:$0xff]
    %v2109 = vld [vmem:[%s7 + $0x1030] sm:$0xff]
    %v2110 = vld [vmem:[%s7 + $0x1038] sm:$0xff]
    %v2111 = vld [vmem:[%s7 + $0x1040] sm:$0xff]
    %v2112 = vld [vmem:[%s7 + $0x1048] sm:$0xff]
    %v2113 = vld [vmem:[%s7 + $0x1050] sm:$0xff]
    %v2114 = vld [vmem:[%s7 + $0x1058] sm:$0xff]
    %v2115 = vld [vmem:[%s7 + $0x1060] sm:$0xff]
    %v2116 = vld [vmem:[%s7 + $0x1068] sm:$0xff]
    %v2117 = vld [vmem:[%s7 + $0x1070] sm:$0xff]
    %v2118 = vld [vmem:[%s7 + $0x1078] sm:$0xff]
    %v2119 = vld [vmem:[%s7 + $0x1080] sm:$0xff]
    %v2120 = vld [vmem:[%s7 + $0x1088] sm:$0xff]
    %v2121 = vld [vmem:[%s7 + $0x1090] sm:$0xff]
    %v2122 = vld [vmem:[%s7 + $0x1098] sm:$0xff]
    %v2123 = vld [vmem:[%s7 + $0x10a0] sm:$0xff]
    %v2124 = vld [vmem:[%s7 + $0x10a8] sm:$0xff]
    %v2125 = vld [vmem:[%s7 + $0x10b0] sm:$0xff]
    %v2126 = vld [vmem:[%s7 + $0x10b8] sm:$0xff]
    %v2127 = vld [vmem:[%s7 + $0x10c0] sm:$0xff]
    %v2128 = vld [vmem:[%s7 + $0x10c8] sm:$0xff]
    %v2129 = vld [vmem:[%s7 + $0x10d0] sm:$0xff]
    %v2130 = vld [vmem:[%s7 + $0x10d8] sm:$0xff]
    %v2131 = vld [vmem:[%s7 + $0x10e0] sm:$0xff]
    %v2132 = vld [vmem:[%s7 + $0x10e8] sm:$0xff]
    %v2133 = vld [vmem:[%s7 + $0x10f0] sm:$0xff]
    %v2134 = vld [vmem:[%s7 + $0x10f8] sm:$0xff]
    %v2135 = vld [vmem:[%s7 + $0x1100] sm:$0xff]
    %v2136 = vld [vmem:[%s7 + $0x1108] sm:$0xff]
    %v2137 = vld [vmem:[%s7 + $0x1110] sm:$0xff]
    %v2138 = vld [vmem:[%s7 + $0x1118] sm:$0xff]
    %v2139 = vld [vmem:[%s7 + $0x1120] sm:$0xff]
    %v2140 = vld [vmem:[%s7 + $0x1128] sm:$0xff]
    %v2141 = vld [vmem:[%s7 + $0x1130] sm:$0xff]
    %v2142 = vld [vmem:[%s7 + $0x1138] sm:$0xff]
    %v2143 = vld [vmem:[%s7 + $0x1140] sm:$0xff]
    %v2144 = vld [vmem:[%s7 + $0x1148] sm:$0xff]
    %v2145 = vld [vmem:[%s7 + $0x1150] sm:$0xff]
    %v2146 = vld [vmem:[%s7 + $0x1158] sm:$0xff]
    %v2147 = vld [vmem:[%s7 + $0x1160] sm:$0xff]
    %v2148 = vld [vmem:[%s7 + $0x1168] sm:$0xff]
    %v2149 = vld [vmem:[%s7 + $0x1170] sm:$0xff]
    %v2150 = vld [vmem:[%s7 + $0x1178] sm:$0xff]
    %v2151 = vld [vmem:[%s7 + $0x1180] sm:$0xff]
    %v2152 = vld [vmem:[%s7 + $0x1188] sm:$0xff]
    %v2153 = vld [vmem:[%s7 + $0x1190] sm:$0xff]
    %v2154 = vld [vmem:[%s7 + $0x1198] sm:$0xff]
    %v2155 = vld [vmem:[%s7 + $0x11a0] sm:$0xff]
    %v2156 = vld [vmem:[%s7 + $0x11a8] sm:$0xff]
    %v2157 = vld [vmem:[%s7 + $0x11b0] sm:$0xff]
    %v2158 = vld [vmem:[%s7 + $0x11b8] sm:$0xff]
    %v2159 = vld [vmem:[%s7 + $0x11c0] sm:$0xff]
    %v2160 = vld [vmem:[%s7 + $0x11c8] sm:$0xff]
    %v2161 = vld [vmem:[%s7 + $0x11d0] sm:$0xff]
    %v2162 = vld [vmem:[%s7 + $0x11d8] sm:$0xff]
    %v2163 = vld [vmem:[%s7 + $0x11e0] sm:$0xff]
    %v2164 = vld [vmem:[%s7 + $0x11e8] sm:$0xff]
    %v2165 = vld [vmem:[%s7 + $0x11f0] sm:$0xff]
    %v2166 = vld [vmem:[%s7 + $0x11f8] sm:$0xff]
    %v2167 = vld [vmem:[%s8] sm:$0x1]
    %v2169 = vperm.slane %v2167, 0
    %2171 = vmatpush.msra.mxu0 %v1606
    %2172 = vmatpush.msra.mxu0 %v1605
    %2173 = vmatpush.msra.mxu0 %v1604
    %2174 = vmatpush.msra.mxu0 %v1603
    %2175 = vmatpush.msra.mxu0 %v1602
    %2176 = vmatpush.msra.mxu0 %v1601
    %2177 = vmatpush.msra.mxu0 %v1600
    %2178 = vmatpush.msra.mxu0 %v1599
    %2179 = vmatpush.msra.mxu0 %v1598
    %2180 = vmatpush.msra.mxu0 %v1597
    %2181 = vmatpush.msra.mxu0 %v1596
    %2182 = vmatpush.msra.mxu0 %v1595
    %2183 = vmatpush.msra.mxu0 %v1594
    %2184 = vmatpush.msra.mxu0 %v1593
    %2185 = vmatpush.msra.mxu0 %v1592
    %2186 = vmatpush.msra.mxu0 %v1591
    %2187 = vmatmul.f32.gmra.mxu0 %v1444
    %v2188 = vpop.f32.mrf.mxu0
    %v2189 = vadd.f32 %v2169, %v2188
    %2190 = vdwg.mxu0
    %2191 = vmatpush.msra.mxu0 %v1622
    %2192 = vmatpush.msra.mxu0 %v1621
    %2193 = vmatpush.msra.mxu0 %v1620
    %2194 = vmatpush.msra.mxu0 %v1619
    %2195 = vmatpush.msra.mxu0 %v1618
    %2196 = vmatpush.msra.mxu0 %v1617
    %2197 = vmatpush.msra.mxu0 %v1616
    %2198 = vmatpush.msra.mxu0 %v1615
    %2199 = vmatpush.msra.mxu0 %v1614
    %2200 = vmatpush.msra.mxu0 %v1613
    %2201 = vmatpush.msra.mxu0 %v1612
    %2202 = vmatpush.msra.mxu0 %v1611
    %2203 = vmatpush.msra.mxu0 %v1610
    %2204 = vmatpush.msra.mxu0 %v1609
    %2205 = vmatpush.msra.mxu0 %v1608
    %2206 = vmatpush.msra.mxu0 %v1607
    %2207 = vmatmul.f32.gmra.mxu0 %v1445
    %v2208 = vpop.f32.mrf.mxu0
    %v2209 = vadd.f32 %v2189, %v2208
    %2210 = vdwg.mxu0
    %2211 = vmatpush.msra.mxu0 %v1638
    %2212 = vmatpush.msra.mxu0 %v1637
    %2213 = vmatpush.msra.mxu0 %v1636
    %2214 = vmatpush.msra.mxu0 %v1635
    %2215 = vmatpush.msra.mxu0 %v1634
    %2216 = vmatpush.msra.mxu0 %v1633
    %2217 = vmatpush.msra.mxu0 %v1632
    %2218 = vmatpush.msra.mxu0 %v1631
    %2219 = vmatpush.msra.mxu0 %v1630
    %2220 = vmatpush.msra.mxu0 %v1629
    %2221 = vmatpush.msra.mxu0 %v1628
    %2222 = vmatpush.msra.mxu0 %v1627
    %2223 = vmatpush.msra.mxu0 %v1626
    %2224 = vmatpush.msra.mxu0 %v1625
    %2225 = vmatpush.msra.mxu0 %v1624
    %2226 = vmatpush.msra.mxu0 %v1623
    %2227 = vmatmul.f32.gmra.mxu0 %v1446
    %v2228 = vpop.f32.mrf.mxu0
    %v2229 = vadd.f32 %v2209, %v2228
    %2230 = vdwg.mxu0
    %2231 = vmatpush.msra.mxu0 %v1654
    %2232 = vmatpush.msra.mxu0 %v1653
    %2233 = vmatpush.msra.mxu0 %v1652
    %2234 = vmatpush.msra.mxu0 %v1651
    %2235 = vmatpush.msra.mxu0 %v1650
    %2236 = vmatpush.msra.mxu0 %v1649
    %2237 = vmatpush.msra.mxu0 %v1648
    %2238 = vmatpush.msra.mxu0 %v1647
    %2239 = vmatpush.msra.mxu0 %v1646
    %2240 = vmatpush.msra.mxu0 %v1645
    %2241 = vmatpush.msra.mxu0 %v1644
    %2242 = vmatpush.msra.mxu0 %v1643
    %2243 = vmatpush.msra.mxu0 %v1642
    %2244 = vmatpush.msra.mxu0 %v1641
    %2245 = vmatpush.msra.mxu0 %v1640
    %2246 = vmatpush.msra.mxu0 %v1639
    %2247 = vmatmul.f32.gmra.mxu0 %v1447
    %v2248 = vpop.f32.mrf.mxu0
    %v2249 = vadd.f32 %v2229, %v2248
    %2250 = vdwg.mxu0
    %2251 = vmatpush.msra.mxu0 %v1670
    %2252 = vmatpush.msra.mxu0 %v1669
    %2253 = vmatpush.msra.mxu0 %v1668
    %2254 = vmatpush.msra.mxu0 %v1667
    %2255 = vmatpush.msra.mxu0 %v1666
    %2256 = vmatpush.msra.mxu0 %v1665
    %2257 = vmatpush.msra.mxu0 %v1664
    %2258 = vmatpush.msra.mxu0 %v1663
    %2259 = vmatpush.msra.mxu0 %v1662
    %2260 = vmatpush.msra.mxu0 %v1661
    %2261 = vmatpush.msra.mxu0 %v1660
    %2262 = vmatpush.msra.mxu0 %v1659
    %2263 = vmatpush.msra.mxu0 %v1658
    %2264 = vmatpush.msra.mxu0 %v1657
    %2265 = vmatpush.msra.mxu0 %v1656
    %2266 = vmatpush.msra.mxu0 %v1655
    %2267 = vmatmul.f32.gmra.mxu0 %v1448
    %v2268 = vpop.f32.mrf.mxu0
    %v2269 = vadd.f32 %v2249, %v2268
    %2270 = vdwg.mxu0
    %2271 = vmatpush.msra.mxu0 %v1686
    %2272 = vmatpush.msra.mxu0 %v1685
    %2273 = vmatpush.msra.mxu0 %v1684
    %2274 = vmatpush.msra.mxu0 %v1683
    %2275 = vmatpush.msra.mxu0 %v1682
    %2276 = vmatpush.msra.mxu0 %v1681
    %2277 = vmatpush.msra.mxu0 %v1680
    %2278 = vmatpush.msra.mxu0 %v1679
    %2279 = vmatpush.msra.mxu0 %v1678
    %2280 = vmatpush.msra.mxu0 %v1677
    %2281 = vmatpush.msra.mxu0 %v1676
    %2282 = vmatpush.msra.mxu0 %v1675
    %2283 = vmatpush.msra.mxu0 %v1674
    %2284 = vmatpush.msra.mxu0 %v1673
    %2285 = vmatpush.msra.mxu0 %v1672
    %2286 = vmatpush.msra.mxu0 %v1671
    %2287 = vmatmul.f32.gmra.mxu0 %v1449
    %v2288 = vpop.f32.mrf.mxu0
    %v2289 = vadd.f32 %v2269, %v2288
    %2290 = vdwg.mxu0
    %2291 = vmatpush.msra.mxu0 %v1702
    %2292 = vmatpush.msra.mxu0 %v1701
    %2293 = vmatpush.msra.mxu0 %v1700
    %2294 = vmatpush.msra.mxu0 %v1699
    %2295 = vmatpush.msra.mxu0 %v1698
    %2296 = vmatpush.msra.mxu0 %v1697
    %2297 = vmatpush.msra.mxu0 %v1696
    %2298 = vmatpush.msra.mxu0 %v1695
    %2299 = vmatpush.msra.mxu0 %v1694
    %2300 = vmatpush.msra.mxu0 %v1693
    %2301 = vmatpush.msra.mxu0 %v1692
    %2302 = vmatpush.msra.mxu0 %v1691
    %2303 = vmatpush.msra.mxu0 %v1690
    %2304 = vmatpush.msra.mxu0 %v1689
    %2305 = vmatpush.msra.mxu0 %v1688
    %2306 = vmatpush.msra.mxu0 %v1687
    %2307 = vmatmul.f32.gmra.mxu0 %v1450
    %v2308 = vpop.f32.mrf.mxu0
    %v2309 = vadd.f32 %v2289, %v2308
    %2310 = vdwg.mxu0
    %2311 = vmatpush.msra.mxu0 %v1718
    %2312 = vmatpush.msra.mxu0 %v1717
    %2313 = vmatpush.msra.mxu0 %v1716
    %2314 = vmatpush.msra.mxu0 %v1715
    %2315 = vmatpush.msra.mxu0 %v1714
    %2316 = vmatpush.msra.mxu0 %v1713
    %2317 = vmatpush.msra.mxu0 %v1712
    %2318 = vmatpush.msra.mxu0 %v1711
    %2319 = vmatpush.msra.mxu0 %v1710
    %2320 = vmatpush.msra.mxu0 %v1709
    %2321 = vmatpush.msra.mxu0 %v1708
    %2322 = vmatpush.msra.mxu0 %v1707
    %2323 = vmatpush.msra.mxu0 %v1706
    %2324 = vmatpush.msra.mxu0 %v1705
    %2325 = vmatpush.msra.mxu0 %v1704
    %2326 = vmatpush.msra.mxu0 %v1703
    %2327 = vmatmul.f32.gmra.mxu0 %v1451
    %v2328 = vpop.f32.mrf.mxu0
    %v2329 = vadd.f32 %v2309, %v2328
    %2330 = vdwg.mxu0
    %2331 = vmatpush.msra.mxu0 %v1734
    %2332 = vmatpush.msra.mxu0 %v1733
    %2333 = vmatpush.msra.mxu0 %v1732
    %2334 = vmatpush.msra.mxu0 %v1731
    %2335 = vmatpush.msra.mxu0 %v1730
    %2336 = vmatpush.msra.mxu0 %v1729
    %2337 = vmatpush.msra.mxu0 %v1728
    %2338 = vmatpush.msra.mxu0 %v1727
    %2339 = vmatpush.msra.mxu0 %v1726
    %2340 = vmatpush.msra.mxu0 %v1725
    %2341 = vmatpush.msra.mxu0 %v1724
    %2342 = vmatpush.msra.mxu0 %v1723
    %2343 = vmatpush.msra.mxu0 %v1722
    %2344 = vmatpush.msra.mxu0 %v1721
    %2345 = vmatpush.msra.mxu0 %v1720
    %2346 = vmatpush.msra.mxu0 %v1719
    %2347 = vmatmul.f32.gmra.mxu0 %v1452
    %v2348 = vpop.f32.mrf.mxu0
    %v2349 = vadd.f32 %v2329, %v2348
    %2350 = vdwg.mxu0
    %2351 = vmatpush.msra.mxu0 %v1750
    %2352 = vmatpush.msra.mxu0 %v1749
    %2353 = vmatpush.msra.mxu0 %v1748
    %2354 = vmatpush.msra.mxu0 %v1747
    %2355 = vmatpush.msra.mxu0 %v1746
    %2356 = vmatpush.msra.mxu0 %v1745
    %2357 = vmatpush.msra.mxu0 %v1744
    %2358 = vmatpush.msra.mxu0 %v1743
    %2359 = vmatpush.msra.mxu0 %v1742
    %2360 = vmatpush.msra.mxu0 %v1741
    %2361 = vmatpush.msra.mxu0 %v1740
    %2362 = vmatpush.msra.mxu0 %v1739
    %2363 = vmatpush.msra.mxu0 %v1738
    %2364 = vmatpush.msra.mxu0 %v1737
    %2365 = vmatpush.msra.mxu0 %v1736
    %2366 = vmatpush.msra.mxu0 %v1735
    %2367 = vmatmul.f32.gmra.mxu0 %v1453
    %v2368 = vpop.f32.mrf.mxu0
    %v2369 = vadd.f32 %v2349, %v2368
    %2370 = vdwg.mxu0
    %2371 = vmatpush.msra.mxu0 %v1766
    %2372 = vmatpush.msra.mxu0 %v1765
    %2373 = vmatpush.msra.mxu0 %v1764
    %2374 = vmatpush.msra.mxu0 %v1763
    %2375 = vmatpush.msra.mxu0 %v1762
    %2376 = vmatpush.msra.mxu0 %v1761
    %2377 = vmatpush.msra.mxu0 %v1760
    %2378 = vmatpush.msra.mxu0 %v1759
    %2379 = vmatpush.msra.mxu0 %v1758
    %2380 = vmatpush.msra.mxu0 %v1757
    %2381 = vmatpush.msra.mxu0 %v1756
    %2382 = vmatpush.msra.mxu0 %v1755
    %2383 = vmatpush.msra.mxu0 %v1754
    %2384 = vmatpush.msra.mxu0 %v1753
    %2385 = vmatpush.msra.mxu0 %v1752
    %2386 = vmatpush.msra.mxu0 %v1751
    %2387 = vmatmul.f32.gmra.mxu0 %v1454
    %v2388 = vpop.f32.mrf.mxu0
    %v2389 = vadd.f32 %v2369, %v2388
    %2390 = vdwg.mxu0
    %2391 = vmatpush.msra.mxu0 %v1782
    %2392 = vmatpush.msra.mxu0 %v1781
    %2393 = vmatpush.msra.mxu0 %v1780
    %2394 = vmatpush.msra.mxu0 %v1779
    %2395 = vmatpush.msra.mxu0 %v1778
    %2396 = vmatpush.msra.mxu0 %v1777
    %2397 = vmatpush.msra.mxu0 %v1776
    %2398 = vmatpush.msra.mxu0 %v1775
    %2399 = vmatpush.msra.mxu0 %v1774
    %2400 = vmatpush.msra.mxu0 %v1773
    %2401 = vmatpush.msra.mxu0 %v1772
    %2402 = vmatpush.msra.mxu0 %v1771
    %2403 = vmatpush.msra.mxu0 %v1770
    %2404 = vmatpush.msra.mxu0 %v1769
    %2405 = vmatpush.msra.mxu0 %v1768
    %2406 = vmatpush.msra.mxu0 %v1767
    %2407 = vmatmul.f32.gmra.mxu0 %v1455
    %v2408 = vpop.f32.mrf.mxu0
    %v2409 = vadd.f32 %v2389, %v2408
    %2410 = vdwg.mxu0
    %2411 = vmatpush.msra.mxu0 %v1798
    %2412 = vmatpush.msra.mxu0 %v1797
    %2413 = vmatpush.msra.mxu0 %v1796
    %2414 = vmatpush.msra.mxu0 %v1795
    %2415 = vmatpush.msra.mxu0 %v1794
    %2416 = vmatpush.msra.mxu0 %v1793
    %2417 = vmatpush.msra.mxu0 %v1792
    %2418 = vmatpush.msra.mxu0 %v1791
    %2419 = vmatpush.msra.mxu0 %v1790
    %2420 = vmatpush.msra.mxu0 %v1789
    %2421 = vmatpush.msra.mxu0 %v1788
    %2422 = vmatpush.msra.mxu0 %v1787
    %2423 = vmatpush.msra.mxu0 %v1786
    %2424 = vmatpush.msra.mxu0 %v1785
    %2425 = vmatpush.msra.mxu0 %v1784
    %2426 = vmatpush.msra.mxu0 %v1783
    %2427 = vmatmul.f32.gmra.mxu0 %v1456
    %v2428 = vpop.f32.mrf.mxu0
    %v2429 = vadd.f32 %v2409, %v2428
    %2430 = vdwg.mxu0
    %2431 = vmatpush.msra.mxu0 %v1814
    %2432 = vmatpush.msra.mxu0 %v1813
    %2433 = vmatpush.msra.mxu0 %v1812
    %2434 = vmatpush.msra.mxu0 %v1811
    %2435 = vmatpush.msra.mxu0 %v1810
    %2436 = vmatpush.msra.mxu0 %v1809
    %2437 = vmatpush.msra.mxu0 %v1808
    %2438 = vmatpush.msra.mxu0 %v1807
    %2439 = vmatpush.msra.mxu0 %v1806
    %2440 = vmatpush.msra.mxu0 %v1805
    %2441 = vmatpush.msra.mxu0 %v1804
    %2442 = vmatpush.msra.mxu0 %v1803
    %2443 = vmatpush.msra.mxu0 %v1802
    %2444 = vmatpush.msra.mxu0 %v1801
    %2445 = vmatpush.msra.mxu0 %v1800
    %2446 = vmatpush.msra.mxu0 %v1799
    %2447 = vmatmul.f32.gmra.mxu0 %v1457
    %v2448 = vpop.f32.mrf.mxu0
    %v2449 = vadd.f32 %v2429, %v2448
    %2450 = vdwg.mxu0
    %2451 = vmatpush.msra.mxu0 %v1830
    %2452 = vmatpush.msra.mxu0 %v1829
    %2453 = vmatpush.msra.mxu0 %v1828
    %2454 = vmatpush.msra.mxu0 %v1827
    %2455 = vmatpush.msra.mxu0 %v1826
    %2456 = vmatpush.msra.mxu0 %v1825
    %2457 = vmatpush.msra.mxu0 %v1824
    %2458 = vmatpush.msra.mxu0 %v1823
    %2459 = vmatpush.msra.mxu0 %v1822
    %2460 = vmatpush.msra.mxu0 %v1821
    %2461 = vmatpush.msra.mxu0 %v1820
    %2462 = vmatpush.msra.mxu0 %v1819
    %2463 = vmatpush.msra.mxu0 %v1818
    %2464 = vmatpush.msra.mxu0 %v1817
    %2465 = vmatpush.msra.mxu0 %v1816
    %2466 = vmatpush.msra.mxu0 %v1815
    %2467 = vmatmul.f32.gmra.mxu0 %v1458
    %v2468 = vpop.f32.mrf.mxu0
    %v2469 = vadd.f32 %v2449, %v2468
    %2470 = vdwg.mxu0
    %2471 = vmatpush.msra.mxu0 %v1846
    %2472 = vmatpush.msra.mxu0 %v1845
    %2473 = vmatpush.msra.mxu0 %v1844
    %2474 = vmatpush.msra.mxu0 %v1843
    %2475 = vmatpush.msra.mxu0 %v1842
    %2476 = vmatpush.msra.mxu0 %v1841
    %2477 = vmatpush.msra.mxu0 %v1840
    %2478 = vmatpush.msra.mxu0 %v1839
    %2479 = vmatpush.msra.mxu0 %v1838
    %2480 = vmatpush.msra.mxu0 %v1837
    %2481 = vmatpush.msra.mxu0 %v1836
    %2482 = vmatpush.msra.mxu0 %v1835
    %2483 = vmatpush.msra.mxu0 %v1834
    %2484 = vmatpush.msra.mxu0 %v1833
    %2485 = vmatpush.msra.mxu0 %v1832
    %2486 = vmatpush.msra.mxu0 %v1831
    %2487 = vmatmul.f32.gmra.mxu0 %v1459
    %v2488 = vpop.f32.mrf.mxu0
    %v2489 = vadd.f32 %v2469, %v2488
    %2490 = vdwg.mxu0
    %2491 = vmatpush.msra.mxu0 %v1862
    %2492 = vmatpush.msra.mxu0 %v1861
    %2493 = vmatpush.msra.mxu0 %v1860
    %2494 = vmatpush.msra.mxu0 %v1859
    %2495 = vmatpush.msra.mxu0 %v1858
    %2496 = vmatpush.msra.mxu0 %v1857
    %2497 = vmatpush.msra.mxu0 %v1856
    %2498 = vmatpush.msra.mxu0 %v1855
    %2499 = vmatpush.msra.mxu0 %v1854
    %2500 = vmatpush.msra.mxu0 %v1853
    %2501 = vmatpush.msra.mxu0 %v1852
    %2502 = vmatpush.msra.mxu0 %v1851
    %2503 = vmatpush.msra.mxu0 %v1850
    %2504 = vmatpush.msra.mxu0 %v1849
    %2505 = vmatpush.msra.mxu0 %v1848
    %2506 = vmatpush.msra.mxu0 %v1847
    %2507 = vmatmul.f32.gmra.mxu0 %v1460
    %v2508 = vpop.f32.mrf.mxu0
    %v2509 = vadd.f32 %v2489, %v2508
    %2510 = vdwg.mxu0
    %2511 = vmatpush.msra.mxu0 %v1878
    %2512 = vmatpush.msra.mxu0 %v1877
    %2513 = vmatpush.msra.mxu0 %v1876
    %2514 = vmatpush.msra.mxu0 %v1875
    %2515 = vmatpush.msra.mxu0 %v1874
    %2516 = vmatpush.msra.mxu0 %v1873
    %2517 = vmatpush.msra.mxu0 %v1872
    %2518 = vmatpush.msra.mxu0 %v1871
    %2519 = vmatpush.msra.mxu0 %v1870
    %2520 = vmatpush.msra.mxu0 %v1869
    %2521 = vmatpush.msra.mxu0 %v1868
    %2522 = vmatpush.msra.mxu0 %v1867
    %2523 = vmatpush.msra.mxu0 %v1866
    %2524 = vmatpush.msra.mxu0 %v1865
    %2525 = vmatpush.msra.mxu0 %v1864
    %2526 = vmatpush.msra.mxu0 %v1863
    %2527 = vmatmul.f32.gmra.mxu0 %v1461
    %v2528 = vpop.f32.mrf.mxu0
    %v2529 = vadd.f32 %v2509, %v2528
    %2530 = vdwg.mxu0
    %2531 = vmatpush.msra.mxu0 %v1894
    %2532 = vmatpush.msra.mxu0 %v1893
    %2533 = vmatpush.msra.mxu0 %v1892
    %2534 = vmatpush.msra.mxu0 %v1891
    %2535 = vmatpush.msra.mxu0 %v1890
    %2536 = vmatpush.msra.mxu0 %v1889
    %2537 = vmatpush.msra.mxu0 %v1888
    %2538 = vmatpush.msra.mxu0 %v1887
    %2539 = vmatpush.msra.mxu0 %v1886
    %2540 = vmatpush.msra.mxu0 %v1885
    %2541 = vmatpush.msra.mxu0 %v1884
    %2542 = vmatpush.msra.mxu0 %v1883
    %2543 = vmatpush.msra.mxu0 %v1882
    %2544 = vmatpush.msra.mxu0 %v1881
    %2545 = vmatpush.msra.mxu0 %v1880
    %2546 = vmatpush.msra.mxu0 %v1879
    %2547 = vmatmul.f32.gmra.mxu0 %v1462
    %v2548 = vpop.f32.mrf.mxu0
    %v2549 = vadd.f32 %v2529, %v2548
    %2550 = vdwg.mxu0
    %2551 = vmatpush.msra.mxu0 %v1910
    %2552 = vmatpush.msra.mxu0 %v1909
    %2553 = vmatpush.msra.mxu0 %v1908
    %2554 = vmatpush.msra.mxu0 %v1907
    %2555 = vmatpush.msra.mxu0 %v1906
    %2556 = vmatpush.msra.mxu0 %v1905
    %2557 = vmatpush.msra.mxu0 %v1904
    %2558 = vmatpush.msra.mxu0 %v1903
    %2559 = vmatpush.msra.mxu0 %v1902
    %2560 = vmatpush.msra.mxu0 %v1901
    %2561 = vmatpush.msra.mxu0 %v1900
    %2562 = vmatpush.msra.mxu0 %v1899
    %2563 = vmatpush.msra.mxu0 %v1898
    %2564 = vmatpush.msra.mxu0 %v1897
    %2565 = vmatpush.msra.mxu0 %v1896
    %2566 = vmatpush.msra.mxu0 %v1895
    %2567 = vmatmul.f32.gmra.mxu0 %v1463
    %v2568 = vpop.f32.mrf.mxu0
    %v2569 = vadd.f32 %v2549, %v2568
    %2570 = vdwg.mxu0
    %2571 = vmatpush.msra.mxu0 %v1926
    %2572 = vmatpush.msra.mxu0 %v1925
    %2573 = vmatpush.msra.mxu0 %v1924
    %2574 = vmatpush.msra.mxu0 %v1923
    %2575 = vmatpush.msra.mxu0 %v1922
    %2576 = vmatpush.msra.mxu0 %v1921
    %2577 = vmatpush.msra.mxu0 %v1920
    %2578 = vmatpush.msra.mxu0 %v1919
    %2579 = vmatpush.msra.mxu0 %v1918
    %2580 = vmatpush.msra.mxu0 %v1917
    %2581 = vmatpush.msra.mxu0 %v1916
    %2582 = vmatpush.msra.mxu0 %v1915
    %2583 = vmatpush.msra.mxu0 %v1914
    %2584 = vmatpush.msra.mxu0 %v1913
    %2585 = vmatpush.msra.mxu0 %v1912
    %2586 = vmatpush.msra.mxu0 %v1911
    %2587 = vmatmul.f32.gmra.mxu0 %v1464
    %v2588 = vpop.f32.mrf.mxu0
    %v2589 = vadd.f32 %v2569, %v2588
    %2590 = vdwg.mxu0
    %2591 = vmatpush.msra.mxu0 %v1942
    %2592 = vmatpush.msra.mxu0 %v1941
    %2593 = vmatpush.msra.mxu0 %v1940
    %2594 = vmatpush.msra.mxu0 %v1939
    %2595 = vmatpush.msra.mxu0 %v1938
    %2596 = vmatpush.msra.mxu0 %v1937
    %2597 = vmatpush.msra.mxu0 %v1936
    %2598 = vmatpush.msra.mxu0 %v1935
    %2599 = vmatpush.msra.mxu0 %v1934
    %2600 = vmatpush.msra.mxu0 %v1933
    %2601 = vmatpush.msra.mxu0 %v1932
    %2602 = vmatpush.msra.mxu0 %v1931
    %2603 = vmatpush.msra.mxu0 %v1930
    %2604 = vmatpush.msra.mxu0 %v1929
    %2605 = vmatpush.msra.mxu0 %v1928
    %2606 = vmatpush.msra.mxu0 %v1927
    %2607 = vmatmul.f32.gmra.mxu0 %v1465
    %v2608 = vpop.f32.mrf.mxu0
    %v2609 = vadd.f32 %v2589, %v2608
    %2610 = vdwg.mxu0
    %2611 = vmatpush.msra.mxu0 %v1958
    %2612 = vmatpush.msra.mxu0 %v1957
    %2613 = vmatpush.msra.mxu0 %v1956
    %2614 = vmatpush.msra.mxu0 %v1955
    %2615 = vmatpush.msra.mxu0 %v1954
    %2616 = vmatpush.msra.mxu0 %v1953
    %2617 = vmatpush.msra.mxu0 %v1952
    %2618 = vmatpush.msra.mxu0 %v1951
    %2619 = vmatpush.msra.mxu0 %v1950
    %2620 = vmatpush.msra.mxu0 %v1949
    %2621 = vmatpush.msra.mxu0 %v1948
    %2622 = vmatpush.msra.mxu0 %v1947
    %2623 = vmatpush.msra.mxu0 %v1946
    %2624 = vmatpush.msra.mxu0 %v1945
    %2625 = vmatpush.msra.mxu0 %v1944
    %2626 = vmatpush.msra.mxu0 %v1943
    %2627 = vmatmul.f32.gmra.mxu0 %v1466
    %v2628 = vpop.f32.mrf.mxu0
    %v2629 = vadd.f32 %v2609, %v2628
    %2630 = vdwg.mxu0
    %2631 = vmatpush.msra.mxu0 %v1974
    %2632 = vmatpush.msra.mxu0 %v1973
    %2633 = vmatpush.msra.mxu0 %v1972
    %2634 = vmatpush.msra.mxu0 %v1971
    %2635 = vmatpush.msra.mxu0 %v1970
    %2636 = vmatpush.msra.mxu0 %v1969
    %2637 = vmatpush.msra.mxu0 %v1968
    %2638 = vmatpush.msra.mxu0 %v1967
    %2639 = vmatpush.msra.mxu0 %v1966
    %2640 = vmatpush.msra.mxu0 %v1965
    %2641 = vmatpush.msra.mxu0 %v1964
    %2642 = vmatpush.msra.mxu0 %v1963
    %2643 = vmatpush.msra.mxu0 %v1962
    %2644 = vmatpush.msra.mxu0 %v1961
    %2645 = vmatpush.msra.mxu0 %v1960
    %2646 = vmatpush.msra.mxu0 %v1959
    %2647 = vmatmul.f32.gmra.mxu0 %v1467
    %v2648 = vpop.f32.mrf.mxu0
    %v2649 = vadd.f32 %v2629, %v2648
    %2650 = vdwg.mxu0
    %2651 = vmatpush.msra.mxu0 %v1990
    %2652 = vmatpush.msra.mxu0 %v1989
    %2653 = vmatpush.msra.mxu0 %v1988
    %2654 = vmatpush.msra.mxu0 %v1987
    %2655 = vmatpush.msra.mxu0 %v1986
    %2656 = vmatpush.msra.mxu0 %v1985
    %2657 = vmatpush.msra.mxu0 %v1984
    %2658 = vmatpush.msra.mxu0 %v1983
    %2659 = vmatpush.msra.mxu0 %v1982
    %2660 = vmatpush.msra.mxu0 %v1981
    %2661 = vmatpush.msra.mxu0 %v1980
    %2662 = vmatpush.msra.mxu0 %v1979
    %2663 = vmatpush.msra.mxu0 %v1978
    %2664 = vmatpush.msra.mxu0 %v1977
    %2665 = vmatpush.msra.mxu0 %v1976
    %2666 = vmatpush.msra.mxu0 %v1975
    %2667 = vmatmul.f32.gmra.mxu0 %v1468
    %v2668 = vpop.f32.mrf.mxu0
    %v2669 = vadd.f32 %v2649, %v2668
    %2670 = vdwg.mxu0
    %2671 = vmatpush.msra.mxu0 %v2006
    %2672 = vmatpush.msra.mxu0 %v2005
    %2673 = vmatpush.msra.mxu0 %v2004
    %2674 = vmatpush.msra.mxu0 %v2003
    %2675 = vmatpush.msra.mxu0 %v2002
    %2676 = vmatpush.msra.mxu0 %v2001
    %2677 = vmatpush.msra.mxu0 %v2000
    %2678 = vmatpush.msra.mxu0 %v1999
    %2679 = vmatpush.msra.mxu0 %v1998
    %2680 = vmatpush.msra.mxu0 %v1997
    %2681 = vmatpush.msra.mxu0 %v1996
    %2682 = vmatpush.msra.mxu0 %v1995
    %2683 = vmatpush.msra.mxu0 %v1994
    %2684 = vmatpush.msra.mxu0 %v1993
    %2685 = vmatpush.msra.mxu0 %v1992
    %2686 = vmatpush.msra.mxu0 %v1991
    %2687 = vmatmul.f32.gmra.mxu0 %v1469
    %v2688 = vpop.f32.mrf.mxu0
    %v2689 = vadd.f32 %v2669, %v2688
    %2690 = vdwg.mxu0
    %2691 = vmatpush.msra.mxu0 %v2022
    %2692 = vmatpush.msra.mxu0 %v2021
    %2693 = vmatpush.msra.mxu0 %v2020
    %2694 = vmatpush.msra.mxu0 %v2019
    %2695 = vmatpush.msra.mxu0 %v2018
    %2696 = vmatpush.msra.mxu0 %v2017
    %2697 = vmatpush.msra.mxu0 %v2016
    %2698 = vmatpush.msra.mxu0 %v2015
    %2699 = vmatpush.msra.mxu0 %v2014
    %2700 = vmatpush.msra.mxu0 %v2013
    %2701 = vmatpush.msra.mxu0 %v2012
    %2702 = vmatpush.msra.mxu0 %v2011
    %2703 = vmatpush.msra.mxu0 %v2010
    %2704 = vmatpush.msra.mxu0 %v2009
    %2705 = vmatpush.msra.mxu0 %v2008
    %2706 = vmatpush.msra.mxu0 %v2007
    %2707 = vmatmul.f32.gmra.mxu0 %v1470
    %v2708 = vpop.f32.mrf.mxu0
    %v2709 = vadd.f32 %v2689, %v2708
    %2710 = vdwg.mxu0
    %2711 = vmatpush.msra.mxu0 %v2038
    %2712 = vmatpush.msra.mxu0 %v2037
    %2713 = vmatpush.msra.mxu0 %v2036
    %2714 = vmatpush.msra.mxu0 %v2035
    %2715 = vmatpush.msra.mxu0 %v2034
    %2716 = vmatpush.msra.mxu0 %v2033
    %2717 = vmatpush.msra.mxu0 %v2032
    %2718 = vmatpush.msra.mxu0 %v2031
    %2719 = vmatpush.msra.mxu0 %v2030
    %2720 = vmatpush.msra.mxu0 %v2029
    %2721 = vmatpush.msra.mxu0 %v2028
    %2722 = vmatpush.msra.mxu0 %v2027
    %2723 = vmatpush.msra.mxu0 %v2026
    %2724 = vmatpush.msra.mxu0 %v2025
    %2725 = vmatpush.msra.mxu0 %v2024
    %2726 = vmatpush.msra.mxu0 %v2023
    %2727 = vmatmul.f32.gmra.mxu0 %v1471
    %v2728 = vpop.f32.mrf.mxu0
    %v2729 = vadd.f32 %v2709, %v2728
    %2730 = vdwg.mxu0
    %2731 = vmatpush.msra.mxu0 %v2054
    %2732 = vmatpush.msra.mxu0 %v2053
    %2733 = vmatpush.msra.mxu0 %v2052
    %2734 = vmatpush.msra.mxu0 %v2051
    %2735 = vmatpush.msra.mxu0 %v2050
    %2736 = vmatpush.msra.mxu0 %v2049
    %2737 = vmatpush.msra.mxu0 %v2048
    %2738 = vmatpush.msra.mxu0 %v2047
    %2739 = vmatpush.msra.mxu0 %v2046
    %2740 = vmatpush.msra.mxu0 %v2045
    %2741 = vmatpush.msra.mxu0 %v2044
    %2742 = vmatpush.msra.mxu0 %v2043
    %2743 = vmatpush.msra.mxu0 %v2042
    %2744 = vmatpush.msra.mxu0 %v2041
    %2745 = vmatpush.msra.mxu0 %v2040
    %2746 = vmatpush.msra.mxu0 %v2039
    %2747 = vmatmul.f32.gmra.mxu0 %v1472
    %v2748 = vpop.f32.mrf.mxu0
    %v2749 = vadd.f32 %v2729, %v2748
    %2750 = vdwg.mxu0
    %2751 = vmatpush.msra.mxu0 %v2070
    %2752 = vmatpush.msra.mxu0 %v2069
    %2753 = vmatpush.msra.mxu0 %v2068
    %2754 = vmatpush.msra.mxu0 %v2067
    %2755 = vmatpush.msra.mxu0 %v2066
    %2756 = vmatpush.msra.mxu0 %v2065
    %2757 = vmatpush.msra.mxu0 %v2064
    %2758 = vmatpush.msra.mxu0 %v2063
    %2759 = vmatpush.msra.mxu0 %v2062
    %2760 = vmatpush.msra.mxu0 %v2061
    %2761 = vmatpush.msra.mxu0 %v2060
    %2762 = vmatpush.msra.mxu0 %v2059
    %2763 = vmatpush.msra.mxu0 %v2058
    %2764 = vmatpush.msra.mxu0 %v2057
    %2765 = vmatpush.msra.mxu0 %v2056
    %2766 = vmatpush.msra.mxu0 %v2055
    %2767 = vmatmul.f32.gmra.mxu0 %v1473
    %v2768 = vpop.f32.mrf.mxu0
    %v2769 = vadd.f32 %v2749, %v2768
    %2770 = vdwg.mxu0
    %2771 = vmatpush.msra.mxu0 %v2086
    %2772 = vmatpush.msra.mxu0 %v2085
    %2773 = vmatpush.msra.mxu0 %v2084
    %2774 = vmatpush.msra.mxu0 %v2083
    %2775 = vmatpush.msra.mxu0 %v2082
    %2776 = vmatpush.msra.mxu0 %v2081
    %2777 = vmatpush.msra.mxu0 %v2080
    %2778 = vmatpush.msra.mxu0 %v2079
    %2779 = vmatpush.msra.mxu0 %v2078
    %2780 = vmatpush.msra.mxu0 %v2077
    %2781 = vmatpush.msra.mxu0 %v2076
    %2782 = vmatpush.msra.mxu0 %v2075
    %2783 = vmatpush.msra.mxu0 %v2074
    %2784 = vmatpush.msra.mxu0 %v2073
    %2785 = vmatpush.msra.mxu0 %v2072
    %2786 = vmatpush.msra.mxu0 %v2071
    %2787 = vmatmul.f32.gmra.mxu0 %v1474
    %v2788 = vpop.f32.mrf.mxu0
    %v2789 = vadd.f32 %v2769, %v2788
    %2790 = vdwg.mxu0
    %2791 = vmatpush.msra.mxu0 %v2102
    %2792 = vmatpush.msra.mxu0 %v2101
    %2793 = vmatpush.msra.mxu0 %v2100
    %2794 = vmatpush.msra.mxu0 %v2099
    %2795 = vmatpush.msra.mxu0 %v2098
    %2796 = vmatpush.msra.mxu0 %v2097
    %2797 = vmatpush.msra.mxu0 %v2096
    %2798 = vmatpush.msra.mxu0 %v2095
    %2799 = vmatpush.msra.mxu0 %v2094
    %2800 = vmatpush.msra.mxu0 %v2093
    %2801 = vmatpush.msra.mxu0 %v2092
    %2802 = vmatpush.msra.mxu0 %v2091
    %2803 = vmatpush.msra.mxu0 %v2090
    %2804 = vmatpush.msra.mxu0 %v2089
    %2805 = vmatpush.msra.mxu0 %v2088
    %2806 = vmatpush.msra.mxu0 %v2087
    %2807 = vmatmul.f32.gmra.mxu0 %v1475
    %v2808 = vpop.f32.mrf.mxu0
    %v2809 = vadd.f32 %v2789, %v2808
    %2810 = vdwg.mxu0
    %2811 = vmatpush.msra.mxu0 %v2118
    %2812 = vmatpush.msra.mxu0 %v2117
    %2813 = vmatpush.msra.mxu0 %v2116
    %2814 = vmatpush.msra.mxu0 %v2115
    %2815 = vmatpush.msra.mxu0 %v2114
    %2816 = vmatpush.msra.mxu0 %v2113
    %2817 = vmatpush.msra.mxu0 %v2112
    %2818 = vmatpush.msra.mxu0 %v2111
    %2819 = vmatpush.msra.mxu0 %v2110
    %2820 = vmatpush.msra.mxu0 %v2109
    %2821 = vmatpush.msra.mxu0 %v2108
    %2822 = vmatpush.msra.mxu0 %v2107
    %2823 = vmatpush.msra.mxu0 %v2106
    %2824 = vmatpush.msra.mxu0 %v2105
    %2825 = vmatpush.msra.mxu0 %v2104
    %2826 = vmatpush.msra.mxu0 %v2103
    %2827 = vmatmul.f32.gmra.mxu0 %v1476
    %v2828 = vpop.f32.mrf.mxu0
    %v2829 = vadd.f32 %v2809, %v2828
    %2830 = vdwg.mxu0
    %2831 = vmatpush.msra.mxu0 %v2134
    %2832 = vmatpush.msra.mxu0 %v2133
    %2833 = vmatpush.msra.mxu0 %v2132
    %2834 = vmatpush.msra.mxu0 %v2131
    %2835 = vmatpush.msra.mxu0 %v2130
    %2836 = vmatpush.msra.mxu0 %v2129
    %2837 = vmatpush.msra.mxu0 %v2128
    %2838 = vmatpush.msra.mxu0 %v2127
    %2839 = vmatpush.msra.mxu0 %v2126
    %2840 = vmatpush.msra.mxu0 %v2125
    %2841 = vmatpush.msra.mxu0 %v2124
    %2842 = vmatpush.msra.mxu0 %v2123
    %2843 = vmatpush.msra.mxu0 %v2122
    %2844 = vmatpush.msra.mxu0 %v2121
    %2845 = vmatpush.msra.mxu0 %v2120
    %2846 = vmatpush.msra.mxu0 %v2119
    %2847 = vmatmul.f32.gmra.mxu0 %v1477
    %v2848 = vpop.f32.mrf.mxu0
    %v2849 = vadd.f32 %v2829, %v2848
    %2850 = vdwg.mxu0
    %2851 = vmatpush.msra.mxu0 %v2150
    %2852 = vmatpush.msra.mxu0 %v2149
    %2853 = vmatpush.msra.mxu0 %v2148
    %2854 = vmatpush.msra.mxu0 %v2147
    %2855 = vmatpush.msra.mxu0 %v2146
    %2856 = vmatpush.msra.mxu0 %v2145
    %2857 = vmatpush.msra.mxu0 %v2144
    %2858 = vmatpush.msra.mxu0 %v2143
    %2859 = vmatpush.msra.mxu0 %v2142
    %2860 = vmatpush.msra.mxu0 %v2141
    %2861 = vmatpush.msra.mxu0 %v2140
    %2862 = vmatpush.msra.mxu0 %v2139
    %2863 = vmatpush.msra.mxu0 %v2138
    %2864 = vmatpush.msra.mxu0 %v2137
    %2865 = vmatpush.msra.mxu0 %v2136
    %2866 = vmatpush.msra.mxu0 %v2135
    %2867 = vmatmul.f32.gmra.mxu0 %v1478
    %v2868 = vpop.f32.mrf.mxu0
    %v2869 = vadd.f32 %v2849, %v2868
    %2870 = vdwg.mxu0
    %2871 = vmatpush.msra.mxu0 %v2166
    %2872 = vmatpush.msra.mxu0 %v2165
    %2873 = vmatpush.msra.mxu0 %v2164
    %2874 = vmatpush.msra.mxu0 %v2163
    %2875 = vmatpush.msra.mxu0 %v2162
    %2876 = vmatpush.msra.mxu0 %v2161
    %2877 = vmatpush.msra.mxu0 %v2160
    %2878 = vmatpush.msra.mxu0 %v2159
    %2879 = vmatpush.msra.mxu0 %v2158
    %2880 = vmatpush.msra.mxu0 %v2157
    %2881 = vmatpush.msra.mxu0 %v2156
    %2882 = vmatpush.msra.mxu0 %v2155
    %2883 = vmatpush.msra.mxu0 %v2154
    %2884 = vmatpush.msra.mxu0 %v2153
    %2885 = vmatpush.msra.mxu0 %v2152
    %2886 = vmatpush.msra.mxu0 %v2151
    %2887 = vmatmul.f32.gmra.mxu0 %v1479
    %v2888 = vpop.f32.mrf.mxu0
    %v2889 = vadd.f32 %v2869, %v2888
    %2890 = vdwg.mxu0
    %2891 = vst [vmem:[#allocation7] sm:$0x3] %v2889
    // Predicated region
    $region42: #{_forward.1} parent=1 // pred_check
      _
    $region43: #{_forward.1} parent=1 // pred_check_branch
      %2893 = sbr.rel (0) target = $region45
    $region44: #{_forward.1} parent=1 // pred_region
      _
    $region45: #{_forward.1} parent=1 // pred_fallthru
      _
    // Predicated region
    $region46: #{_forward.1} parent=1 // pred_check
      _
    $region47: #{_forward.1} parent=1 // pred_check_branch
      %2895 = sbr.rel (0) target = $region49
    $region48: #{_forward.1} parent=1 // pred_region
      %2897 = vsyncadd [#allocation6], 0
      %s2899 = sshll.u32 [#allocation7], 4
      %s2900 = int_to_ptr.vmem [resolvable:$true] %s2899
      %s2901 = sshll.u32 %s10, 4
      %s2902 = int_to_ptr.hbm [resolvable:$true] %s2901
      %2904 = dma.vmem_to_hbm [thread:$0]  %s2900, 32, %s2902, [#allocation6]
    $region49: #{_forward.1} parent=1 // pred_fallthru
      _
    // Predicated region
    $region50: #{_forward.1} parent=1 // pred_check
      _
    $region51: #{_forward.1} parent=1 // pred_check_branch
      %2906 = sbr.rel (0) target = $region53
    $region52: #{_forward.1} parent=1 // pred_region
      _
    $region53: #{_forward.1} parent=1 // pred_fallthru
      _
    // Predicated region
    $region54: #{_forward.1} parent=1 // pred_check
      _
    $region55: #{_forward.1} parent=1 // pred_check_branch
      %2908 = sbr.rel (0) target = $region57
    $region56: #{_forward.1} parent=1 // pred_region
      %2910 = dma.done [#allocation6], 32
    $region57: #{_forward.1} parent=1 // pred_fallthru
      _
    %2911 = vsyncpa [#allocation5], 1
    %2912 = vsyncpa [#allocation6], 1

</llo_original>
